<compile_context>
chip_gen: v6e
topology: v6e:2x2x1
jax: 0.10.0
libtpu: 0.0.40
codegen_flags: <defaults>
</compile_context>

<pallas_src>
import math

import jax
import jax.numpy as jnp
from jax.experimental import pallas as pl
from jax.experimental.pallas import tpu as pltpu


# ----------------------------------------------------------------------------
# Pallas kernel: MLP forward + analytic per-sample Jacobian w.r.t. y
# ----------------------------------------------------------------------------
def make_node_kernel(n_layers, n_y, n_out, n_op, tb):
    """Kernel for `n_layers` tanh layers + linear readout on a TB-row batch tile.

    n_y   : number of Jacobian input columns kept (force column dropped)
    n_out : true output dim
    n_op  : n_out padded up to a multiple of 8 (sublane friendly)
    tb    : batch-tile rows (multiple of 8)
    """
    n_params = 3 * n_layers + 3

    def kernel(*refs):
        y_ref = refs[0]
        p = refs[1:1 + n_params]
        out_ref = refs[1 + n_params]
        jac_ref = refs[2 + n_params]

        y = y_ref[...]                                          # (tb, n_y) f32

        # ---------------- forward pass (force folded into bias) -------------
        w1yt, b1, w1y = p[0][...], p[1][...], p[2][...]
        h = jnp.tanh(jnp.dot(y, w1yt, preferred_element_type=jnp.float32) + b1)
        ds = [1.0 - h * h]                                      # tanh' per layer
        w_back = []                                             # untransposed W_l, l>=2
        for l in range(1, n_layers):
            wt, b, w = p[3 * l][...], p[3 * l + 1][...], p[3 * l + 2][...]
            w_back.append(w)
            h = jnp.tanh(jnp.dot(h, wt, preferred_element_type=jnp.float32) + b)
            ds.append(1.0 - h * h)
        wout_t = p[3 * n_layers][...]
        bout = p[3 * n_layers + 1][...]
        wout_pad = p[3 * n_layers + 2][...]                     # (n_op, w_L), zero-padded
        out_ref[...] = jnp.dot(h, wout_t, preferred_element_type=jnp.float32) + bout

        # -------- analytic Jacobian wrt y (reverse chain-rule propagation) --
        # g[b, o, j] = d out_o / d h_j ; kept 3-D for the cheap tanh' scaling,
        # flattened to (tb*n_op, w) for the 2-D MXU matmuls (reshapes are
        # layout-free because n_op % 8 == 0).
        g = wout_pad[None, :, :] * ds[-1][:, None, :]           # (tb, n_op, w_L)
        for l in range(n_layers - 1, 0, -1):
            w = w_back[l - 1]                                   # (w_{l+1}, w_l)
            g2 = jnp.dot(g.reshape(tb * n_op, g.shape[-1]), w,
                         preferred_element_type=jnp.float32)
            g = g2.reshape(tb, n_op, w.shape[-1]) * ds[l - 1][:, None, :]
        j2 = jnp.dot(g.reshape(tb * n_op, g.shape[-1]), w1y,
                     preferred_element_type=jnp.float32)        # (tb*n_op, n_y)
        jac_ref[...] = j2.reshape(tb, n_op, n_y)[:, :n_out, :]  # drop pad rows

    return kernel


# ----------------------------------------------------------------------------
# Wrapper: lay out params, tile the batch, call the kernel, restore shapes
# ----------------------------------------------------------------------------
def neural_ode_forward(t, y, params, force, tb=512):
    f32 = jnp.float32
    batch_shape = y.shape[:-1]
    n_y = y.shape[-1]                              # = n_hidden + 1
    B = int(math.prod(batch_shape)) if batch_shape else 1

    hidden = params['hidden']
    Wout, bout = params['out']
    n_out = Wout.shape[0]
    n_layers = len(hidden)
    n_op = ((n_out + 7) // 8) * 8                  # pad n_out to sublane multiple

    y2 = y.reshape(B, n_y).astype(f32)

    # batch tile: multiple of 8; pad B up to a multiple of tb if needed
    b8 = max(8, ((B + 7) // 8) * 8)
    tb = max(8, min((tb // 8) * 8, b8))
    B_pad = ((B + tb - 1) // tb) * tb
    if B_pad != B:
        y2 = jnp.concatenate([y2, jnp.zeros((B_pad - B, n_y), f32)], axis=0)

    # --- parameters: pre-transposed / pre-split once in the wrapper (tiny) ---
    W1, b1 = hidden[0]
    W1 = W1.astype(f32)
    f_t = jnp.asarray(force(t), f32)
    args = [
        y2,
        W1[:, :n_y].T,                                        # (n_y, w1)  forward
        (b1.astype(f32) + f_t * W1[:, n_y]).reshape(1, -1),   # force folded in
        W1[:, :n_y],                                          # (w1, n_y)  jacobian
    ]
    for (W, b) in hidden[1:]:
        W = W.astype(f32)
        args += [W.T, b.astype(f32).reshape(1, -1), W]
    Wout = Wout.astype(f32)
    wout_pad = jnp.zeros((n_op, Wout.shape[1]), f32).at[:n_out].set(Wout)
    args += [Wout.T, bout.astype(f32).reshape(1, -1), wout_pad]

    grid = (B_pad // tb,)

    def resident(a):                                      # weights stay in VMEM
        return pl.BlockSpec(a.shape, lambda i: (0, 0))

    in_specs = ([pl.BlockSpec((tb, n_y), lambda i: (i, 0))]
                + [resident(a) for a in args[1:]])
    out_specs = (pl.BlockSpec((tb, n_out), lambda i: (i, 0)),
                 pl.BlockSpec((tb, n_out, n_y), lambda i: (i, 0, 0)))

    out_flat, jac = pl.pallas_call(
        make_node_kernel(n_layers, n_y, n_out, n_op, tb),
        grid=grid,
        in_specs=in_specs,
        out_specs=out_specs,
        out_shape=(jax.ShapeDtypeStruct((B_pad, n_out), f32),
                   jax.ShapeDtypeStruct((B_pad, n_out, n_y), f32)),
        compiler_params=pltpu.CompilerParams(
            dimension_semantics=("parallel",)),
    )(*args)

    if B_pad != B:
        out_flat = out_flat[:B]
        jac = jac[:B]
    return (out_flat.reshape(batch_shape + (n_out,)),
            jac.reshape(batch_shape + (n_out, n_y)))


def neural_ode_initial(nsamples, n_out):
    return jnp.zeros((nsamples, n_out), dtype=jnp.float32)


# ----------------------------------------------------------------------------
# Deterministic parameter init + pure-JAX reference model
# ----------------------------------------------------------------------------
def init_mlp_params(key, n_in, n_inter, n_out, n_layers):
    dims = [n_in] + [n_inter] * n_layers
    hidden = []
    for i in range(n_layers):
        key, k1, k2 = jax.random.split(key, 3)
        W = jax.random.normal(k1, (dims[i + 1], dims[i]), jnp.float32) / jnp.sqrt(dims[i])
        b = 0.1 * jax.random.normal(k2, (dims[i + 1],), jnp.float32)
        hidden.append((W, b))
    key, k1, k2 = jax.random.split(key, 3)
    Wout = jax.random.normal(k1, (n_out, n_inter), jnp.float32) / jnp.sqrt(n_inter)
    bout = 0.1 * jax.random.normal(k2, (n_out,), jnp.float32)
    return {'hidden': hidden, 'out': (Wout, bout)}


def mlp_apply(params, x):
    h = x
    for W, b in params['hidden']:
        h = jnp.tanh(h @ W.T + b)
    Wout, bout = params['out']
    return h @ Wout.T + bout


# ----------------------------------------------------------------------------
if __name__ == "__main__":
    n_hidden, n_layers, n_inter = 32, 2, 32
    n_in = n_hidden + 2          # model input dim (y ++ force)
    n_out = n_hidden + 1         # model output dim == y dim
    B1, B2 = 4, 16               # two leading batch dims (matches vmap(vmap(...)))

    key = jax.random.PRNGKey(0)
    key, ky = jax.random.split(key)
    y = jax.random.normal(ky, (B1, B2, n_out), jnp.float32)
    t = jnp.float32(0.5)
    params = init_mlp_params(jax.random.PRNGKey(1), n_in, n_inter, n_out, n_layers)
    force = jnp.sin

    # small batch tile so the example exercises a multi-step grid
    f_val, jac_val = neural_ode_forward(t, y, params, force, tb=32)
    jax.block_until_ready((f_val, jac_val))

    # Cross-check against pure-JAX jacrev (semantics of torch.func vmap(vmap(jacrev))).
    inp_ref = jnp.concatenate(
        [y, jnp.full(y.shape[:-1] + (1,), force(t), jnp.float32)], axis=-1)
    ref_f = mlp_apply(params, inp_ref)
    ref_jac = jax.vmap(jax.vmap(jax.jacrev(lambda v: mlp_apply(params, v))))(inp_ref)[..., :-1]

    assert f_val.shape == (B1, B2, n_out) and jac_val.shape == (B1, B2, n_out, n_out)
    assert jnp.allclose(f_val, ref_f, atol=1e-4, rtol=1e-4)
    assert jnp.allclose(jac_val, ref_jac, atol=1e-4, rtol=1e-4)
    print("KERNEL_OK")
</pallas_src>

<mosaic_0001>
module attributes {stable_mosaic.version = 11 : i64} {
  func.func @kernel(%arg0: i32, %arg1: memref<32x33xf32, #tpu.memory_space<vmem>>, %arg2: memref<33x32xf32, #tpu.memory_space<vmem>>, %arg3: memref<1x32xf32, #tpu.memory_space<vmem>>, %arg4: memref<32x33xf32, #tpu.memory_space<vmem>>, %arg5: memref<32x32xf32, #tpu.memory_space<vmem>>, %arg6: memref<1x32xf32, #tpu.memory_space<vmem>>, %arg7: memref<32x32xf32, #tpu.memory_space<vmem>>, %arg8: memref<32x33xf32, #tpu.memory_space<vmem>>, %arg9: memref<1x33xf32, #tpu.memory_space<vmem>>, %arg10: memref<40x32xf32, #tpu.memory_space<vmem>>, %arg11: memref<32x33xf32, #tpu.memory_space<vmem>>, %arg12: memref<32x33x33xf32, #tpu.memory_space<vmem>>) attributes {dimension_semantics = [#tpu.dimension_semantics<parallel>], iteration_bounds = array<i64: 2>, scalar_prefetch = 0 : i64, scratch_operands = 0 : i64, tpu.core_type = #tpu.core_type<tc>, window_params = [{transform_indices = @transform_0, window_bounds = array<i64: 32, 33>}, {pipeline_mode = #tpu.pipeline_mode<synchronous>, transform_indices = @transform_1, window_bounds = array<i64: 33, 32>}, {pipeline_mode = #tpu.pipeline_mode<synchronous>, transform_indices = @transform_2, window_bounds = array<i64: 1, 32>}, {pipeline_mode = #tpu.pipeline_mode<synchronous>, transform_indices = @transform_3, window_bounds = array<i64: 32, 33>}, {pipeline_mode = #tpu.pipeline_mode<synchronous>, transform_indices = @transform_4, window_bounds = array<i64: 32, 32>}, {pipeline_mode = #tpu.pipeline_mode<synchronous>, transform_indices = @transform_5, window_bounds = array<i64: 1, 32>}, {pipeline_mode = #tpu.pipeline_mode<synchronous>, transform_indices = @transform_6, window_bounds = array<i64: 32, 32>}, {pipeline_mode = #tpu.pipeline_mode<synchronous>, transform_indices = @transform_7, window_bounds = array<i64: 32, 33>}, {pipeline_mode = #tpu.pipeline_mode<synchronous>, transform_indices = @transform_8, window_bounds = array<i64: 1, 33>}, {pipeline_mode = #tpu.pipeline_mode<synchronous>, transform_indices = @transform_9, window_bounds = array<i64: 40, 32>}, {transform_indices = @transform_10, window_bounds = array<i64: 32, 33>}, {transform_indices = @transform_11, window_bounds = array<i64: 32, 33, 33>}]} {
    %c0 = arith.constant 0 : index
    %c0_0 = arith.constant 0 : index
    %0 = vector.load %arg1[%c0, %c0_0] : memref<32x33xf32, #tpu.memory_space<vmem>>, vector<32x33xf32>
    %c0_1 = arith.constant 0 : index
    %c0_2 = arith.constant 0 : index
    %1 = vector.load %arg2[%c0_1, %c0_2] : memref<33x32xf32, #tpu.memory_space<vmem>>, vector<33x32xf32>
    %c0_3 = arith.constant 0 : index
    %c0_4 = arith.constant 0 : index
    %2 = vector.load %arg3[%c0_3, %c0_4] : memref<1x32xf32, #tpu.memory_space<vmem>>, vector<1x32xf32>
    %c0_5 = arith.constant 0 : index
    %c0_6 = arith.constant 0 : index
    %3 = vector.load %arg4[%c0_5, %c0_6] : memref<32x33xf32, #tpu.memory_space<vmem>>, vector<32x33xf32>
    %cst = arith.constant dense<0.000000e+00> : vector<32x32xf32>
    %4 = tpu.matmul %0, %1, %cst {dimension_numbers = #tpu.dot_dimension_numbers<[1], [0], [0], [1], [0, 0, 1, 1], [], []>} : vector<32x33xf32>, vector<33x32xf32>, vector<32x32xf32> -> vector<32x32xf32>
    %5 = vector.broadcast %2 : vector<1x32xf32> to vector<32x32xf32>
    %6 = arith.addf %4, %5 : vector<32x32xf32>
    %7 = math.tanh %6 : vector<32x32xf32>
    %8 = arith.mulf %7, %7 : vector<32x32xf32>
    %cst_7 = arith.constant 1.000000e+00 : f32
    %9 = vector.broadcast %cst_7 : f32 to vector<32x32xf32>
    %10 = arith.subf %9, %8 : vector<32x32xf32>
    %c0_8 = arith.constant 0 : index
    %c0_9 = arith.constant 0 : index
    %11 = vector.load %arg5[%c0_8, %c0_9] : memref<32x32xf32, #tpu.memory_space<vmem>>, vector<32x32xf32>
    %c0_10 = arith.constant 0 : index
    %c0_11 = arith.constant 0 : index
    %12 = vector.load %arg6[%c0_10, %c0_11] : memref<1x32xf32, #tpu.memory_space<vmem>>, vector<1x32xf32>
    %c0_12 = arith.constant 0 : index
    %c0_13 = arith.constant 0 : index
    %13 = vector.load %arg7[%c0_12, %c0_13] : memref<32x32xf32, #tpu.memory_space<vmem>>, vector<32x32xf32>
    %cst_14 = arith.constant dense<0.000000e+00> : vector<32x32xf32>
    %14 = tpu.matmul %7, %11, %cst_14 {dimension_numbers = #tpu.dot_dimension_numbers<[1], [0], [0], [1], [0, 0, 1, 1], [], []>} : vector<32x32xf32>, vector<32x32xf32>, vector<32x32xf32> -> vector<32x32xf32>
    %15 = vector.broadcast %12 : vector<1x32xf32> to vector<32x32xf32>
    %16 = arith.addf %14, %15 : vector<32x32xf32>
    %17 = math.tanh %16 : vector<32x32xf32>
    %18 = arith.mulf %17, %17 : vector<32x32xf32>
    %cst_15 = arith.constant 1.000000e+00 : f32
    %19 = vector.broadcast %cst_15 : f32 to vector<32x32xf32>
    %20 = arith.subf %19, %18 : vector<32x32xf32>
    %c0_16 = arith.constant 0 : index
    %c0_17 = arith.constant 0 : index
    %21 = vector.load %arg8[%c0_16, %c0_17] : memref<32x33xf32, #tpu.memory_space<vmem>>, vector<32x33xf32>
    %c0_18 = arith.constant 0 : index
    %c0_19 = arith.constant 0 : index
    %22 = vector.load %arg9[%c0_18, %c0_19] : memref<1x33xf32, #tpu.memory_space<vmem>>, vector<1x33xf32>
    %c0_20 = arith.constant 0 : index
    %c0_21 = arith.constant 0 : index
    %23 = vector.load %arg10[%c0_20, %c0_21] : memref<40x32xf32, #tpu.memory_space<vmem>>, vector<40x32xf32>
    %cst_22 = arith.constant dense<0.000000e+00> : vector<32x33xf32>
    %24 = tpu.matmul %17, %21, %cst_22 {dimension_numbers = #tpu.dot_dimension_numbers<[1], [0], [0], [1], [0, 0, 1, 1], [], []>} : vector<32x32xf32>, vector<32x33xf32>, vector<32x33xf32> -> vector<32x33xf32>
    %25 = vector.broadcast %22 : vector<1x33xf32> to vector<32x33xf32>
    %26 = arith.addf %24, %25 : vector<32x33xf32>
    %c0_23 = arith.constant 0 : index
    %c0_24 = arith.constant 0 : index
    %27 = vector.load %arg11[%c0_23, %c0_24] : memref<32x33xf32, #tpu.memory_space<vmem>>, vector<32x33xf32>
    tpu.vector_store %arg11[%c0_23, %c0_24], %26 {strides = array<i32>} : memref<32x33xf32, #tpu.memory_space<vmem>>, vector<32x33xf32>,
    %28 = vector.shape_cast %23 : vector<40x32xf32> to vector<1x40x32xf32>
    %29 = vector.shape_cast %20 : vector<32x32xf32> to vector<32x1x32xf32>
    %30 = vector.broadcast %28 : vector<1x40x32xf32> to vector<32x40x32xf32>
    %31 = vector.broadcast %29 : vector<32x1x32xf32> to vector<32x40x32xf32>
    %32 = arith.mulf %30, %31 : vector<32x40x32xf32>
    %33 = vector.shape_cast %32 : vector<32x40x32xf32> to vector<1280x32xf32>
    %cst_25 = arith.constant dense<0.000000e+00> : vector<1280x32xf32>
    %34 = tpu.matmul %33, %13, %cst_25 {dimension_numbers = #tpu.dot_dimension_numbers<[1], [0], [0], [1], [0, 0, 1, 1], [], []>} : vector<1280x32xf32>, vector<32x32xf32>, vector<1280x32xf32> -> vector<1280x32xf32>
    %35 = vector.shape_cast %34 : vector<1280x32xf32> to vector<32x40x32xf32>
    %36 = vector.shape_cast %10 : vector<32x32xf32> to vector<32x1x32xf32>
    %37 = vector.broadcast %36 : vector<32x1x32xf32> to vector<32x40x32xf32>
    %38 = arith.mulf %35, %37 : vector<32x40x32xf32>
    %39 = vector.shape_cast %38 : vector<32x40x32xf32> to vector<1280x32xf32>
    %cst_26 = arith.constant dense<0.000000e+00> : vector<1280x33xf32>
    %40 = tpu.matmul %39, %3, %cst_26 {dimension_numbers = #tpu.dot_dimension_numbers<[1], [0], [0], [1], [0, 0, 1, 1], [], []>} : vector<1280x32xf32>, vector<32x33xf32>, vector<1280x33xf32> -> vector<1280x33xf32>
    %41 = vector.shape_cast %40 : vector<1280x33xf32> to vector<32x40x33xf32>
    %42 = vector.extract_strided_slice %41 {offsets = [0, 0, 0], sizes = [32, 33, 33], strides = [1, 1, 1]} : vector<32x40x33xf32> to vector<32x33x33xf32>
    %c0_27 = arith.constant 0 : index
    %c0_28 = arith.constant 0 : index
    %c0_29 = arith.constant 0 : index
    %43 = vector.load %arg12[%c0_27, %c0_28, %c0_29] : memref<32x33x33xf32, #tpu.memory_space<vmem>>, vector<32x33x33xf32>
    tpu.vector_store %arg12[%c0_27, %c0_28, %c0_29], %42 {strides = array<i32>} : memref<32x33x33xf32, #tpu.memory_space<vmem>>, vector<32x33x33xf32>,
    return
  }
  func.func @transform_0(%arg0: i32) -> (i32, i32) {
    %c0_i32 = arith.constant 0 : i32
    %c0_i32_0 = arith.constant 0 : i32
    return %arg0, %c0_i32 : i32, i32
  }
  func.func @transform_1(%arg0: i32) -> (i32, i32) {
    %c0_i32 = arith.constant 0 : i32
    %c0_i32_0 = arith.constant 0 : i32
    %c0_i32_1 = arith.constant 0 : i32
    return %c0_i32, %c0_i32_0 : i32, i32
  }
  func.func @transform_2(%arg0: i32) -> (i32, i32) {
    %c0_i32 = arith.constant 0 : i32
    %c0_i32_0 = arith.constant 0 : i32
    %c0_i32_1 = arith.constant 0 : i32
    return %c0_i32, %c0_i32_0 : i32, i32
  }
  func.func @transform_3(%arg0: i32) -> (i32, i32) {
    %c0_i32 = arith.constant 0 : i32
    %c0_i32_0 = arith.constant 0 : i32
    %c0_i32_1 = arith.constant 0 : i32
    return %c0_i32, %c0_i32_0 : i32, i32
  }
  func.func @transform_4(%arg0: i32) -> (i32, i32) {
    %c0_i32 = arith.constant 0 : i32
    %c0_i32_0 = arith.constant 0 : i32
    %c0_i32_1 = arith.constant 0 : i32
    return %c0_i32, %c0_i32_0 : i32, i32
  }
  func.func @transform_5(%arg0: i32) -> (i32, i32) {
    %c0_i32 = arith.constant 0 : i32
    %c0_i32_0 = arith.constant 0 : i32
    %c0_i32_1 = arith.constant 0 : i32
    return %c0_i32, %c0_i32_0 : i32, i32
  }
  func.func @transform_6(%arg0: i32) -> (i32, i32) {
    %c0_i32 = arith.constant 0 : i32
    %c0_i32_0 = arith.constant 0 : i32
    %c0_i32_1 = arith.constant 0 : i32
    return %c0_i32, %c0_i32_0 : i32, i32
  }
  func.func @transform_7(%arg0: i32) -> (i32, i32) {
    %c0_i32 = arith.constant 0 : i32
    %c0_i32_0 = arith.constant 0 : i32
    %c0_i32_1 = arith.constant 0 : i32
    return %c0_i32, %c0_i32_0 : i32, i32
  }
  func.func @transform_8(%arg0: i32) -> (i32, i32) {
    %c0_i32 = arith.constant 0 : i32
    %c0_i32_0 = arith.constant 0 : i32
    %c0_i32_1 = arith.constant 0 : i32
    return %c0_i32, %c0_i32_0 : i32, i32
  }
  func.func @transform_9(%arg0: i32) -> (i32, i32) {
    %c0_i32 = arith.constant 0 : i32
    %c0_i32_0 = arith.constant 0 : i32
    %c0_i32_1 = arith.constant 0 : i32
    return %c0_i32, %c0_i32_0 : i32, i32
  }
  func.func @transform_10(%arg0: i32) -> (i32, i32) {
    %c0_i32 = arith.constant 0 : i32
    %c0_i32_0 = arith.constant 0 : i32
    return %arg0, %c0_i32 : i32, i32
  }
  func.func @transform_11(%arg0: i32) -> (i32, i32, i32) {
    %c0_i32 = arith.constant 0 : i32
    %c0_i32_0 = arith.constant 0 : i32
    %c0_i32_1 = arith.constant 0 : i32
    return %arg0, %c0_i32, %c0_i32_0 : i32, i32, i32
  }
}

</mosaic_0001>

<llo_original>
// kernel: tpu_custom_call.1
$region0: #{tpu_custom_call.1}
  #allocation0 [shape = 'u32[]', space=smem, size = 0x4, offset = 0x4, fixed_abs, tag = 'smem constant byte address 0x4 - core index']
  #allocation1 [shape = 'u32[144,128]{1,0:T(1,128)}', space=vmem, size = 0x12000, scoped, tag = 'internal scratch']
  %s0 = inlined_call_operand.vmem [shape: f32[64,33], index: 0, kind: input, shape index: {}]
  %s1 = inlined_call_operand.vmem [shape: f32[33,32], index: 1, kind: input, shape index: {}]
  %s2 = inlined_call_operand.hbm [shape: f32[1,32], index: 2, kind: input, shape index: {}]
  %s3 = inlined_call_operand.hbm [shape: f32[32,33], index: 3, kind: input, shape index: {}]
  %s4 = inlined_call_operand.hbm [shape: f32[32,32], index: 4, kind: input, shape index: {}]
  %s5 = inlined_call_operand.hbm [shape: f32[1,32], index: 5, kind: input, shape index: {}]
  %s6 = inlined_call_operand.hbm [shape: f32[32,32], index: 6, kind: input, shape index: {}]
  %s7 = inlined_call_operand.hbm [shape: f32[32,33], index: 7, kind: input, shape index: {}]
  %s8 = inlined_call_operand.hbm [shape: f32[1,33], index: 8, kind: input, shape index: {}]
  %s9 = inlined_call_operand.vmem [shape: f32[40,32], index: 9, kind: input, shape index: {}]
  %s10 = inlined_call_operand.vmem [shape: f32[64,33], index: 10, kind: output, shape index: {0}]
  %s11 = inlined_call_operand.vmem [shape: f32[64,33,33], index: 11, kind: output, shape index: {1}]
  %12 = xla_tuple %s10, %s11
  %s13 = sld [smem:[#allocation0]]
  $region109: #{tpu_custom_call.1} parent=0
    _
  %s15 = ssub.s32 1, %s13
  %s16 = scalar_select 0, %s15, %s13
  $region1: #{tpu_custom_call.1} parent=0
    #allocation2 [shape = 'u8[512]{0}', space=vmem, size = 0x400, scoped, tag = 'input window, operand 2, single buffered']
    #allocation3 [shape = 's32[2]{0}', space=sflag, size = 0x8, scoped, tag = 'scoped memory for tpu_custom_call.1']
    #allocation4 [shape = 'u8[16384]{0}', space=vmem, size = 0x4000, scoped, tag = 'input window, operand 3, single buffered']
    #allocation5 [shape = 's32[1]{0}', space=sflag, size = 0x4, scoped, tag = 'scoped memory for tpu_custom_call.1']
    #allocation6 [shape = 'u8[16384]{0}', space=vmem, size = 0x4000, scoped, tag = 'input window, operand 4, single buffered']
    #allocation7 [shape = 'u8[512]{0}', space=vmem, size = 0x400, scoped, tag = 'input window, operand 5, single buffered']
    #allocation8 [shape = 's32[1]{0}', space=sflag, size = 0x4, scoped, tag = 'scoped memory for tpu_custom_call.1']
    #allocation9 [shape = 'u8[16384]{0}', space=vmem, size = 0x4000, scoped, tag = 'input window, operand 6, single buffered']
    #allocation10 [shape = 'u8[16384]{0}', space=vmem, size = 0x4000, scoped, tag = 'input window, operand 7, single buffered']
    #allocation11 [shape = 's32[1]{0}', space=sflag, size = 0x4, scoped, tag = 'scoped memory for tpu_custom_call.1']
    #allocation12 [shape = 'u8[512]{0}', space=vmem, size = 0x400, scoped, tag = 'input window, operand 8, single buffered']
    %17 = vsyncpa [#allocation3], 0
    %18 = vsyncpa [#allocation5], 0
    %19 = vsyncpa [#allocation8], 0
    %20 = vsyncpa [#allocation11], 0
    loop: start=0, step=1, limit=4
    $region2: #{tpu_custom_call.1} parent=1 // loop_pre_header
      _
    $region3: #{tpu_custom_call.1} parent=1 // loop_header
      %s22 = sphi 0, %s26
      %p23 = scmp.ge.s32.totalorder %s22, 4
      %s32 = sphi 0, %s34
      %s35 = sphi 0, %s32
      %s36 = sphi 0, %s35
      %s52 = sphi 0, %s36
      %s56 = sphi 0, %s56
      %s58 = sphi 0, %s56
      %s59 = sphi 0, %s58
      %s73 = sphi 0, %s59
      %s77 = sphi 0, %s77
      %s79 = sphi 0, %s77
      %s80 = sphi 0, %s79
      %s94 = sphi 0, %s80
      %s98 = sphi 0, %s98
      %s100 = sphi 0, %s98
      %s101 = sphi 0, %s100
      %s115 = sphi 0, %s101
      %s119 = sphi 0, %s119
      %s121 = sphi 0, %s119
      %s122 = sphi 0, %s121
      %s136 = sphi 0, %s122
      %s140 = sphi 0, %s140
      %s142 = sphi 0, %s140
      %s143 = sphi 0, %s142
      %s157 = sphi 0, %s143
      %s161 = sphi 0, %s161
      %s163 = sphi 0, %s161
      %s164 = sphi 0, %s163
      %s178 = sphi 0, %s164
      %s182 = sphi 0, %s182
      %s184 = sphi 0, %s182
      %s185 = sphi 0, %s184
      %s199 = sphi 0, %s185
      %s203 = sphi 0, %s203
      %s205 = sphi 0, %s203
      %s206 = sphi 0, %s205
      %s220 = sphi 0, %s206
      %s224 = sphi 0, %s224
      %s226 = sphi 0, %s224
      %s227 = sphi 0, %s226
      %s241 = sphi 0, %s227
      %s247 = sphi 0, %s249
      %s250 = sphi 0, %s247
      %s251 = sphi 0, %s250
      %s267 = sphi 0, %s251
      %s273 = sphi 0, %s275
      %s276 = sphi 0, %s273
      %s277 = sphi 0, %s276
      %s293 = sphi 0, %s277
    $region4: #{tpu_custom_call.1} parent=1 // loop_header_branch
      %25 = sbr.rel (%p23) target = $region8
    $region5: #{tpu_custom_call.1} parent=1 // loop_body
      %s27 = ssub.s32 %s22, 1
      %s28 = ssub.s32 %s22, 2
      %s29 = sadd.s32 %s22, 1
      %s30 = ssub.s32 %s22, %s29
      %p31 = scmp.eq.s32.totalorder %s30, 0
      %s33 = sadd.s32 %s32, 1
      %s34 = scalar_select %p31, %s32, %s33
      %p37 = pneg %p31
      %p38 = scmp.eq.s32.totalorder %s22, 1
      %p39 = por %p37, %p38
      %p40 = scmp.ne.s32.totalorder %s32, %s35
      %p41 = scmp.eq.s32.totalorder %s22, 0
      %p42 = por %p40, %p41
      %p43 = scmp.ne.s32.totalorder %s32, %s35
      %p44 = scmp.eq.s32.totalorder %s27, 1
      %p45 = por %p43, %p44
      %p46 = scmp.ne.s32.totalorder %s35, %s36
      %p47 = scmp.eq.s32.totalorder %s27, 0
      %p48 = por %p46, %p47
      %p49 = scmp.ne.s32.totalorder %s35, %s36
      %p50 = scmp.eq.s32.totalorder %s28, 1
      %p51 = por %p49, %p50
      %p53 = scmp.ne.s32.totalorder %s36, %s52
      %p54 = scmp.eq.s32.totalorder %s28, 0
      %p55 = por %p53, %p54
      %s57 = sadd.s32 %s56, 1
      %p60 = scmp.eq.s32.totalorder %s22, 1
      %p61 = scmp.ne.s32.totalorder %s56, %s58
      %p62 = scmp.eq.s32.totalorder %s22, 0
      %p63 = por %p61, %p62
      %p64 = scmp.ne.s32.totalorder %s56, %s58
      %p65 = scmp.eq.s32.totalorder %s27, 1
      %p66 = por %p64, %p65
      %p67 = scmp.ne.s32.totalorder %s58, %s59
      %p68 = scmp.eq.s32.totalorder %s27, 0
      %p69 = por %p67, %p68
      %p70 = scmp.ne.s32.totalorder %s58, %s59
      %p71 = scmp.eq.s32.totalorder %s28, 1
      %p72 = por %p70, %p71
      %p74 = scmp.ne.s32.totalorder %s59, %s73
      %p75 = scmp.eq.s32.totalorder %s28, 0
      %p76 = por %p74, %p75
      %s78 = sadd.s32 %s77, 1
      %p81 = scmp.eq.s32.totalorder %s22, 1
      %p82 = scmp.ne.s32.totalorder %s77, %s79
      %p83 = scmp.eq.s32.totalorder %s22, 0
      %p84 = por %p82, %p83
      %p85 = scmp.ne.s32.totalorder %s77, %s79
      %p86 = scmp.eq.s32.totalorder %s27, 1
      %p87 = por %p85, %p86
      %p88 = scmp.ne.s32.totalorder %s79, %s80
      %p89 = scmp.eq.s32.totalorder %s27, 0
      %p90 = por %p88, %p89
      %p91 = scmp.ne.s32.totalorder %s79, %s80
      %p92 = scmp.eq.s32.totalorder %s28, 1
      %p93 = por %p91, %p92
      %p95 = scmp.ne.s32.totalorder %s80, %s94
      %p96 = scmp.eq.s32.totalorder %s28, 0
      %p97 = por %p95, %p96
      %s99 = sadd.s32 %s98, 1
      %p102 = scmp.eq.s32.totalorder %s22, 1
      %p103 = scmp.ne.s32.totalorder %s98, %s100
      %p104 = scmp.eq.s32.totalorder %s22, 0
      %p105 = por %p103, %p104
      %p106 = scmp.ne.s32.totalorder %s98, %s100
      %p107 = scmp.eq.s32.totalorder %s27, 1
      %p108 = por %p106, %p107
      %p109 = scmp.ne.s32.totalorder %s100, %s101
      %p110 = scmp.eq.s32.totalorder %s27, 0
      %p111 = por %p109, %p110
      %p112 = scmp.ne.s32.totalorder %s100, %s101
      %p113 = scmp.eq.s32.totalorder %s28, 1
      %p114 = por %p112, %p113
      %p116 = scmp.ne.s32.totalorder %s101, %s115
      %p117 = scmp.eq.s32.totalorder %s28, 0
      %p118 = por %p116, %p117
      %s120 = sadd.s32 %s119, 1
      %p123 = scmp.eq.s32.totalorder %s22, 1
      %p124 = scmp.ne.s32.totalorder %s119, %s121
      %p125 = scmp.eq.s32.totalorder %s22, 0
      %p126 = por %p124, %p125
      %p127 = scmp.ne.s32.totalorder %s119, %s121
      %p128 = scmp.eq.s32.totalorder %s27, 1
      %p129 = por %p127, %p128
      %p130 = scmp.ne.s32.totalorder %s121, %s122
      %p131 = scmp.eq.s32.totalorder %s27, 0
      %p132 = por %p130, %p131
      %p133 = scmp.ne.s32.totalorder %s121, %s122
      %p134 = scmp.eq.s32.totalorder %s28, 1
      %p135 = por %p133, %p134
      %p137 = scmp.ne.s32.totalorder %s122, %s136
      %p138 = scmp.eq.s32.totalorder %s28, 0
      %p139 = por %p137, %p138
      %s141 = sadd.s32 %s140, 1
      %p144 = scmp.eq.s32.totalorder %s22, 1
      %p145 = scmp.ne.s32.totalorder %s140, %s142
      %p146 = scmp.eq.s32.totalorder %s22, 0
      %p147 = por %p145, %p146
      %p148 = scmp.ne.s32.totalorder %s140, %s142
      %p149 = scmp.eq.s32.totalorder %s27, 1
      %p150 = por %p148, %p149
      %p151 = scmp.ne.s32.totalorder %s142, %s143
      %p152 = scmp.eq.s32.totalorder %s27, 0
      %p153 = por %p151, %p152
      %p154 = scmp.ne.s32.totalorder %s142, %s143
      %p155 = scmp.eq.s32.totalorder %s28, 1
      %p156 = por %p154, %p155
      %p158 = scmp.ne.s32.totalorder %s143, %s157
      %p159 = scmp.eq.s32.totalorder %s28, 0
      %p160 = por %p158, %p159
      %s162 = sadd.s32 %s161, 1
      %p165 = scmp.eq.s32.totalorder %s22, 1
      %p166 = scmp.ne.s32.totalorder %s161, %s163
      %p167 = scmp.eq.s32.totalorder %s22, 0
      %p168 = por %p166, %p167
      %p169 = scmp.ne.s32.totalorder %s161, %s163
      %p170 = scmp.eq.s32.totalorder %s27, 1
      %p171 = por %p169, %p170
      %p172 = scmp.ne.s32.totalorder %s163, %s164
      %p173 = scmp.eq.s32.totalorder %s27, 0
      %p174 = por %p172, %p173
      %p175 = scmp.ne.s32.totalorder %s163, %s164
      %p176 = scmp.eq.s32.totalorder %s28, 1
      %p177 = por %p175, %p176
      %p179 = scmp.ne.s32.totalorder %s164, %s178
      %p180 = scmp.eq.s32.totalorder %s28, 0
      %p181 = por %p179, %p180
      %s183 = sadd.s32 %s182, 1
      %p186 = scmp.eq.s32.totalorder %s22, 1
      %p187 = scmp.ne.s32.totalorder %s182, %s184
      %p188 = scmp.eq.s32.totalorder %s22, 0
      %p189 = por %p187, %p188
      %p190 = scmp.ne.s32.totalorder %s182, %s184
      %p191 = scmp.eq.s32.totalorder %s27, 1
      %p192 = por %p190, %p191
      %p193 = scmp.ne.s32.totalorder %s184, %s185
      %p194 = scmp.eq.s32.totalorder %s27, 0
      %p195 = por %p193, %p194
      %p196 = scmp.ne.s32.totalorder %s184, %s185
      %p197 = scmp.eq.s32.totalorder %s28, 1
      %p198 = por %p196, %p197
      %p200 = scmp.ne.s32.totalorder %s185, %s199
      %p201 = scmp.eq.s32.totalorder %s28, 0
      %p202 = por %p200, %p201
      %s204 = sadd.s32 %s203, 1
      %p207 = scmp.eq.s32.totalorder %s22, 1
      %p208 = scmp.ne.s32.totalorder %s203, %s205
      %p209 = scmp.eq.s32.totalorder %s22, 0
      %p210 = por %p208, %p209
      %p211 = scmp.ne.s32.totalorder %s203, %s205
      %p212 = scmp.eq.s32.totalorder %s27, 1
      %p213 = por %p211, %p212
      %p214 = scmp.ne.s32.totalorder %s205, %s206
      %p215 = scmp.eq.s32.totalorder %s27, 0
      %p216 = por %p214, %p215
      %p217 = scmp.ne.s32.totalorder %s205, %s206
      %p218 = scmp.eq.s32.totalorder %s28, 1
      %p219 = por %p217, %p218
      %p221 = scmp.ne.s32.totalorder %s206, %s220
      %p222 = scmp.eq.s32.totalorder %s28, 0
      %p223 = por %p221, %p222
      %s225 = sadd.s32 %s224, 1
      %p228 = scmp.eq.s32.totalorder %s22, 1
      %p229 = scmp.ne.s32.totalorder %s224, %s226
      %p230 = scmp.eq.s32.totalorder %s22, 0
      %p231 = por %p229, %p230
      %p232 = scmp.ne.s32.totalorder %s224, %s226
      %p233 = scmp.eq.s32.totalorder %s27, 1
      %p234 = por %p232, %p233
      %p235 = scmp.ne.s32.totalorder %s226, %s227
      %p236 = scmp.eq.s32.totalorder %s27, 0
      %p237 = por %p235, %p236
      %p238 = scmp.ne.s32.totalorder %s226, %s227
      %p239 = scmp.eq.s32.totalorder %s28, 1
      %p240 = por %p238, %p239
      %p242 = scmp.ne.s32.totalorder %s227, %s241
      %p243 = scmp.eq.s32.totalorder %s28, 0
      %p244 = por %p242, %p243
      %s245 = ssub.s32 %s22, %s29
      %p246 = scmp.eq.s32.totalorder %s245, 0
      %s248 = sadd.s32 %s247, 1
      %s249 = scalar_select %p246, %s247, %s248
      %p252 = pneg %p246
      %p253 = scmp.eq.s32.totalorder %s22, 1
      %p254 = por %p252, %p253
      %p255 = scmp.ne.s32.totalorder %s247, %s250
      %p256 = scmp.eq.s32.totalorder %s22, 0
      %p257 = por %p255, %p256
      %p258 = scmp.ne.s32.totalorder %s247, %s250
      %p259 = scmp.eq.s32.totalorder %s27, 1
      %p260 = por %p258, %p259
      %p261 = scmp.ne.s32.totalorder %s250, %s251
      %p262 = scmp.eq.s32.totalorder %s27, 0
      %p263 = por %p261, %p262
      %p264 = scmp.ne.s32.totalorder %s250, %s251
      %p265 = scmp.eq.s32.totalorder %s28, 1
      %p266 = por %p264, %p265
      %p268 = scmp.ne.s32.totalorder %s251, %s267
      %p269 = scmp.eq.s32.totalorder %s28, 0
      %p270 = por %p268, %p269
      %s271 = ssub.s32 %s22, %s29
      %p272 = scmp.eq.s32.totalorder %s271, 0
      %s274 = sadd.s32 %s273, 1
      %s275 = scalar_select %p272, %s273, %s274
      %p278 = pneg %p272
      %p279 = scmp.eq.s32.totalorder %s22, 1
      %p280 = por %p278, %p279
      %p281 = scmp.ne.s32.totalorder %s273, %s276
      %p282 = scmp.eq.s32.totalorder %s22, 0
      %p283 = por %p281, %p282
      %p284 = scmp.ne.s32.totalorder %s273, %s276
      %p285 = scmp.eq.s32.totalorder %s27, 1
      %p286 = por %p284, %p285
      %p287 = scmp.ne.s32.totalorder %s276, %s277
      %p288 = scmp.eq.s32.totalorder %s27, 0
      %p289 = por %p287, %p288
      %p290 = scmp.ne.s32.totalorder %s276, %s277
      %p291 = scmp.eq.s32.totalorder %s28, 1
      %p292 = por %p290, %p291
      %p294 = scmp.ne.s32.totalorder %s277, %s293
      %p295 = scmp.eq.s32.totalorder %s28, 0
      %p296 = por %p294, %p295
      %p297 = scmp.le.s32.totalorder 1, %s22
      %p298 = scmp.lt.s32.totalorder %s22, 3
      %p299 = pnand %p297, %p298
      %p300 = pneg %p299
      // Predicated region
      $region9: #{tpu_custom_call.1} parent=5 // pred_check
        _
      $region10: #{tpu_custom_call.1} parent=5 // pred_check_branch
        %302 = sbr.rel (%p299) target = $region12
      $region11: #{tpu_custom_call.1} parent=5 // pred_region
        %s303 = ssub.s32 %s22, 1
        // Predicated region
        $region13: #{tpu_custom_call.1} parent=11 // pred_check
          %p304 = pneg %p69
        $region14: #{tpu_custom_call.1} parent=11 // pred_check_branch
          %306 = sbr.rel (%p304) target = $region16
        $region15: #{tpu_custom_call.1} parent=11 // pred_region
          _
        $region16: #{tpu_custom_call.1} parent=11 // pred_fallthru
          _
        // Predicated region
        $region17: #{tpu_custom_call.1} parent=11 // pred_check
          %p307 = pneg %p90
        $region18: #{tpu_custom_call.1} parent=11 // pred_check_branch
          %309 = sbr.rel (%p307) target = $region20
        $region19: #{tpu_custom_call.1} parent=11 // pred_region
          %s311 = ssub.s32 16, 16
          %312 = vsyncadd [#allocation3], %s311
          %s314 = sshll.u32 [#allocation2], 4
          %s315 = int_to_ptr.vmem [resolvable:$true] %s314
          %317 = dma.hbm_to_vmem [thread:$0]  %s2, 16, %s315, [#allocation3]
        $region20: #{tpu_custom_call.1} parent=11 // pred_fallthru
          _
        // Predicated region
        $region21: #{tpu_custom_call.1} parent=11 // pred_check
          %p318 = pneg %p111
        $region22: #{tpu_custom_call.1} parent=11 // pred_check_branch
          %320 = sbr.rel (%p318) target = $region24
        $region23: #{tpu_custom_call.1} parent=11 // pred_region
          %s322 = ssub.s32 512, 512
          %323 = vsyncadd [#allocation5], %s322
          %s324 = sshll.u32 [#allocation4], 4
          %s325 = int_to_ptr.vmem [resolvable:$true] %s324
          %330 = dma.hbm_to_vmem [thread:$0]  %s3, 512, %s325, [#allocation5], 128, 128, 8
        $region24: #{tpu_custom_call.1} parent=11 // pred_fallthru
          _
        // Predicated region
        $region25: #{tpu_custom_call.1} parent=11 // pred_check
          %p331 = pneg %p132
        $region26: #{tpu_custom_call.1} parent=11 // pred_check_branch
          %333 = sbr.rel (%p331) target = $region28
        $region27: #{tpu_custom_call.1} parent=11 // pred_region
          %s335 = ssub.s32 512, 512
          %336 = vsyncadd [#allocation5], %s335
          %s337 = sshll.u32 [#allocation6], 4
          %s338 = int_to_ptr.vmem [resolvable:$true] %s337
          %343 = dma.hbm_to_vmem [thread:$0]  %s4, 512, %s338, [#allocation5], 128, 128, 8
        $region28: #{tpu_custom_call.1} parent=11 // pred_fallthru
          _
        // Predicated region
        $region29: #{tpu_custom_call.1} parent=11 // pred_check
          %p344 = pneg %p153
        $region30: #{tpu_custom_call.1} parent=11 // pred_check_branch
          %346 = sbr.rel (%p344) target = $region32
        $region31: #{tpu_custom_call.1} parent=11 // pred_region
          %s348 = ssub.s32 16, 16
          %349 = vsyncadd [#allocation8], %s348
          %s351 = sshll.u32 [#allocation7], 4
          %s352 = int_to_ptr.vmem [resolvable:$true] %s351
          %354 = dma.hbm_to_vmem [thread:$0]  %s5, 16, %s352, [#allocation8]
        $region32: #{tpu_custom_call.1} parent=11 // pred_fallthru
          _
        // Predicated region
        $region33: #{tpu_custom_call.1} parent=11 // pred_check
          %p355 = pneg %p174
        $region34: #{tpu_custom_call.1} parent=11 // pred_check_branch
          %357 = sbr.rel (%p355) target = $region36
        $region35: #{tpu_custom_call.1} parent=11 // pred_region
          %s359 = ssub.s32 512, 512
          %360 = vsyncadd [#allocation8], %s359
          %s361 = sshll.u32 [#allocation9], 4
          %s362 = int_to_ptr.vmem [resolvable:$true] %s361
          %367 = dma.hbm_to_vmem [thread:$0]  %s6, 512, %s362, [#allocation8], 128, 128, 8
        $region36: #{tpu_custom_call.1} parent=11 // pred_fallthru
          _
        // Predicated region
        $region37: #{tpu_custom_call.1} parent=11 // pred_check
          %p368 = pneg %p195
        $region38: #{tpu_custom_call.1} parent=11 // pred_check_branch
          %370 = sbr.rel (%p368) target = $region40
        $region39: #{tpu_custom_call.1} parent=11 // pred_region
          %s372 = ssub.s32 512, 512
          %373 = vsyncadd [#allocation11], %s372
          %s374 = sshll.u32 [#allocation10], 4
          %s375 = int_to_ptr.vmem [resolvable:$true] %s374
          %380 = dma.hbm_to_vmem [thread:$0]  %s7, 512, %s375, [#allocation11], 128, 128, 8
        $region40: #{tpu_custom_call.1} parent=11 // pred_fallthru
          _
        // Predicated region
        $region41: #{tpu_custom_call.1} parent=11 // pred_check
          %p381 = pneg %p216
        $region42: #{tpu_custom_call.1} parent=11 // pred_check_branch
          %383 = sbr.rel (%p381) target = $region44
        $region43: #{tpu_custom_call.1} parent=11 // pred_region
          %s385 = ssub.s32 16, 16
          %386 = vsyncadd [#allocation11], %s385
          %s388 = sshll.u32 [#allocation12], 4
          %s389 = int_to_ptr.vmem [resolvable:$true] %s388
          %391 = dma.hbm_to_vmem [thread:$0]  %s8, 16, %s389, [#allocation11]
        $region44: #{tpu_custom_call.1} parent=11 // pred_fallthru
          _
        // Predicated region
        $region45: #{tpu_custom_call.1} parent=11 // pred_check
          %p392 = pneg %p237
        $region46: #{tpu_custom_call.1} parent=11 // pred_check_branch
          %394 = sbr.rel (%p392) target = $region48
        $region47: #{tpu_custom_call.1} parent=11 // pred_region
          _
        $region48: #{tpu_custom_call.1} parent=11 // pred_fallthru
          _
      $region12: #{tpu_custom_call.1} parent=5 // pred_fallthru
        _
      %p395 = scmp.lt.s32.totalorder %s22, 2
      // Predicated region
      $region49: #{tpu_custom_call.1} parent=5 // pred_check
        %p396 = pneg %p395
      $region50: #{tpu_custom_call.1} parent=5 // pred_check_branch
        %398 = sbr.rel (%p396) target = $region52
      $region51: #{tpu_custom_call.1} parent=5 // pred_region
        // Predicated region
        $region53: #{tpu_custom_call.1} parent=51 // pred_check
          %p399 = pneg %p42
        $region54: #{tpu_custom_call.1} parent=51 // pred_check_branch
          %401 = sbr.rel (%p399) target = $region56
        $region55: #{tpu_custom_call.1} parent=51 // pred_region
          %s402 = smul.u32 4, %s22
          %p403 = scmp.lt.s32.totalorder %s402, 7
          %s404 = scalar_select %p403, %s402, 7
          %s405 = smul.addr %s404, 8
          %s406 = scalar_lea.vmem %s0, %s405
          %s407 = smul.u32 4, %s22
        $region56: #{tpu_custom_call.1} parent=51 // pred_fallthru
          _
      $region52: #{tpu_custom_call.1} parent=5 // pred_fallthru
        _
      %p408 = scmp.le.s32.totalorder 1, %s22
      %p409 = scmp.lt.s32.totalorder %s22, 3
      %p410 = pnand %p408, %p409
      %p411 = pneg %p410
      // Predicated region
      $region57: #{tpu_custom_call.1} parent=5 // pred_check
        _
      $region58: #{tpu_custom_call.1} parent=5 // pred_check_branch
        %413 = sbr.rel (%p410) target = $region60
      $region59: #{tpu_custom_call.1} parent=5 // pred_region
        %s414 = ssub.s32 %s22, 1
        // Predicated region
        $region61: #{tpu_custom_call.1} parent=59 // pred_check
          %p415 = pneg %p90
        $region62: #{tpu_custom_call.1} parent=59 // pred_check_branch
          %417 = sbr.rel (%p415) target = $region64
        $region63: #{tpu_custom_call.1} parent=59 // pred_region
          %418 = dma.done [#allocation3], 16
        $region64: #{tpu_custom_call.1} parent=59 // pred_fallthru
          _
        // Predicated region
        $region65: #{tpu_custom_call.1} parent=59 // pred_check
          %p419 = pneg %p111
        $region66: #{tpu_custom_call.1} parent=59 // pred_check_branch
          %421 = sbr.rel (%p419) target = $region68
        $region67: #{tpu_custom_call.1} parent=59 // pred_region
          %422 = dma.done [#allocation5], 512
        $region68: #{tpu_custom_call.1} parent=59 // pred_fallthru
          _
        // Predicated region
        $region69: #{tpu_custom_call.1} parent=59 // pred_check
          %p423 = pneg %p132
        $region70: #{tpu_custom_call.1} parent=59 // pred_check_branch
          %425 = sbr.rel (%p423) target = $region72
        $region71: #{tpu_custom_call.1} parent=59 // pred_region
          %426 = dma.done [#allocation5], 512
        $region72: #{tpu_custom_call.1} parent=59 // pred_fallthru
          _
        // Predicated region
        $region73: #{tpu_custom_call.1} parent=59 // pred_check
          %p427 = pneg %p153
        $region74: #{tpu_custom_call.1} parent=59 // pred_check_branch
          %429 = sbr.rel (%p427) target = $region76
        $region75: #{tpu_custom_call.1} parent=59 // pred_region
          %430 = dma.done [#allocation8], 16
        $region76: #{tpu_custom_call.1} parent=59 // pred_fallthru
          _
        // Predicated region
        $region77: #{tpu_custom_call.1} parent=59 // pred_check
          %p431 = pneg %p174
        $region78: #{tpu_custom_call.1} parent=59 // pred_check_branch
          %433 = sbr.rel (%p431) target = $region80
        $region79: #{tpu_custom_call.1} parent=59 // pred_region
          %434 = dma.done [#allocation8], 512
        $region80: #{tpu_custom_call.1} parent=59 // pred_fallthru
          _
        // Predicated region
        $region81: #{tpu_custom_call.1} parent=59 // pred_check
          %p435 = pneg %p195
        $region82: #{tpu_custom_call.1} parent=59 // pred_check_branch
          %437 = sbr.rel (%p435) target = $region84
        $region83: #{tpu_custom_call.1} parent=59 // pred_region
          %438 = dma.done [#allocation11], 512
        $region84: #{tpu_custom_call.1} parent=59 // pred_fallthru
          _
        // Predicated region
        $region85: #{tpu_custom_call.1} parent=59 // pred_check
          %p439 = pneg %p216
        $region86: #{tpu_custom_call.1} parent=59 // pred_check_branch
          %441 = sbr.rel (%p439) target = $region88
        $region87: #{tpu_custom_call.1} parent=59 // pred_region
          %442 = dma.done [#allocation11], 16
        $region88: #{tpu_custom_call.1} parent=59 // pred_fallthru
          _
        %s443 = smul.u32 4, %s27
        %p444 = scmp.lt.s32.totalorder %s443, 7
        %s445 = scalar_select %p444, %s443, 7
        %s446 = smul.addr %s445, 8
        %s447 = scalar_lea.vmem %s0, %s446
        %p448 = pneg %p48
        %p449 = pneg %p45
        %p450 = pneg %p69
        %p451 = pneg %p66
        %p452 = pneg %p90
        %p453 = pneg %p87
        %p454 = pneg %p111
        %p455 = pneg %p108
        %p456 = pneg %p132
        %p457 = pneg %p129
        %p458 = pneg %p153
        %p459 = pneg %p150
        %p460 = pneg %p174
        %p461 = pneg %p171
        %p462 = pneg %p195
        %p463 = pneg %p192
        %p464 = pneg %p216
        %p465 = pneg %p213
        %p466 = pneg %p237
        %p467 = pneg %p234
        %p468 = pneg %p263
        %p469 = pneg %p260
        %s470 = smul.u32 4, %s27
        %p471 = scmp.lt.s32.totalorder %s470, 7
        %s472 = scalar_select %p471, %s470, 7
        %s473 = smul.addr %s472, 8
        %s474 = scalar_lea.vmem %s10, %s473
        %p475 = pneg %p289
        %p476 = pneg %p286
        %s477 = smul.u32 32, %s27
        %p478 = scmp.lt.s32.totalorder %s477, 63
        %s479 = scalar_select %p478, %s477, 63
        %s480 = smul.addr %s479, 5
        %s481 = smul.addr %s480, 8
        %s482 = scalar_lea.vmem %s11, %s481
        %s483 = smul.u32 4, %s27
        %p484 = scmp.lt.s32.totalorder %s483, 7
        %s485 = scalar_select %p484, %s483, 7
        %s486 = smul.addr %s485, 8
        %s487 = scalar_lea.vmem %s0, %s486
        %s488 = smul.u32 4, %s27
        %s489 = smul.u32 4, %s27
        %p490 = scmp.lt.s32.totalorder %s489, 7
        %s491 = scalar_select %p490, %s489, 7
        %s492 = smul.addr %s491, 8
        %s493 = scalar_lea.vmem %s10, %s492
        %s494 = smul.u32 4, %s27
        %s495 = smul.u32 32, %s27
        %p496 = scmp.lt.s32.totalorder %s495, 63
        %s497 = scalar_select %p496, %s495, 63
        %s498 = smul.addr %s497, 5
        %s499 = smul.addr %s498, 8
        %s500 = scalar_lea.vmem %s11, %s499
        %s501 = smul.u32 32, %s27
        %v502 = vld [vmem:[%s487] sm:$0xff]
        %v503 = vld [vmem:[%s487 + $0x8] sm:$0xff]
        %v504 = vld [vmem:[%s487 + $0x10] sm:$0xff]
        %v505 = vld [vmem:[%s487 + $0x18] sm:$0xff]
        %v506 = vld [vmem:[%s1] sm:$0xff]
        %v507 = vld [vmem:[%s1 + $0x8] sm:$0xff]
        %v508 = vld [vmem:[%s1 + $0x10] sm:$0xff]
        %v509 = vld [vmem:[%s1 + $0x18] sm:$0xff]
        %v510 = vld [vmem:[%s1 + $0x20] sm:$0x1]
        %v511 = vld [vmem:[#allocation2] sm:$0x1]
        %v512 = vld [vmem:[#allocation4] sm:$0xff]
        %v513 = vld [vmem:[#allocation4 + $0x8] sm:$0xff]
        %v514 = vld [vmem:[#allocation4 + $0x10] sm:$0xff]
        %v515 = vld [vmem:[#allocation4 + $0x18] sm:$0xff]
        %v517 = vlaneseq
        %v518 = vshrl.u32 %v517, 7
        %v519 = vsub.s32 0, %v518
        %v520 = vrot.slane %v511, %v519
        %vm522 = vcmask 269312
        %v524 = vsel %vm522, %v502, 0
        %v527 = vsel %vm522, %v503, 0
        %v530 = vsel %vm522, %v504, 0
        %v533 = vsel %vm522, %v505, 0
        %vm535 = vcmask 1040384
        %v537 = vsel %vm535, %v510, 0
        %539 = vmatprep.subr.mxu0 0.0
        %540 = vmatpush1.msra.mxu0 0.0
        %541 = vmatprep.subr.mxu0 0.0
        %542 = vmatpush1.msra.mxu0 0.0
        %543 = vmatprep.subr.mxu0 0.0
        %544 = vmatpush1.msra.mxu0 0.0
        %545 = vmatprep.subr.mxu0 0.0
        %546 = vmatpush1.msra.mxu0 0.0
        %547 = vmatprep.subr.mxu0 0.0
        %548 = vmatpush1.msra.mxu0 0.0
        %549 = vmatprep.subr.mxu0 0.0
        %550 = vmatpush1.msra.mxu0 0.0
        %551 = vmatprep.subr.mxu0 0.0
        %552 = vmatpush1.msra.mxu0 0.0
        %553 = vmatprep.subr.mxu0 0.0
        %554 = vmatpush1.msra.mxu0 0.0
        %555 = vmatprep.subr.mxu0 0.0
        %556 = vmatpush1.msra.mxu0 0.0
        %557 = vmatprep.subr.mxu0 0.0
        %558 = vmatpush1.msra.mxu0 0.0
        %559 = vmatprep.subr.mxu0 0.0
        %560 = vmatpush1.msra.mxu0 0.0
        %561 = vmatprep.subr.mxu0 0.0
        %562 = vmatpush1.msra.mxu0 %v537
        %563 = vmatprep.subr.mxu0 0.0
        %564 = vmatpush1.msra.mxu0 %v509
        %565 = vmatprep.subr.mxu0 0.0
        %566 = vmatpush1.msra.mxu0 %v508
        %567 = vmatprep.subr.mxu0 0.0
        %568 = vmatpush1.msra.mxu0 %v507
        %569 = vmatprep.subr.mxu0 0.0
        %570 = vmatpush1.msra.mxu0 %v506
        %571 = vmatprep.subr.mxu0 0.0
        %572 = vmatpush2.msra.mxu0 0.0
        %573 = vmatprep.subr.mxu0 0.0
        %574 = vmatpush2.msra.mxu0 0.0
        %575 = vmatprep.subr.mxu0 0.0
        %576 = vmatpush2.msra.mxu0 0.0
        %577 = vmatprep.subr.mxu0 0.0
        %578 = vmatpush2.msra.mxu0 0.0
        %579 = vmatprep.subr.mxu0 0.0
        %580 = vmatpush2.msra.mxu0 0.0
        %581 = vmatprep.subr.mxu0 0.0
        %582 = vmatpush2.msra.mxu0 0.0
        %583 = vmatprep.subr.mxu0 0.0
        %584 = vmatpush2.msra.mxu0 0.0
        %585 = vmatprep.subr.mxu0 0.0
        %586 = vmatpush2.msra.mxu0 0.0
        %587 = vmatprep.subr.mxu0 0.0
        %588 = vmatpush2.msra.mxu0 0.0
        %589 = vmatprep.subr.mxu0 0.0
        %590 = vmatpush2.msra.mxu0 0.0
        %591 = vmatprep.subr.mxu0 0.0
        %592 = vmatpush2.msra.mxu0 0.0
        %593 = vmatprep.subr.mxu0 0.0
        %594 = vmatpush2.msra.mxu0 0.0
        %595 = vmatprep.subr.mxu0 0.0
        %596 = vmatpush2.msra.mxu0 0.0
        %597 = vmatprep.subr.mxu0 0.0
        %598 = vmatpush2.msra.mxu0 0.0
        %599 = vmatprep.subr.mxu0 0.0
        %600 = vmatpush2.msra.mxu0 0.0
        %601 = vmatprep.subr.mxu0 0.0
        %602 = vmatpush2.msra.mxu0 0.0
        %603 = vmatprep.mubr.f32.mxu0 0.0
        %604 = vmatmul.mubr.f32.gmra.mxu0 %v524
        %v605 = vpop.f32.mrf.mxu0
        %v606 = vadd.f32 %v520, %v605
        %v607 = vpop.f32.mrf.mxu0
        %608 = vmatprep.mubr.f32.mxu0 0.0
        %609 = vmatmul.mubr.f32.gmra.mxu0 %v527
        %v610 = vpop.f32.mrf.mxu0
        %v611 = vadd.f32 %v520, %v610
        %v612 = vpop.f32.mrf.mxu0
        %613 = vmatprep.mubr.f32.mxu0 0.0
        %614 = vmatmul.mubr.f32.gmra.mxu0 %v530
        %v615 = vpop.f32.mrf.mxu0
        %v616 = vadd.f32 %v520, %v615
        %v617 = vpop.f32.mrf.mxu0
        %618 = vmatprep.mubr.f32.mxu0 0.0
        %619 = vmatmul.mubr.f32.gmra.mxu0 %v533
        %v620 = vpop.f32.mrf.mxu0
        %v621 = vadd.f32 %v520, %v620
        %v622 = vpop.f32.mrf.mxu0
        %623 = vdwg.mxu0
        %v624 = vtanh.pop %v606
        %v625 = vtanh.pop %v611
        %v626 = vtanh.pop %v616
        %v627 = vtanh.pop %v621
        %v628 = vmul.f32 %v624, %v624
        %v629 = vmul.f32 %v625, %v625
        %v630 = vmul.f32 %v626, %v626
        %v631 = vmul.f32 %v627, %v627
        %v632 = vsub.f32 1.0, %v628
        %v633 = vsub.f32 1.0, %v629
        %v634 = vsub.f32 1.0, %v630
        %v635 = vsub.f32 1.0, %v631
        %v636 = vld [vmem:[#allocation6] sm:$0xff]
        %v637 = vld [vmem:[#allocation6 + $0x8] sm:$0xff]
        %v638 = vld [vmem:[#allocation6 + $0x10] sm:$0xff]
        %v639 = vld [vmem:[#allocation6 + $0x18] sm:$0xff]
        %v640 = vld [vmem:[#allocation7] sm:$0x1]
        %v641 = vld [vmem:[#allocation9] sm:$0xff]
        %v642 = vld [vmem:[#allocation9 + $0x8] sm:$0xff]
        %v643 = vld [vmem:[#allocation9 + $0x10] sm:$0xff]
        %v644 = vld [vmem:[#allocation9 + $0x18] sm:$0xff]
        %v646 = vlaneseq
        %v647 = vshrl.u32 %v646, 7
        %v648 = vsub.s32 0, %v647
        %v649 = vrot.slane %v640, %v648
        %vm651 = vcmask 261120
        %v653 = vsel %vm651, %v624, 0
        %v656 = vsel %vm651, %v625, 0
        %v659 = vsel %vm651, %v626, 0
        %v662 = vsel %vm651, %v627, 0
        %664 = vmatprep.subr.mxu0 0.0
        %665 = vmatpush1.msra.mxu0 0.0
        %666 = vmatprep.subr.mxu0 0.0
        %667 = vmatpush1.msra.mxu0 0.0
        %668 = vmatprep.subr.mxu0 0.0
        %669 = vmatpush1.msra.mxu0 0.0
        %670 = vmatprep.subr.mxu0 0.0
        %671 = vmatpush1.msra.mxu0 0.0
        %672 = vmatprep.subr.mxu0 0.0
        %673 = vmatpush1.msra.mxu0 0.0
        %674 = vmatprep.subr.mxu0 0.0
        %675 = vmatpush1.msra.mxu0 0.0
        %676 = vmatprep.subr.mxu0 0.0
        %677 = vmatpush1.msra.mxu0 0.0
        %678 = vmatprep.subr.mxu0 0.0
        %679 = vmatpush1.msra.mxu0 0.0
        %680 = vmatprep.subr.mxu0 0.0
        %681 = vmatpush1.msra.mxu0 0.0
        %682 = vmatprep.subr.mxu0 0.0
        %683 = vmatpush1.msra.mxu0 0.0
        %684 = vmatprep.subr.mxu0 0.0
        %685 = vmatpush1.msra.mxu0 0.0
        %686 = vmatprep.subr.mxu0 0.0
        %687 = vmatpush1.msra.mxu0 0.0
        %688 = vmatprep.subr.mxu0 0.0
        %689 = vmatpush1.msra.mxu0 %v639
        %690 = vmatprep.subr.mxu0 0.0
        %691 = vmatpush1.msra.mxu0 %v638
        %692 = vmatprep.subr.mxu0 0.0
        %693 = vmatpush1.msra.mxu0 %v637
        %694 = vmatprep.subr.mxu0 0.0
        %695 = vmatpush1.msra.mxu0 %v636
        %696 = vmatprep.subr.mxu0 0.0
        %697 = vmatpush2.msra.mxu0 0.0
        %698 = vmatprep.subr.mxu0 0.0
        %699 = vmatpush2.msra.mxu0 0.0
        %700 = vmatprep.subr.mxu0 0.0
        %701 = vmatpush2.msra.mxu0 0.0
        %702 = vmatprep.subr.mxu0 0.0
        %703 = vmatpush2.msra.mxu0 0.0
        %704 = vmatprep.subr.mxu0 0.0
        %705 = vmatpush2.msra.mxu0 0.0
        %706 = vmatprep.subr.mxu0 0.0
        %707 = vmatpush2.msra.mxu0 0.0
        %708 = vmatprep.subr.mxu0 0.0
        %709 = vmatpush2.msra.mxu0 0.0
        %710 = vmatprep.subr.mxu0 0.0
        %711 = vmatpush2.msra.mxu0 0.0
        %712 = vmatprep.subr.mxu0 0.0
        %713 = vmatpush2.msra.mxu0 0.0
        %714 = vmatprep.subr.mxu0 0.0
        %715 = vmatpush2.msra.mxu0 0.0
        %716 = vmatprep.subr.mxu0 0.0
        %717 = vmatpush2.msra.mxu0 0.0
        %718 = vmatprep.subr.mxu0 0.0
        %719 = vmatpush2.msra.mxu0 0.0
        %720 = vmatprep.subr.mxu0 0.0
        %721 = vmatpush2.msra.mxu0 0.0
        %722 = vmatprep.subr.mxu0 0.0
        %723 = vmatpush2.msra.mxu0 0.0
        %724 = vmatprep.subr.mxu0 0.0
        %725 = vmatpush2.msra.mxu0 0.0
        %726 = vmatprep.subr.mxu0 0.0
        %727 = vmatpush2.msra.mxu0 0.0
        %728 = vmatprep.mubr.f32.mxu0 0.0
        %729 = vmatmul.mubr.f32.gmra.mxu0 %v653
        %v730 = vpop.f32.mrf.mxu0
        %v731 = vadd.f32 %v649, %v730
        %v732 = vpop.f32.mrf.mxu0
        %733 = vmatprep.mubr.f32.mxu0 0.0
        %734 = vmatmul.mubr.f32.gmra.mxu0 %v656
        %v735 = vpop.f32.mrf.mxu0
        %v736 = vadd.f32 %v649, %v735
        %v737 = vpop.f32.mrf.mxu0
        %738 = vmatprep.mubr.f32.mxu0 0.0
        %739 = vmatmul.mubr.f32.gmra.mxu0 %v659
        %v740 = vpop.f32.mrf.mxu0
        %v741 = vadd.f32 %v649, %v740
        %v742 = vpop.f32.mrf.mxu0
        %743 = vmatprep.mubr.f32.mxu0 0.0
        %744 = vmatmul.mubr.f32.gmra.mxu0 %v662
        %v745 = vpop.f32.mrf.mxu0
        %v746 = vadd.f32 %v649, %v745
        %v747 = vpop.f32.mrf.mxu0
        %748 = vdwg.mxu0
        %v749 = vtanh.pop %v731
        %v750 = vtanh.pop %v736
        %v751 = vtanh.pop %v741
        %v752 = vtanh.pop %v746
        %v753 = vmul.f32 %v749, %v749
        %v754 = vmul.f32 %v750, %v750
        %v755 = vmul.f32 %v751, %v751
        %v756 = vmul.f32 %v752, %v752
        %v757 = vsub.f32 1.0, %v753
        %v758 = vsub.f32 1.0, %v754
        %v759 = vsub.f32 1.0, %v755
        %v760 = vsub.f32 1.0, %v756
        %v761 = vld [vmem:[#allocation10] sm:$0xff]
        %v762 = vld [vmem:[#allocation10 + $0x8] sm:$0xff]
        %v763 = vld [vmem:[#allocation10 + $0x10] sm:$0xff]
        %v764 = vld [vmem:[#allocation10 + $0x18] sm:$0xff]
        %v765 = vld [vmem:[#allocation12] sm:$0x1]
        %v766 = vld [vmem:[%s9] sm:$0xff]
        %v767 = vld [vmem:[%s9 + $0x8] sm:$0xff]
        %v768 = vld [vmem:[%s9 + $0x10] sm:$0xff]
        %v769 = vld [vmem:[%s9 + $0x18] sm:$0xff]
        %v770 = vld [vmem:[%s9 + $0x20] sm:$0xff]
        %v772 = vlaneseq
        %v773 = vshrl.u32 %v772, 7
        %v774 = vsub.s32 0, %v773
        %v775 = vrot.slane %v765, %v774
        %v778 = vsel %vm651, %v749, 0
        %v781 = vsel %vm651, %v750, 0
        %v784 = vsel %vm651, %v751, 0
        %v787 = vsel %vm651, %v752, 0
        %789 = vmatprep.subr.mxu0 0.0
        %790 = vmatpush1.msra.mxu0 0.0
        %791 = vmatprep.subr.mxu0 0.0
        %792 = vmatpush1.msra.mxu0 0.0
        %793 = vmatprep.subr.mxu0 0.0
        %794 = vmatpush1.msra.mxu0 0.0
        %795 = vmatprep.subr.mxu0 0.0
        %796 = vmatpush1.msra.mxu0 0.0
        %797 = vmatprep.subr.mxu0 0.0
        %798 = vmatpush1.msra.mxu0 0.0
        %799 = vmatprep.subr.mxu0 0.0
        %800 = vmatpush1.msra.mxu0 0.0
        %801 = vmatprep.subr.mxu0 0.0
        %802 = vmatpush1.msra.mxu0 0.0
        %803 = vmatprep.subr.mxu0 0.0
        %804 = vmatpush1.msra.mxu0 0.0
        %805 = vmatprep.subr.mxu0 0.0
        %806 = vmatpush1.msra.mxu0 0.0
        %807 = vmatprep.subr.mxu0 0.0
        %808 = vmatpush1.msra.mxu0 0.0
        %809 = vmatprep.subr.mxu0 0.0
        %810 = vmatpush1.msra.mxu0 0.0
        %811 = vmatprep.subr.mxu0 0.0
        %812 = vmatpush1.msra.mxu0 0.0
        %813 = vmatprep.subr.mxu0 0.0
        %814 = vmatpush1.msra.mxu0 %v764
        %815 = vmatprep.subr.mxu0 0.0
        %816 = vmatpush1.msra.mxu0 %v763
        %817 = vmatprep.subr.mxu0 0.0
        %818 = vmatpush1.msra.mxu0 %v762
        %819 = vmatprep.subr.mxu0 0.0
        %820 = vmatpush1.msra.mxu0 %v761
        %821 = vmatprep.subr.mxu0 0.0
        %822 = vmatpush2.msra.mxu0 0.0
        %823 = vmatprep.subr.mxu0 0.0
        %824 = vmatpush2.msra.mxu0 0.0
        %825 = vmatprep.subr.mxu0 0.0
        %826 = vmatpush2.msra.mxu0 0.0
        %827 = vmatprep.subr.mxu0 0.0
        %828 = vmatpush2.msra.mxu0 0.0
        %829 = vmatprep.subr.mxu0 0.0
        %830 = vmatpush2.msra.mxu0 0.0
        %831 = vmatprep.subr.mxu0 0.0
        %832 = vmatpush2.msra.mxu0 0.0
        %833 = vmatprep.subr.mxu0 0.0
        %834 = vmatpush2.msra.mxu0 0.0
        %835 = vmatprep.subr.mxu0 0.0
        %836 = vmatpush2.msra.mxu0 0.0
        %837 = vmatprep.subr.mxu0 0.0
        %838 = vmatpush2.msra.mxu0 0.0
        %839 = vmatprep.subr.mxu0 0.0
        %840 = vmatpush2.msra.mxu0 0.0
        %841 = vmatprep.subr.mxu0 0.0
        %842 = vmatpush2.msra.mxu0 0.0
        %843 = vmatprep.subr.mxu0 0.0
        %844 = vmatpush2.msra.mxu0 0.0
        %845 = vmatprep.subr.mxu0 0.0
        %846 = vmatpush2.msra.mxu0 0.0
        %847 = vmatprep.subr.mxu0 0.0
        %848 = vmatpush2.msra.mxu0 0.0
        %849 = vmatprep.subr.mxu0 0.0
        %850 = vmatpush2.msra.mxu0 0.0
        %851 = vmatprep.subr.mxu0 0.0
        %852 = vmatpush2.msra.mxu0 0.0
        %853 = vmatprep.mubr.f32.mxu0 0.0
        %854 = vmatmul.mubr.f32.gmra.mxu0 %v778
        %v855 = vpop.f32.mrf.mxu0
        %v856 = vadd.f32 %v775, %v855
        %v857 = vpop.f32.mrf.mxu0
        %858 = vmatprep.mubr.f32.mxu0 0.0
        %859 = vmatmul.mubr.f32.gmra.mxu0 %v781
        %v860 = vpop.f32.mrf.mxu0
        %v861 = vadd.f32 %v775, %v860
        %v862 = vpop.f32.mrf.mxu0
        %863 = vmatprep.mubr.f32.mxu0 0.0
        %864 = vmatmul.mubr.f32.gmra.mxu0 %v784
        %v865 = vpop.f32.mrf.mxu0
        %v866 = vadd.f32 %v775, %v865
        %v867 = vpop.f32.mrf.mxu0
        %868 = vmatprep.mubr.f32.mxu0 0.0
        %869 = vmatmul.mubr.f32.gmra.mxu0 %v787
        %v870 = vpop.f32.mrf.mxu0
        %v871 = vadd.f32 %v775, %v870
        %v872 = vpop.f32.mrf.mxu0
        %873 = vdwg.mxu0
        %874 = vst.msk [vmem:[%s493] sm:$0xff] %vm522, %v856
        %875 = vst.msk [vmem:[%s493 + $0x8] sm:$0xff] %vm522, %v861
        %876 = vst.msk [vmem:[%s493 + $0x10] sm:$0xff] %vm522, %v866
        %877 = vst.msk [vmem:[%s493 + $0x18] sm:$0xff] %vm522, %v871
        %v882 = vcombine.high %v757, %v757
        %v884 = vunpack.c.l.s4 1966171168
        %v885 = vunpack.c.0.s8 %v884
        %v886 = vlaneseq
        %v887 = vshrl.u32 %v886, 7
        %v888 = vsub.s32 %v885, %v887
        %v889 = vrot.slane %v757, %v888
        %v891 = vunpack.c.l.s4 1966171168
        %v892 = vunpack.c.0.s8 %v891
        %v893 = vlaneseq
        %v894 = vshrl.u32 %v893, 7
        %v895 = vsub.s32 %v892, %v894
        %v896 = vrot.slane %v882, %v895
        %v897 = vcombine.high %v889, %v889
        %v898 = vcombine.high %v896, %v896
        %v900 = vunpack.c.l.s4 1966171168
        %v901 = vunpack.c.0.s8 %v900
        %v902 = vlaneseq
        %v903 = vshrl.u32 %v902, 7
        %v904 = vsub.s32 %v901, %v903
        %v905 = vrot.slane %v889, %v904
        %v907 = vunpack.c.l.s4 1966171168
        %v908 = vunpack.c.0.s8 %v907
        %v909 = vlaneseq
        %v910 = vshrl.u32 %v909, 7
        %v911 = vsub.s32 %v908, %v910
        %v912 = vrot.slane %v896, %v911
        %v914 = vunpack.c.l.s4 1966171168
        %v915 = vunpack.c.0.s8 %v914
        %v916 = vlaneseq
        %v917 = vshrl.u32 %v916, 7
        %v918 = vsub.s32 %v915, %v917
        %v919 = vrot.slane %v897, %v918
        %v921 = vunpack.c.l.s4 1966171168
        %v922 = vunpack.c.0.s8 %v921
        %v923 = vlaneseq
        %v924 = vshrl.u32 %v923, 7
        %v925 = vsub.s32 %v922, %v924
        %v926 = vrot.slane %v898, %v925
        %v927 = vcombine.high %v905, %v905
        %v928 = vcombine.high %v912, %v912
        %v929 = vcombine.high %v919, %v919
        %v930 = vcombine.high %v926, %v926
        %v931 = vcombine.high %v758, %v758
        %v933 = vunpack.c.l.s4 1966171168
        %v934 = vunpack.c.0.s8 %v933
        %v935 = vlaneseq
        %v936 = vshrl.u32 %v935, 7
        %v937 = vsub.s32 %v934, %v936
        %v938 = vrot.slane %v758, %v937
        %v940 = vunpack.c.l.s4 1966171168
        %v941 = vunpack.c.0.s8 %v940
        %v942 = vlaneseq
        %v943 = vshrl.u32 %v942, 7
        %v944 = vsub.s32 %v941, %v943
        %v945 = vrot.slane %v931, %v944
        %v946 = vcombine.high %v938, %v938
        %v947 = vcombine.high %v945, %v945
        %v949 = vunpack.c.l.s4 1966171168
        %v950 = vunpack.c.0.s8 %v949
        %v951 = vlaneseq
        %v952 = vshrl.u32 %v951, 7
        %v953 = vsub.s32 %v950, %v952
        %v954 = vrot.slane %v938, %v953
        %v956 = vunpack.c.l.s4 1966171168
        %v957 = vunpack.c.0.s8 %v956
        %v958 = vlaneseq
        %v959 = vshrl.u32 %v958, 7
        %v960 = vsub.s32 %v957, %v959
        %v961 = vrot.slane %v945, %v960
        %v963 = vunpack.c.l.s4 1966171168
        %v964 = vunpack.c.0.s8 %v963
        %v965 = vlaneseq
        %v966 = vshrl.u32 %v965, 7
        %v967 = vsub.s32 %v964, %v966
        %v968 = vrot.slane %v946, %v967
        %v970 = vunpack.c.l.s4 1966171168
        %v971 = vunpack.c.0.s8 %v970
        %v972 = vlaneseq
        %v973 = vshrl.u32 %v972, 7
        %v974 = vsub.s32 %v971, %v973
        %v975 = vrot.slane %v947, %v974
        %v976 = vcombine.high %v954, %v954
        %v977 = vcombine.high %v961, %v961
        %v978 = vcombine.high %v968, %v968
        %v979 = vcombine.high %v975, %v975
        %v980 = vcombine.high %v759, %v759
        %v982 = vunpack.c.l.s4 1966171168
        %v983 = vunpack.c.0.s8 %v982
        %v984 = vlaneseq
        %v985 = vshrl.u32 %v984, 7
        %v986 = vsub.s32 %v983, %v985
        %v987 = vrot.slane %v759, %v986
        %v989 = vunpack.c.l.s4 1966171168
        %v990 = vunpack.c.0.s8 %v989
        %v991 = vlaneseq
        %v992 = vshrl.u32 %v991, 7
        %v993 = vsub.s32 %v990, %v992
        %v994 = vrot.slane %v980, %v993
        %v995 = vcombine.high %v987, %v987
        %v996 = vcombine.high %v994, %v994
        %v998 = vunpack.c.l.s4 1966171168
        %v999 = vunpack.c.0.s8 %v998
        %v1000 = vlaneseq
        %v1001 = vshrl.u32 %v1000, 7
        %v1002 = vsub.s32 %v999, %v1001
        %v1003 = vrot.slane %v987, %v1002
        %v1005 = vunpack.c.l.s4 1966171168
        %v1006 = vunpack.c.0.s8 %v1005
        %v1007 = vlaneseq
        %v1008 = vshrl.u32 %v1007, 7
        %v1009 = vsub.s32 %v1006, %v1008
        %v1010 = vrot.slane %v994, %v1009
        %v1012 = vunpack.c.l.s4 1966171168
        %v1013 = vunpack.c.0.s8 %v1012
        %v1014 = vlaneseq
        %v1015 = vshrl.u32 %v1014, 7
        %v1016 = vsub.s32 %v1013, %v1015
        %v1017 = vrot.slane %v995, %v1016
        %v1019 = vunpack.c.l.s4 1966171168
        %v1020 = vunpack.c.0.s8 %v1019
        %v1021 = vlaneseq
        %v1022 = vshrl.u32 %v1021, 7
        %v1023 = vsub.s32 %v1020, %v1022
        %v1024 = vrot.slane %v996, %v1023
        %v1025 = vcombine.high %v1003, %v1003
        %v1026 = vcombine.high %v1010, %v1010
        %v1027 = vcombine.high %v1017, %v1017
        %v1028 = vcombine.high %v1024, %v1024
        %v1029 = vcombine.high %v760, %v760
        %v1031 = vunpack.c.l.s4 1966171168
        %v1032 = vunpack.c.0.s8 %v1031
        %v1033 = vlaneseq
        %v1034 = vshrl.u32 %v1033, 7
        %v1035 = vsub.s32 %v1032, %v1034
        %v1036 = vrot.slane %v760, %v1035
        %v1038 = vunpack.c.l.s4 1966171168
        %v1039 = vunpack.c.0.s8 %v1038
        %v1040 = vlaneseq
        %v1041 = vshrl.u32 %v1040, 7
        %v1042 = vsub.s32 %v1039, %v1041
        %v1043 = vrot.slane %v1029, %v1042
        %v1044 = vcombine.high %v1036, %v1036
        %v1045 = vcombine.high %v1043, %v1043
        %v1047 = vunpack.c.l.s4 1966171168
        %v1048 = vunpack.c.0.s8 %v1047
        %v1049 = vlaneseq
        %v1050 = vshrl.u32 %v1049, 7
        %v1051 = vsub.s32 %v1048, %v1050
        %v1052 = vrot.slane %v1036, %v1051
        %v1054 = vunpack.c.l.s4 1966171168
        %v1055 = vunpack.c.0.s8 %v1054
        %v1056 = vlaneseq
        %v1057 = vshrl.u32 %v1056, 7
        %v1058 = vsub.s32 %v1055, %v1057
        %v1059 = vrot.slane %v1043, %v1058
        %v1061 = vunpack.c.l.s4 1966171168
        %v1062 = vunpack.c.0.s8 %v1061
        %v1063 = vlaneseq
        %v1064 = vshrl.u32 %v1063, 7
        %v1065 = vsub.s32 %v1062, %v1064
        %v1066 = vrot.slane %v1044, %v1065
        %v1068 = vunpack.c.l.s4 1966171168
        %v1069 = vunpack.c.0.s8 %v1068
        %v1070 = vlaneseq
        %v1071 = vshrl.u32 %v1070, 7
        %v1072 = vsub.s32 %v1069, %v1071
        %v1073 = vrot.slane %v1045, %v1072
        %v1074 = vcombine.high %v1052, %v1052
        %v1075 = vcombine.high %v1059, %v1059
        %v1076 = vcombine.high %v1066, %v1066
        %v1077 = vcombine.high %v1073, %v1073
        %v1078 = vlaneseq
        %v1079 = vshrl.u32 %v1078, 7
        %v1080 = vsub.s32 0, %v1079
        %v1081 = vrot.slane %v905, %v1080
        %v1082 = vlaneseq
        %v1083 = vshrl.u32 %v1082, 7
        %v1084 = vsub.s32 0, %v1083
        %v1085 = vrot.slane %v919, %v1084
        %v1086 = vlaneseq
        %v1087 = vshrl.u32 %v1086, 7
        %v1088 = vsub.s32 0, %v1087
        %v1089 = vrot.slane %v927, %v1088
        %v1090 = vlaneseq
        %v1091 = vshrl.u32 %v1090, 7
        %v1092 = vsub.s32 0, %v1091
        %v1093 = vrot.slane %v929, %v1092
        %v1094 = vlaneseq
        %v1095 = vshrl.u32 %v1094, 7
        %v1096 = vsub.s32 0, %v1095
        %v1097 = vrot.slane %v912, %v1096
        %v1098 = vlaneseq
        %v1099 = vshrl.u32 %v1098, 7
        %v1100 = vsub.s32 0, %v1099
        %v1101 = vrot.slane %v926, %v1100
        %v1102 = vlaneseq
        %v1103 = vshrl.u32 %v1102, 7
        %v1104 = vsub.s32 0, %v1103
        %v1105 = vrot.slane %v928, %v1104
        %v1106 = vlaneseq
        %v1107 = vshrl.u32 %v1106, 7
        %v1108 = vsub.s32 0, %v1107
        %v1109 = vrot.slane %v930, %v1108
        %v1110 = vlaneseq
        %v1111 = vshrl.u32 %v1110, 7
        %v1112 = vsub.s32 0, %v1111
        %v1113 = vrot.slane %v954, %v1112
        %v1114 = vlaneseq
        %v1115 = vshrl.u32 %v1114, 7
        %v1116 = vsub.s32 0, %v1115
        %v1117 = vrot.slane %v968, %v1116
        %v1118 = vlaneseq
        %v1119 = vshrl.u32 %v1118, 7
        %v1120 = vsub.s32 0, %v1119
        %v1121 = vrot.slane %v976, %v1120
        %v1122 = vlaneseq
        %v1123 = vshrl.u32 %v1122, 7
        %v1124 = vsub.s32 0, %v1123
        %v1125 = vrot.slane %v978, %v1124
        %v1126 = vlaneseq
        %v1127 = vshrl.u32 %v1126, 7
        %v1128 = vsub.s32 0, %v1127
        %v1129 = vrot.slane %v961, %v1128
        %v1130 = vlaneseq
        %v1131 = vshrl.u32 %v1130, 7
        %v1132 = vsub.s32 0, %v1131
        %v1133 = vrot.slane %v975, %v1132
        %v1134 = vlaneseq
        %v1135 = vshrl.u32 %v1134, 7
        %v1136 = vsub.s32 0, %v1135
        %v1137 = vrot.slane %v977, %v1136
        %v1138 = vlaneseq
        %v1139 = vshrl.u32 %v1138, 7
        %v1140 = vsub.s32 0, %v1139
        %v1141 = vrot.slane %v979, %v1140
        %v1142 = vlaneseq
        %v1143 = vshrl.u32 %v1142, 7
        %v1144 = vsub.s32 0, %v1143
        %v1145 = vrot.slane %v1003, %v1144
        %v1146 = vlaneseq
        %v1147 = vshrl.u32 %v1146, 7
        %v1148 = vsub.s32 0, %v1147
        %v1149 = vrot.slane %v1017, %v1148
        %v1150 = vlaneseq
        %v1151 = vshrl.u32 %v1150, 7
        %v1152 = vsub.s32 0, %v1151
        %v1153 = vrot.slane %v1025, %v1152
        %v1154 = vlaneseq
        %v1155 = vshrl.u32 %v1154, 7
        %v1156 = vsub.s32 0, %v1155
        %v1157 = vrot.slane %v1027, %v1156
        %v1158 = vlaneseq
        %v1159 = vshrl.u32 %v1158, 7
        %v1160 = vsub.s32 0, %v1159
        %v1161 = vrot.slane %v1010, %v1160
        %v1162 = vlaneseq
        %v1163 = vshrl.u32 %v1162, 7
        %v1164 = vsub.s32 0, %v1163
        %v1165 = vrot.slane %v1024, %v1164
        %v1166 = vlaneseq
        %v1167 = vshrl.u32 %v1166, 7
        %v1168 = vsub.s32 0, %v1167
        %v1169 = vrot.slane %v1026, %v1168
        %v1170 = vlaneseq
        %v1171 = vshrl.u32 %v1170, 7
        %v1172 = vsub.s32 0, %v1171
        %v1173 = vrot.slane %v1028, %v1172
        %v1174 = vlaneseq
        %v1175 = vshrl.u32 %v1174, 7
        %v1176 = vsub.s32 0, %v1175
        %v1177 = vrot.slane %v1052, %v1176
        %v1178 = vlaneseq
        %v1179 = vshrl.u32 %v1178, 7
        %v1180 = vsub.s32 0, %v1179
        %v1181 = vrot.slane %v1066, %v1180
        %v1182 = vlaneseq
        %v1183 = vshrl.u32 %v1182, 7
        %v1184 = vsub.s32 0, %v1183
        %v1185 = vrot.slane %v1074, %v1184
        %v1186 = vlaneseq
        %v1187 = vshrl.u32 %v1186, 7
        %v1188 = vsub.s32 0, %v1187
        %v1189 = vrot.slane %v1076, %v1188
        %v1190 = vlaneseq
        %v1191 = vshrl.u32 %v1190, 7
        %v1192 = vsub.s32 0, %v1191
        %v1193 = vrot.slane %v1059, %v1192
        %v1194 = vlaneseq
        %v1195 = vshrl.u32 %v1194, 7
        %v1196 = vsub.s32 0, %v1195
        %v1197 = vrot.slane %v1073, %v1196
        %v1198 = vlaneseq
        %v1199 = vshrl.u32 %v1198, 7
        %v1200 = vsub.s32 0, %v1199
        %v1201 = vrot.slane %v1075, %v1200
        %v1202 = vlaneseq
        %v1203 = vshrl.u32 %v1202, 7
        %v1204 = vsub.s32 0, %v1203
        %v1205 = vrot.slane %v1077, %v1204
        %v1238 = vmul.f32 %v766, %v1081
        %v1239 = vmul.f32 %v767, %v1081
        %v1240 = vmul.f32 %v768, %v1081
        %v1241 = vmul.f32 %v769, %v1081
        %v1242 = vmul.f32 %v770, %v1081
        %v1243 = vmul.f32 %v766, %v1085
        %v1244 = vmul.f32 %v767, %v1085
        %v1245 = vmul.f32 %v768, %v1085
        %v1246 = vmul.f32 %v769, %v1085
        %v1247 = vmul.f32 %v770, %v1085
        %v1248 = vmul.f32 %v766, %v1089
        %v1249 = vmul.f32 %v767, %v1089
        %v1250 = vmul.f32 %v768, %v1089
        %v1251 = vmul.f32 %v769, %v1089
        %v1252 = vmul.f32 %v770, %v1089
        %v1253 = vmul.f32 %v766, %v1093
        %v1254 = vmul.f32 %v767, %v1093
        %v1255 = vmul.f32 %v768, %v1093
        %v1256 = vmul.f32 %v769, %v1093
        %v1257 = vmul.f32 %v770, %v1093
        %v1258 = vmul.f32 %v766, %v1097
        %v1259 = vmul.f32 %v767, %v1097
        %v1260 = vmul.f32 %v768, %v1097
        %v1261 = vmul.f32 %v769, %v1097
        %v1262 = vmul.f32 %v770, %v1097
        %v1263 = vmul.f32 %v766, %v1101
        %v1264 = vmul.f32 %v767, %v1101
        %v1265 = vmul.f32 %v768, %v1101
        %v1266 = vmul.f32 %v769, %v1101
        %v1267 = vmul.f32 %v770, %v1101
        %v1268 = vmul.f32 %v766, %v1105
        %v1269 = vmul.f32 %v767, %v1105
        %v1270 = vmul.f32 %v768, %v1105
        %v1271 = vmul.f32 %v769, %v1105
        %v1272 = vmul.f32 %v770, %v1105
        %v1273 = vmul.f32 %v766, %v1109
        %v1274 = vmul.f32 %v767, %v1109
        %v1275 = vmul.f32 %v768, %v1109
        %v1276 = vmul.f32 %v769, %v1109
        %v1277 = vmul.f32 %v770, %v1109
        %v1278 = vmul.f32 %v766, %v1113
        %v1279 = vmul.f32 %v767, %v1113
        %v1280 = vmul.f32 %v768, %v1113
        %v1281 = vmul.f32 %v769, %v1113
        %v1282 = vmul.f32 %v770, %v1113
        %v1283 = vmul.f32 %v766, %v1117
        %v1284 = vmul.f32 %v767, %v1117
        %v1285 = vmul.f32 %v768, %v1117
        %v1286 = vmul.f32 %v769, %v1117
        %v1287 = vmul.f32 %v770, %v1117
        %v1288 = vmul.f32 %v766, %v1121
        %v1289 = vmul.f32 %v767, %v1121
        %v1290 = vmul.f32 %v768, %v1121
        %v1291 = vmul.f32 %v769, %v1121
        %v1292 = vmul.f32 %v770, %v1121
        %v1293 = vmul.f32 %v766, %v1125
        %v1294 = vmul.f32 %v767, %v1125
        %v1295 = vmul.f32 %v768, %v1125
        %v1296 = vmul.f32 %v769, %v1125
        %v1297 = vmul.f32 %v770, %v1125
        %v1298 = vmul.f32 %v766, %v1129
        %v1299 = vmul.f32 %v767, %v1129
        %v1300 = vmul.f32 %v768, %v1129
        %v1301 = vmul.f32 %v769, %v1129
        %v1302 = vmul.f32 %v770, %v1129
        %v1303 = vmul.f32 %v766, %v1133
        %v1304 = vmul.f32 %v767, %v1133
        %v1305 = vmul.f32 %v768, %v1133
        %v1306 = vmul.f32 %v769, %v1133
        %v1307 = vmul.f32 %v770, %v1133
        %v1308 = vmul.f32 %v766, %v1137
        %v1309 = vmul.f32 %v767, %v1137
        %v1310 = vmul.f32 %v768, %v1137
        %v1311 = vmul.f32 %v769, %v1137
        %v1312 = vmul.f32 %v770, %v1137
        %v1313 = vmul.f32 %v766, %v1141
        %v1314 = vmul.f32 %v767, %v1141
        %v1315 = vmul.f32 %v768, %v1141
        %v1316 = vmul.f32 %v769, %v1141
        %v1317 = vmul.f32 %v770, %v1141
        %v1318 = vmul.f32 %v766, %v1145
        %v1319 = vmul.f32 %v767, %v1145
        %v1320 = vmul.f32 %v768, %v1145
        %v1321 = vmul.f32 %v769, %v1145
        %v1322 = vmul.f32 %v770, %v1145
        %v1323 = vmul.f32 %v766, %v1149
        %v1324 = vmul.f32 %v767, %v1149
        %v1325 = vmul.f32 %v768, %v1149
        %v1326 = vmul.f32 %v769, %v1149
        %v1327 = vmul.f32 %v770, %v1149
        %v1328 = vmul.f32 %v766, %v1153
        %v1329 = vmul.f32 %v767, %v1153
        %v1330 = vmul.f32 %v768, %v1153
        %v1331 = vmul.f32 %v769, %v1153
        %v1332 = vmul.f32 %v770, %v1153
        %v1333 = vmul.f32 %v766, %v1157
        %v1334 = vmul.f32 %v767, %v1157
        %v1335 = vmul.f32 %v768, %v1157
        %v1336 = vmul.f32 %v769, %v1157
        %v1337 = vmul.f32 %v770, %v1157
        %v1338 = vmul.f32 %v766, %v1161
        %v1339 = vmul.f32 %v767, %v1161
        %v1340 = vmul.f32 %v768, %v1161
        %v1341 = vmul.f32 %v769, %v1161
        %v1342 = vmul.f32 %v770, %v1161
        %v1343 = vmul.f32 %v766, %v1165
        %v1344 = vmul.f32 %v767, %v1165
        %v1345 = vmul.f32 %v768, %v1165
        %v1346 = vmul.f32 %v769, %v1165
        %v1347 = vmul.f32 %v770, %v1165
        %v1348 = vmul.f32 %v766, %v1169
        %v1349 = vmul.f32 %v767, %v1169
        %v1350 = vmul.f32 %v768, %v1169
        %v1351 = vmul.f32 %v769, %v1169
        %v1352 = vmul.f32 %v770, %v1169
        %v1353 = vmul.f32 %v766, %v1173
        %v1354 = vmul.f32 %v767, %v1173
        %v1355 = vmul.f32 %v768, %v1173
        %v1356 = vmul.f32 %v769, %v1173
        %v1357 = vmul.f32 %v770, %v1173
        %v1358 = vmul.f32 %v766, %v1177
        %v1359 = vmul.f32 %v767, %v1177
        %v1360 = vmul.f32 %v768, %v1177
        %v1361 = vmul.f32 %v769, %v1177
        %v1362 = vmul.f32 %v770, %v1177
        %v1363 = vmul.f32 %v766, %v1181
        %v1364 = vmul.f32 %v767, %v1181
        %v1365 = vmul.f32 %v768, %v1181
        %v1366 = vmul.f32 %v769, %v1181
        %v1367 = vmul.f32 %v770, %v1181
        %v1368 = vmul.f32 %v766, %v1185
        %v1369 = vmul.f32 %v767, %v1185
        %v1370 = vmul.f32 %v768, %v1185
        %v1371 = vmul.f32 %v769, %v1185
        %v1372 = vmul.f32 %v770, %v1185
        %v1373 = vmul.f32 %v766, %v1189
        %v1374 = vmul.f32 %v767, %v1189
        %v1375 = vmul.f32 %v768, %v1189
        %v1376 = vmul.f32 %v769, %v1189
        %v1377 = vmul.f32 %v770, %v1189
        %v1378 = vmul.f32 %v766, %v1193
        %v1379 = vmul.f32 %v767, %v1193
        %v1380 = vmul.f32 %v768, %v1193
        %v1381 = vmul.f32 %v769, %v1193
        %v1382 = vmul.f32 %v770, %v1193
        %v1383 = vmul.f32 %v766, %v1197
        %v1384 = vmul.f32 %v767, %v1197
        %v1385 = vmul.f32 %v768, %v1197
        %v1386 = vmul.f32 %v769, %v1197
        %v1387 = vmul.f32 %v770, %v1197
        %v1388 = vmul.f32 %v766, %v1201
        %v1389 = vmul.f32 %v767, %v1201
        %v1390 = vmul.f32 %v768, %v1201
        %v1391 = vmul.f32 %v769, %v1201
        %v1392 = vmul.f32 %v770, %v1201
        %v1393 = vmul.f32 %v766, %v1205
        %v1394 = vmul.f32 %v767, %v1205
        %v1395 = vmul.f32 %v768, %v1205
        %v1396 = vmul.f32 %v769, %v1205
        %v1397 = vmul.f32 %v770, %v1205
        %v1399 = vsel %vm651, %v1238, 0
        %v1402 = vsel %vm651, %v1239, 0
        %v1405 = vsel %vm651, %v1240, 0
        %v1408 = vsel %vm651, %v1241, 0
        %v1411 = vsel %vm651, %v1242, 0
        %v1414 = vsel %vm651, %v1243, 0
        %v1417 = vsel %vm651, %v1244, 0
        %v1420 = vsel %vm651, %v1245, 0
        %v1423 = vsel %vm651, %v1246, 0
        %v1426 = vsel %vm651, %v1247, 0
        %v1429 = vsel %vm651, %v1248, 0
        %v1432 = vsel %vm651, %v1249, 0
        %v1435 = vsel %vm651, %v1250, 0
        %v1438 = vsel %vm651, %v1251, 0
        %v1441 = vsel %vm651, %v1252, 0
        %v1444 = vsel %vm651, %v1253, 0
        %v1447 = vsel %vm651, %v1254, 0
        %v1450 = vsel %vm651, %v1255, 0
        %v1453 = vsel %vm651, %v1256, 0
        %v1456 = vsel %vm651, %v1257, 0
        %v1459 = vsel %vm651, %v1258, 0
        %v1462 = vsel %vm651, %v1259, 0
        %v1465 = vsel %vm651, %v1260, 0
        %v1468 = vsel %vm651, %v1261, 0
        %v1471 = vsel %vm651, %v1262, 0
        %v1474 = vsel %vm651, %v1263, 0
        %v1477 = vsel %vm651, %v1264, 0
        %v1480 = vsel %vm651, %v1265, 0
        %v1483 = vsel %vm651, %v1266, 0
        %v1486 = vsel %vm651, %v1267, 0
        %v1489 = vsel %vm651, %v1268, 0
        %v1492 = vsel %vm651, %v1269, 0
        %v1495 = vsel %vm651, %v1270, 0
        %v1498 = vsel %vm651, %v1271, 0
        %v1501 = vsel %vm651, %v1272, 0
        %v1504 = vsel %vm651, %v1273, 0
        %v1507 = vsel %vm651, %v1274, 0
        %v1510 = vsel %vm651, %v1275, 0
        %v1513 = vsel %vm651, %v1276, 0
        %v1516 = vsel %vm651, %v1277, 0
        %v1519 = vsel %vm651, %v1278, 0
        %v1522 = vsel %vm651, %v1279, 0
        %v1525 = vsel %vm651, %v1280, 0
        %v1528 = vsel %vm651, %v1281, 0
        %v1531 = vsel %vm651, %v1282, 0
        %v1534 = vsel %vm651, %v1283, 0
        %v1537 = vsel %vm651, %v1284, 0
        %v1540 = vsel %vm651, %v1285, 0
        %v1543 = vsel %vm651, %v1286, 0
        %v1546 = vsel %vm651, %v1287, 0
        %v1549 = vsel %vm651, %v1288, 0
        %v1552 = vsel %vm651, %v1289, 0
        %v1555 = vsel %vm651, %v1290, 0
        %v1558 = vsel %vm651, %v1291, 0
        %v1561 = vsel %vm651, %v1292, 0
        %v1564 = vsel %vm651, %v1293, 0
        %v1567 = vsel %vm651, %v1294, 0
        %v1570 = vsel %vm651, %v1295, 0
        %v1573 = vsel %vm651, %v1296, 0
        %v1576 = vsel %vm651, %v1297, 0
        %v1579 = vsel %vm651, %v1298, 0
        %v1582 = vsel %vm651, %v1299, 0
        %v1585 = vsel %vm651, %v1300, 0
        %v1588 = vsel %vm651, %v1301, 0
        %v1591 = vsel %vm651, %v1302, 0
        %v1594 = vsel %vm651, %v1303, 0
        %v1597 = vsel %vm651, %v1304, 0
        %v1600 = vsel %vm651, %v1305, 0
        %v1603 = vsel %vm651, %v1306, 0
        %v1606 = vsel %vm651, %v1307, 0
        %v1609 = vsel %vm651, %v1308, 0
        %v1612 = vsel %vm651, %v1309, 0
        %v1615 = vsel %vm651, %v1310, 0
        %v1618 = vsel %vm651, %v1311, 0
        %v1621 = vsel %vm651, %v1312, 0
        %v1624 = vsel %vm651, %v1313, 0
        %v1627 = vsel %vm651, %v1314, 0
        %v1630 = vsel %vm651, %v1315, 0
        %v1633 = vsel %vm651, %v1316, 0
        %v1636 = vsel %vm651, %v1317, 0
        %v1639 = vsel %vm651, %v1318, 0
        %v1642 = vsel %vm651, %v1319, 0
        %v1645 = vsel %vm651, %v1320, 0
        %v1648 = vsel %vm651, %v1321, 0
        %v1651 = vsel %vm651, %v1322, 0
        %v1654 = vsel %vm651, %v1323, 0
        %v1657 = vsel %vm651, %v1324, 0
        %v1660 = vsel %vm651, %v1325, 0
        %v1663 = vsel %vm651, %v1326, 0
        %v1666 = vsel %vm651, %v1327, 0
        %v1669 = vsel %vm651, %v1328, 0
        %v1672 = vsel %vm651, %v1329, 0
        %v1675 = vsel %vm651, %v1330, 0
        %v1678 = vsel %vm651, %v1331, 0
        %v1681 = vsel %vm651, %v1332, 0
        %v1684 = vsel %vm651, %v1333, 0
        %v1687 = vsel %vm651, %v1334, 0
        %v1690 = vsel %vm651, %v1335, 0
        %v1693 = vsel %vm651, %v1336, 0
        %v1696 = vsel %vm651, %v1337, 0
        %v1699 = vsel %vm651, %v1338, 0
        %v1702 = vsel %vm651, %v1339, 0
        %v1705 = vsel %vm651, %v1340, 0
        %v1708 = vsel %vm651, %v1341, 0
        %v1711 = vsel %vm651, %v1342, 0
        %v1714 = vsel %vm651, %v1343, 0
        %v1717 = vsel %vm651, %v1344, 0
        %v1720 = vsel %vm651, %v1345, 0
        %v1723 = vsel %vm651, %v1346, 0
        %v1726 = vsel %vm651, %v1347, 0
        %v1729 = vsel %vm651, %v1348, 0
        %v1732 = vsel %vm651, %v1349, 0
        %v1735 = vsel %vm651, %v1350, 0
        %v1738 = vsel %vm651, %v1351, 0
        %v1741 = vsel %vm651, %v1352, 0
        %v1744 = vsel %vm651, %v1353, 0
        %v1747 = vsel %vm651, %v1354, 0
        %v1750 = vsel %vm651, %v1355, 0
        %v1753 = vsel %vm651, %v1356, 0
        %v1756 = vsel %vm651, %v1357, 0
        %v1759 = vsel %vm651, %v1358, 0
        %v1762 = vsel %vm651, %v1359, 0
        %v1765 = vsel %vm651, %v1360, 0
        %v1768 = vsel %vm651, %v1361, 0
        %v1771 = vsel %vm651, %v1362, 0
        %v1774 = vsel %vm651, %v1363, 0
        %v1777 = vsel %vm651, %v1364, 0
        %v1780 = vsel %vm651, %v1365, 0
        %v1783 = vsel %vm651, %v1366, 0
        %v1786 = vsel %vm651, %v1367, 0
        %v1789 = vsel %vm651, %v1368, 0
        %v1792 = vsel %vm651, %v1369, 0
        %v1795 = vsel %vm651, %v1370, 0
        %v1798 = vsel %vm651, %v1371, 0
        %v1801 = vsel %vm651, %v1372, 0
        %v1804 = vsel %vm651, %v1373, 0
        %v1807 = vsel %vm651, %v1374, 0
        %v1810 = vsel %vm651, %v1375, 0
        %v1813 = vsel %vm651, %v1376, 0
        %v1816 = vsel %vm651, %v1377, 0
        %v1819 = vsel %vm651, %v1378, 0
        %v1822 = vsel %vm651, %v1379, 0
        %v1825 = vsel %vm651, %v1380, 0
        %v1828 = vsel %vm651, %v1381, 0
        %v1831 = vsel %vm651, %v1382, 0
        %v1834 = vsel %vm651, %v1383, 0
        %v1837 = vsel %vm651, %v1384, 0
        %v1840 = vsel %vm651, %v1385, 0
        %v1843 = vsel %vm651, %v1386, 0
        %v1846 = vsel %vm651, %v1387, 0
        %v1849 = vsel %vm651, %v1388, 0
        %v1852 = vsel %vm651, %v1389, 0
        %v1855 = vsel %vm651, %v1390, 0
        %v1858 = vsel %vm651, %v1391, 0
        %v1861 = vsel %vm651, %v1392, 0
        %v1864 = vsel %vm651, %v1393, 0
        %v1867 = vsel %vm651, %v1394, 0
        %v1870 = vsel %vm651, %v1395, 0
        %v1873 = vsel %vm651, %v1396, 0
        %v1876 = vsel %vm651, %v1397, 0
        %1878 = vmatprep.subr.mxu0 0.0
        %1879 = vmatpush1.msra.mxu0 0.0
        %1880 = vmatprep.subr.mxu0 0.0
        %1881 = vmatpush1.msra.mxu0 0.0
        %1882 = vmatprep.subr.mxu0 0.0
        %1883 = vmatpush1.msra.mxu0 0.0
        %1884 = vmatprep.subr.mxu0 0.0
        %1885 = vmatpush1.msra.mxu0 0.0
        %1886 = vmatprep.subr.mxu0 0.0
        %1887 = vmatpush1.msra.mxu0 0.0
        %1888 = vmatprep.subr.mxu0 0.0
        %1889 = vmatpush1.msra.mxu0 0.0
        %1890 = vmatprep.subr.mxu0 0.0
        %1891 = vmatpush1.msra.mxu0 0.0
        %1892 = vmatprep.subr.mxu0 0.0
        %1893 = vmatpush1.msra.mxu0 0.0
        %1894 = vmatprep.subr.mxu0 0.0
        %1895 = vmatpush1.msra.mxu0 0.0
        %1896 = vmatprep.subr.mxu0 0.0
        %1897 = vmatpush1.msra.mxu0 0.0
        %1898 = vmatprep.subr.mxu0 0.0
        %1899 = vmatpush1.msra.mxu0 0.0
        %1900 = vmatprep.subr.mxu0 0.0
        %1901 = vmatpush1.msra.mxu0 0.0
        %1902 = vmatprep.subr.mxu0 0.0
        %1903 = vmatpush1.msra.mxu0 %v644
        %1904 = vmatprep.subr.mxu0 0.0
        %1905 = vmatpush1.msra.mxu0 %v643
        %1906 = vmatprep.subr.mxu0 0.0
        %1907 = vmatpush1.msra.mxu0 %v642
        %1908 = vmatprep.subr.mxu0 0.0
        %1909 = vmatpush1.msra.mxu0 %v641
        %1910 = vmatprep.subr.mxu0 0.0
        %1911 = vmatpush2.msra.mxu0 0.0
        %1912 = vmatprep.subr.mxu0 0.0
        %1913 = vmatpush2.msra.mxu0 0.0
        %1914 = vmatprep.subr.mxu0 0.0
        %1915 = vmatpush2.msra.mxu0 0.0
        %1916 = vmatprep.subr.mxu0 0.0
        %1917 = vmatpush2.msra.mxu0 0.0
        %1918 = vmatprep.subr.mxu0 0.0
        %1919 = vmatpush2.msra.mxu0 0.0
        %1920 = vmatprep.subr.mxu0 0.0
        %1921 = vmatpush2.msra.mxu0 0.0
        %1922 = vmatprep.subr.mxu0 0.0
        %1923 = vmatpush2.msra.mxu0 0.0
        %1924 = vmatprep.subr.mxu0 0.0
        %1925 = vmatpush2.msra.mxu0 0.0
        %1926 = vmatprep.subr.mxu0 0.0
        %1927 = vmatpush2.msra.mxu0 0.0
        %1928 = vmatprep.subr.mxu0 0.0
        %1929 = vmatpush2.msra.mxu0 0.0
        %1930 = vmatprep.subr.mxu0 0.0
        %1931 = vmatpush2.msra.mxu0 0.0
        %1932 = vmatprep.subr.mxu0 0.0
        %1933 = vmatpush2.msra.mxu0 0.0
        %1934 = vmatprep.subr.mxu0 0.0
        %1935 = vmatpush2.msra.mxu0 0.0
        %1936 = vmatprep.subr.mxu0 0.0
        %1937 = vmatpush2.msra.mxu0 0.0
        %1938 = vmatprep.subr.mxu0 0.0
        %1939 = vmatpush2.msra.mxu0 0.0
        %1940 = vmatprep.subr.mxu0 0.0
        %1941 = vmatpush2.msra.mxu0 0.0
        %1942 = vmatprep.mubr.f32.mxu0 0.0
        %1943 = vmatmul.mubr.f32.gmra.mxu0 %v1399
        %v1944 = vpop.f32.mrf.mxu0
        %v1945 = vadd.f32 0.0, %v1944
        %v1946 = vpop.f32.mrf.mxu0
        %1947 = vmatprep.mubr.f32.mxu0 0.0
        %1948 = vmatmul.mubr.f32.gmra.mxu0 %v1402
        %v1949 = vpop.f32.mrf.mxu0
        %v1950 = vadd.f32 0.0, %v1949
        %v1951 = vpop.f32.mrf.mxu0
        %1952 = vmatprep.mubr.f32.mxu0 0.0
        %1953 = vmatmul.mubr.f32.gmra.mxu0 %v1405
        %v1954 = vpop.f32.mrf.mxu0
        %v1955 = vadd.f32 0.0, %v1954
        %v1956 = vpop.f32.mrf.mxu0
        %1957 = vmatprep.mubr.f32.mxu0 0.0
        %1958 = vmatmul.mubr.f32.gmra.mxu0 %v1408
        %v1959 = vpop.f32.mrf.mxu0
        %v1960 = vadd.f32 0.0, %v1959
        %v1961 = vpop.f32.mrf.mxu0
        %1962 = vmatprep.mubr.f32.mxu0 0.0
        %1963 = vmatmul.mubr.f32.gmra.mxu0 %v1411
        %v1964 = vpop.f32.mrf.mxu0
        %v1965 = vadd.f32 0.0, %v1964
        %v1966 = vpop.f32.mrf.mxu0
        %1967 = vmatprep.mubr.f32.mxu0 0.0
        %1968 = vmatmul.mubr.f32.gmra.mxu0 %v1414
        %v1969 = vpop.f32.mrf.mxu0
        %v1970 = vadd.f32 0.0, %v1969
        %v1971 = vpop.f32.mrf.mxu0
        %1972 = vmatprep.mubr.f32.mxu0 0.0
        %1973 = vmatmul.mubr.f32.gmra.mxu0 %v1417
        %v1974 = vpop.f32.mrf.mxu0
        %v1975 = vadd.f32 0.0, %v1974
        %v1976 = vpop.f32.mrf.mxu0
        %1977 = vmatprep.mubr.f32.mxu0 0.0
        %1978 = vmatmul.mubr.f32.gmra.mxu0 %v1420
        %v1979 = vpop.f32.mrf.mxu0
        %v1980 = vadd.f32 0.0, %v1979
        %v1981 = vpop.f32.mrf.mxu0
        %1982 = vmatprep.mubr.f32.mxu0 0.0
        %1983 = vmatmul.mubr.f32.gmra.mxu0 %v1423
        %v1984 = vpop.f32.mrf.mxu0
        %v1985 = vadd.f32 0.0, %v1984
        %v1986 = vpop.f32.mrf.mxu0
        %1987 = vmatprep.mubr.f32.mxu0 0.0
        %1988 = vmatmul.mubr.f32.gmra.mxu0 %v1426
        %v1989 = vpop.f32.mrf.mxu0
        %v1990 = vadd.f32 0.0, %v1989
        %v1991 = vpop.f32.mrf.mxu0
        %1992 = vmatprep.mubr.f32.mxu0 0.0
        %1993 = vmatmul.mubr.f32.gmra.mxu0 %v1429
        %v1994 = vpop.f32.mrf.mxu0
        %v1995 = vadd.f32 0.0, %v1994
        %v1996 = vpop.f32.mrf.mxu0
        %1997 = vmatprep.mubr.f32.mxu0 0.0
        %1998 = vmatmul.mubr.f32.gmra.mxu0 %v1432
        %v1999 = vpop.f32.mrf.mxu0
        %v2000 = vadd.f32 0.0, %v1999
        %v2001 = vpop.f32.mrf.mxu0
        %2002 = vmatprep.mubr.f32.mxu0 0.0
        %2003 = vmatmul.mubr.f32.gmra.mxu0 %v1435
        %v2004 = vpop.f32.mrf.mxu0
        %v2005 = vadd.f32 0.0, %v2004
        %v2006 = vpop.f32.mrf.mxu0
        %2007 = vmatprep.mubr.f32.mxu0 0.0
        %2008 = vmatmul.mubr.f32.gmra.mxu0 %v1438
        %v2009 = vpop.f32.mrf.mxu0
        %v2010 = vadd.f32 0.0, %v2009
        %v2011 = vpop.f32.mrf.mxu0
        %2012 = vmatprep.mubr.f32.mxu0 0.0
        %2013 = vmatmul.mubr.f32.gmra.mxu0 %v1441
        %v2014 = vpop.f32.mrf.mxu0
        %v2015 = vadd.f32 0.0, %v2014
        %v2016 = vpop.f32.mrf.mxu0
        %2017 = vmatprep.mubr.f32.mxu0 0.0
        %2018 = vmatmul.mubr.f32.gmra.mxu0 %v1444
        %v2019 = vpop.f32.mrf.mxu0
        %v2020 = vadd.f32 0.0, %v2019
        %v2021 = vpop.f32.mrf.mxu0
        %2022 = vmatprep.mubr.f32.mxu0 0.0
        %2023 = vmatmul.mubr.f32.gmra.mxu0 %v1447
        %v2024 = vpop.f32.mrf.mxu0
        %v2025 = vadd.f32 0.0, %v2024
        %v2026 = vpop.f32.mrf.mxu0
        %2027 = vmatprep.mubr.f32.mxu0 0.0
        %2028 = vmatmul.mubr.f32.gmra.mxu0 %v1450
        %v2029 = vpop.f32.mrf.mxu0
        %v2030 = vadd.f32 0.0, %v2029
        %v2031 = vpop.f32.mrf.mxu0
        %2032 = vmatprep.mubr.f32.mxu0 0.0
        %2033 = vmatmul.mubr.f32.gmra.mxu0 %v1453
        %v2034 = vpop.f32.mrf.mxu0
        %v2035 = vadd.f32 0.0, %v2034
        %v2036 = vpop.f32.mrf.mxu0
        %2037 = vmatprep.mubr.f32.mxu0 0.0
        %2038 = vmatmul.mubr.f32.gmra.mxu0 %v1456
        %v2039 = vpop.f32.mrf.mxu0
        %v2040 = vadd.f32 0.0, %v2039
        %v2041 = vpop.f32.mrf.mxu0
        %2042 = vmatprep.mubr.f32.mxu0 0.0
        %2043 = vmatmul.mubr.f32.gmra.mxu0 %v1459
        %v2044 = vpop.f32.mrf.mxu0
        %v2045 = vadd.f32 0.0, %v2044
        %v2046 = vpop.f32.mrf.mxu0
        %2047 = vmatprep.mubr.f32.mxu0 0.0
        %2048 = vmatmul.mubr.f32.gmra.mxu0 %v1462
        %v2049 = vpop.f32.mrf.mxu0
        %v2050 = vadd.f32 0.0, %v2049
        %v2051 = vpop.f32.mrf.mxu0
        %2052 = vmatprep.mubr.f32.mxu0 0.0
        %2053 = vmatmul.mubr.f32.gmra.mxu0 %v1465
        %v2054 = vpop.f32.mrf.mxu0
        %v2055 = vadd.f32 0.0, %v2054
        %v2056 = vpop.f32.mrf.mxu0
        %2057 = vmatprep.mubr.f32.mxu0 0.0
        %2058 = vmatmul.mubr.f32.gmra.mxu0 %v1468
        %v2059 = vpop.f32.mrf.mxu0
        %v2060 = vadd.f32 0.0, %v2059
        %v2061 = vpop.f32.mrf.mxu0
        %2062 = vmatprep.mubr.f32.mxu0 0.0
        %2063 = vmatmul.mubr.f32.gmra.mxu0 %v1471
        %v2064 = vpop.f32.mrf.mxu0
        %v2065 = vadd.f32 0.0, %v2064
        %v2066 = vpop.f32.mrf.mxu0
        %2067 = vmatprep.mubr.f32.mxu0 0.0
        %2068 = vmatmul.mubr.f32.gmra.mxu0 %v1474
        %v2069 = vpop.f32.mrf.mxu0
        %v2070 = vadd.f32 0.0, %v2069
        %v2071 = vpop.f32.mrf.mxu0
        %2072 = vmatprep.mubr.f32.mxu0 0.0
        %2073 = vmatmul.mubr.f32.gmra.mxu0 %v1477
        %v2074 = vpop.f32.mrf.mxu0
        %v2075 = vadd.f32 0.0, %v2074
        %v2076 = vpop.f32.mrf.mxu0
        %2077 = vmatprep.mubr.f32.mxu0 0.0
        %2078 = vmatmul.mubr.f32.gmra.mxu0 %v1480
        %v2079 = vpop.f32.mrf.mxu0
        %v2080 = vadd.f32 0.0, %v2079
        %v2081 = vpop.f32.mrf.mxu0
        %2082 = vmatprep.mubr.f32.mxu0 0.0
        %2083 = vmatmul.mubr.f32.gmra.mxu0 %v1483
        %v2084 = vpop.f32.mrf.mxu0
        %v2085 = vadd.f32 0.0, %v2084
        %v2086 = vpop.f32.mrf.mxu0
        %2087 = vmatprep.mubr.f32.mxu0 0.0
        %2088 = vmatmul.mubr.f32.gmra.mxu0 %v1486
        %v2089 = vpop.f32.mrf.mxu0
        %v2090 = vadd.f32 0.0, %v2089
        %v2091 = vpop.f32.mrf.mxu0
        %2092 = vmatprep.mubr.f32.mxu0 0.0
        %2093 = vmatmul.mubr.f32.gmra.mxu0 %v1489
        %v2094 = vpop.f32.mrf.mxu0
        %v2095 = vadd.f32 0.0, %v2094
        %v2096 = vpop.f32.mrf.mxu0
        %2097 = vmatprep.mubr.f32.mxu0 0.0
        %2098 = vmatmul.mubr.f32.gmra.mxu0 %v1492
        %v2099 = vpop.f32.mrf.mxu0
        %v2100 = vadd.f32 0.0, %v2099
        %v2101 = vpop.f32.mrf.mxu0
        %2102 = vmatprep.mubr.f32.mxu0 0.0
        %2103 = vmatmul.mubr.f32.gmra.mxu0 %v1495
        %v2104 = vpop.f32.mrf.mxu0
        %v2105 = vadd.f32 0.0, %v2104
        %v2106 = vpop.f32.mrf.mxu0
        %2107 = vmatprep.mubr.f32.mxu0 0.0
        %2108 = vmatmul.mubr.f32.gmra.mxu0 %v1498
        %v2109 = vpop.f32.mrf.mxu0
        %v2110 = vadd.f32 0.0, %v2109
        %v2111 = vpop.f32.mrf.mxu0
        %2112 = vmatprep.mubr.f32.mxu0 0.0
        %2113 = vmatmul.mubr.f32.gmra.mxu0 %v1501
        %v2114 = vpop.f32.mrf.mxu0
        %v2115 = vadd.f32 0.0, %v2114
        %v2116 = vpop.f32.mrf.mxu0
        %2117 = vmatprep.mubr.f32.mxu0 0.0
        %2118 = vmatmul.mubr.f32.gmra.mxu0 %v1504
        %v2119 = vpop.f32.mrf.mxu0
        %v2120 = vadd.f32 0.0, %v2119
        %v2121 = vpop.f32.mrf.mxu0
        %2122 = vmatprep.mubr.f32.mxu0 0.0
        %2123 = vmatmul.mubr.f32.gmra.mxu0 %v1507
        %v2124 = vpop.f32.mrf.mxu0
        %v2125 = vadd.f32 0.0, %v2124
        %v2126 = vpop.f32.mrf.mxu0
        %2127 = vmatprep.mubr.f32.mxu0 0.0
        %2128 = vmatmul.mubr.f32.gmra.mxu0 %v1510
        %v2129 = vpop.f32.mrf.mxu0
        %v2130 = vadd.f32 0.0, %v2129
        %v2131 = vpop.f32.mrf.mxu0
        %2132 = vmatprep.mubr.f32.mxu0 0.0
        %2133 = vmatmul.mubr.f32.gmra.mxu0 %v1513
        %v2134 = vpop.f32.mrf.mxu0
        %v2135 = vadd.f32 0.0, %v2134
        %v2136 = vpop.f32.mrf.mxu0
        %2137 = vmatprep.mubr.f32.mxu0 0.0
        %2138 = vmatmul.mubr.f32.gmra.mxu0 %v1516
        %v2139 = vpop.f32.mrf.mxu0
        %v2140 = vadd.f32 0.0, %v2139
        %v2141 = vpop.f32.mrf.mxu0
        %2142 = vmatprep.mubr.f32.mxu0 0.0
        %2143 = vmatmul.mubr.f32.gmra.mxu0 %v1519
        %v2144 = vpop.f32.mrf.mxu0
        %v2145 = vadd.f32 0.0, %v2144
        %v2146 = vpop.f32.mrf.mxu0
        %2147 = vmatprep.mubr.f32.mxu0 0.0
        %2148 = vmatmul.mubr.f32.gmra.mxu0 %v1522
        %v2149 = vpop.f32.mrf.mxu0
        %v2150 = vadd.f32 0.0, %v2149
        %v2151 = vpop.f32.mrf.mxu0
        %2152 = vmatprep.mubr.f32.mxu0 0.0
        %2153 = vmatmul.mubr.f32.gmra.mxu0 %v1525
        %v2154 = vpop.f32.mrf.mxu0
        %v2155 = vadd.f32 0.0, %v2154
        %v2156 = vpop.f32.mrf.mxu0
        %2157 = vmatprep.mubr.f32.mxu0 0.0
        %2158 = vmatmul.mubr.f32.gmra.mxu0 %v1528
        %v2159 = vpop.f32.mrf.mxu0
        %v2160 = vadd.f32 0.0, %v2159
        %v2161 = vpop.f32.mrf.mxu0
        %2162 = vmatprep.mubr.f32.mxu0 0.0
        %2163 = vmatmul.mubr.f32.gmra.mxu0 %v1531
        %v2164 = vpop.f32.mrf.mxu0
        %v2165 = vadd.f32 0.0, %v2164
        %v2166 = vpop.f32.mrf.mxu0
        %2167 = vmatprep.mubr.f32.mxu0 0.0
        %2168 = vmatmul.mubr.f32.gmra.mxu0 %v1534
        %v2169 = vpop.f32.mrf.mxu0
        %v2170 = vadd.f32 0.0, %v2169
        %v2171 = vpop.f32.mrf.mxu0
        %2172 = vmatprep.mubr.f32.mxu0 0.0
        %2173 = vmatmul.mubr.f32.gmra.mxu0 %v1537
        %v2174 = vpop.f32.mrf.mxu0
        %v2175 = vadd.f32 0.0, %v2174
        %v2176 = vpop.f32.mrf.mxu0
        %2177 = vmatprep.mubr.f32.mxu0 0.0
        %2178 = vmatmul.mubr.f32.gmra.mxu0 %v1540
        %v2179 = vpop.f32.mrf.mxu0
        %v2180 = vadd.f32 0.0, %v2179
        %v2181 = vpop.f32.mrf.mxu0
        %2182 = vmatprep.mubr.f32.mxu0 0.0
        %2183 = vmatmul.mubr.f32.gmra.mxu0 %v1543
        %v2184 = vpop.f32.mrf.mxu0
        %v2185 = vadd.f32 0.0, %v2184
        %v2186 = vpop.f32.mrf.mxu0
        %2187 = vmatprep.mubr.f32.mxu0 0.0
        %2188 = vmatmul.mubr.f32.gmra.mxu0 %v1546
        %v2189 = vpop.f32.mrf.mxu0
        %v2190 = vadd.f32 0.0, %v2189
        %v2191 = vpop.f32.mrf.mxu0
        %2192 = vmatprep.mubr.f32.mxu0 0.0
        %2193 = vmatmul.mubr.f32.gmra.mxu0 %v1549
        %v2194 = vpop.f32.mrf.mxu0
        %v2195 = vadd.f32 0.0, %v2194
        %v2196 = vpop.f32.mrf.mxu0
        %2197 = vmatprep.mubr.f32.mxu0 0.0
        %2198 = vmatmul.mubr.f32.gmra.mxu0 %v1552
        %v2199 = vpop.f32.mrf.mxu0
        %v2200 = vadd.f32 0.0, %v2199
        %v2201 = vpop.f32.mrf.mxu0
        %2202 = vmatprep.mubr.f32.mxu0 0.0
        %2203 = vmatmul.mubr.f32.gmra.mxu0 %v1555
        %v2204 = vpop.f32.mrf.mxu0
        %v2205 = vadd.f32 0.0, %v2204
        %v2206 = vpop.f32.mrf.mxu0
        %2207 = vmatprep.mubr.f32.mxu0 0.0
        %2208 = vmatmul.mubr.f32.gmra.mxu0 %v1558
        %v2209 = vpop.f32.mrf.mxu0
        %v2210 = vadd.f32 0.0, %v2209
        %v2211 = vpop.f32.mrf.mxu0
        %2212 = vmatprep.mubr.f32.mxu0 0.0
        %2213 = vmatmul.mubr.f32.gmra.mxu0 %v1561
        %v2214 = vpop.f32.mrf.mxu0
        %v2215 = vadd.f32 0.0, %v2214
        %v2216 = vpop.f32.mrf.mxu0
        %2217 = vmatprep.mubr.f32.mxu0 0.0
        %2218 = vmatmul.mubr.f32.gmra.mxu0 %v1564
        %v2219 = vpop.f32.mrf.mxu0
        %v2220 = vadd.f32 0.0, %v2219
        %v2221 = vpop.f32.mrf.mxu0
        %2222 = vmatprep.mubr.f32.mxu0 0.0
        %2223 = vmatmul.mubr.f32.gmra.mxu0 %v1567
        %v2224 = vpop.f32.mrf.mxu0
        %v2225 = vadd.f32 0.0, %v2224
        %v2226 = vpop.f32.mrf.mxu0
        %2227 = vmatprep.mubr.f32.mxu0 0.0
        %2228 = vmatmul.mubr.f32.gmra.mxu0 %v1570
        %v2229 = vpop.f32.mrf.mxu0
        %v2230 = vadd.f32 0.0, %v2229
        %v2231 = vpop.f32.mrf.mxu0
        %2232 = vmatprep.mubr.f32.mxu0 0.0
        %2233 = vmatmul.mubr.f32.gmra.mxu0 %v1573
        %v2234 = vpop.f32.mrf.mxu0
        %v2235 = vadd.f32 0.0, %v2234
        %v2236 = vpop.f32.mrf.mxu0
        %2237 = vmatprep.mubr.f32.mxu0 0.0
        %2238 = vmatmul.mubr.f32.gmra.mxu0 %v1576
        %v2239 = vpop.f32.mrf.mxu0
        %v2240 = vadd.f32 0.0, %v2239
        %v2241 = vpop.f32.mrf.mxu0
        %2242 = vmatprep.mubr.f32.mxu0 0.0
        %2243 = vmatmul.mubr.f32.gmra.mxu0 %v1579
        %v2244 = vpop.f32.mrf.mxu0
        %v2245 = vadd.f32 0.0, %v2244
        %v2246 = vpop.f32.mrf.mxu0
        %2247 = vmatprep.mubr.f32.mxu0 0.0
        %2248 = vmatmul.mubr.f32.gmra.mxu0 %v1582
        %v2249 = vpop.f32.mrf.mxu0
        %v2250 = vadd.f32 0.0, %v2249
        %v2251 = vpop.f32.mrf.mxu0
        %2252 = vmatprep.mubr.f32.mxu0 0.0
        %2253 = vmatmul.mubr.f32.gmra.mxu0 %v1585
        %v2254 = vpop.f32.mrf.mxu0
        %v2255 = vadd.f32 0.0, %v2254
        %v2256 = vpop.f32.mrf.mxu0
        %2257 = vmatprep.mubr.f32.mxu0 0.0
        %2258 = vmatmul.mubr.f32.gmra.mxu0 %v1588
        %v2259 = vpop.f32.mrf.mxu0
        %v2260 = vadd.f32 0.0, %v2259
        %v2261 = vpop.f32.mrf.mxu0
        %2262 = vmatprep.mubr.f32.mxu0 0.0
        %2263 = vmatmul.mubr.f32.gmra.mxu0 %v1591
        %v2264 = vpop.f32.mrf.mxu0
        %v2265 = vadd.f32 0.0, %v2264
        %v2266 = vpop.f32.mrf.mxu0
        %2267 = vmatprep.mubr.f32.mxu0 0.0
        %2268 = vmatmul.mubr.f32.gmra.mxu0 %v1594
        %v2269 = vpop.f32.mrf.mxu0
        %v2270 = vadd.f32 0.0, %v2269
        %v2271 = vpop.f32.mrf.mxu0
        %2272 = vmatprep.mubr.f32.mxu0 0.0
        %2273 = vmatmul.mubr.f32.gmra.mxu0 %v1597
        %v2274 = vpop.f32.mrf.mxu0
        %v2275 = vadd.f32 0.0, %v2274
        %v2276 = vpop.f32.mrf.mxu0
        %2277 = vmatprep.mubr.f32.mxu0 0.0
        %2278 = vmatmul.mubr.f32.gmra.mxu0 %v1600
        %v2279 = vpop.f32.mrf.mxu0
        %v2280 = vadd.f32 0.0, %v2279
        %v2281 = vpop.f32.mrf.mxu0
        %2282 = vmatprep.mubr.f32.mxu0 0.0
        %2283 = vmatmul.mubr.f32.gmra.mxu0 %v1603
        %v2284 = vpop.f32.mrf.mxu0
        %v2285 = vadd.f32 0.0, %v2284
        %v2286 = vpop.f32.mrf.mxu0
        %2287 = vmatprep.mubr.f32.mxu0 0.0
        %2288 = vmatmul.mubr.f32.gmra.mxu0 %v1606
        %v2289 = vpop.f32.mrf.mxu0
        %v2290 = vadd.f32 0.0, %v2289
        %v2291 = vpop.f32.mrf.mxu0
        %2292 = vmatprep.mubr.f32.mxu0 0.0
        %2293 = vmatmul.mubr.f32.gmra.mxu0 %v1609
        %v2294 = vpop.f32.mrf.mxu0
        %v2295 = vadd.f32 0.0, %v2294
        %v2296 = vpop.f32.mrf.mxu0
        %2297 = vmatprep.mubr.f32.mxu0 0.0
        %2298 = vmatmul.mubr.f32.gmra.mxu0 %v1612
        %v2299 = vpop.f32.mrf.mxu0
        %v2300 = vadd.f32 0.0, %v2299
        %v2301 = vpop.f32.mrf.mxu0
        %2302 = vmatprep.mubr.f32.mxu0 0.0
        %2303 = vmatmul.mubr.f32.gmra.mxu0 %v1615
        %v2304 = vpop.f32.mrf.mxu0
        %v2305 = vadd.f32 0.0, %v2304
        %v2306 = vpop.f32.mrf.mxu0
        %2307 = vmatprep.mubr.f32.mxu0 0.0
        %2308 = vmatmul.mubr.f32.gmra.mxu0 %v1618
        %v2309 = vpop.f32.mrf.mxu0
        %v2310 = vadd.f32 0.0, %v2309
        %v2311 = vpop.f32.mrf.mxu0
        %2312 = vmatprep.mubr.f32.mxu0 0.0
        %2313 = vmatmul.mubr.f32.gmra.mxu0 %v1621
        %v2314 = vpop.f32.mrf.mxu0
        %v2315 = vadd.f32 0.0, %v2314
        %v2316 = vpop.f32.mrf.mxu0
        %2317 = vmatprep.mubr.f32.mxu0 0.0
        %2318 = vmatmul.mubr.f32.gmra.mxu0 %v1624
        %v2319 = vpop.f32.mrf.mxu0
        %v2320 = vadd.f32 0.0, %v2319
        %v2321 = vpop.f32.mrf.mxu0
        %2322 = vmatprep.mubr.f32.mxu0 0.0
        %2323 = vmatmul.mubr.f32.gmra.mxu0 %v1627
        %v2324 = vpop.f32.mrf.mxu0
        %v2325 = vadd.f32 0.0, %v2324
        %v2326 = vpop.f32.mrf.mxu0
        %2327 = vmatprep.mubr.f32.mxu0 0.0
        %2328 = vmatmul.mubr.f32.gmra.mxu0 %v1630
        %v2329 = vpop.f32.mrf.mxu0
        %v2330 = vadd.f32 0.0, %v2329
        %v2331 = vpop.f32.mrf.mxu0
        %2332 = vmatprep.mubr.f32.mxu0 0.0
        %2333 = vmatmul.mubr.f32.gmra.mxu0 %v1633
        %v2334 = vpop.f32.mrf.mxu0
        %v2335 = vadd.f32 0.0, %v2334
        %v2336 = vpop.f32.mrf.mxu0
        %2337 = vmatprep.mubr.f32.mxu0 0.0
        %2338 = vmatmul.mubr.f32.gmra.mxu0 %v1636
        %v2339 = vpop.f32.mrf.mxu0
        %v2340 = vadd.f32 0.0, %v2339
        %v2341 = vpop.f32.mrf.mxu0
        %2342 = vmatprep.mubr.f32.mxu0 0.0
        %2343 = vmatmul.mubr.f32.gmra.mxu0 %v1639
        %v2344 = vpop.f32.mrf.mxu0
        %v2345 = vadd.f32 0.0, %v2344
        %v2346 = vpop.f32.mrf.mxu0
        %2347 = vmatprep.mubr.f32.mxu0 0.0
        %2348 = vmatmul.mubr.f32.gmra.mxu0 %v1642
        %v2349 = vpop.f32.mrf.mxu0
        %v2350 = vadd.f32 0.0, %v2349
        %v2351 = vpop.f32.mrf.mxu0
        %2352 = vmatprep.mubr.f32.mxu0 0.0
        %2353 = vmatmul.mubr.f32.gmra.mxu0 %v1645
        %v2354 = vpop.f32.mrf.mxu0
        %v2355 = vadd.f32 0.0, %v2354
        %v2356 = vpop.f32.mrf.mxu0
        %2357 = vmatprep.mubr.f32.mxu0 0.0
        %2358 = vmatmul.mubr.f32.gmra.mxu0 %v1648
        %v2359 = vpop.f32.mrf.mxu0
        %v2360 = vadd.f32 0.0, %v2359
        %v2361 = vpop.f32.mrf.mxu0
        %2362 = vmatprep.mubr.f32.mxu0 0.0
        %2363 = vmatmul.mubr.f32.gmra.mxu0 %v1651
        %v2364 = vpop.f32.mrf.mxu0
        %v2365 = vadd.f32 0.0, %v2364
        %v2366 = vpop.f32.mrf.mxu0
        %2367 = vmatprep.mubr.f32.mxu0 0.0
        %2368 = vmatmul.mubr.f32.gmra.mxu0 %v1654
        %v2369 = vpop.f32.mrf.mxu0
        %v2370 = vadd.f32 0.0, %v2369
        %v2371 = vpop.f32.mrf.mxu0
        %2372 = vmatprep.mubr.f32.mxu0 0.0
        %2373 = vmatmul.mubr.f32.gmra.mxu0 %v1657
        %v2374 = vpop.f32.mrf.mxu0
        %v2375 = vadd.f32 0.0, %v2374
        %v2376 = vpop.f32.mrf.mxu0
        %2377 = vmatprep.mubr.f32.mxu0 0.0
        %2378 = vmatmul.mubr.f32.gmra.mxu0 %v1660
        %v2379 = vpop.f32.mrf.mxu0
        %v2380 = vadd.f32 0.0, %v2379
        %v2381 = vpop.f32.mrf.mxu0
        %2382 = vmatprep.mubr.f32.mxu0 0.0
        %2383 = vmatmul.mubr.f32.gmra.mxu0 %v1663
        %v2384 = vpop.f32.mrf.mxu0
        %v2385 = vadd.f32 0.0, %v2384
        %v2386 = vpop.f32.mrf.mxu0
        %2387 = vmatprep.mubr.f32.mxu0 0.0
        %2388 = vmatmul.mubr.f32.gmra.mxu0 %v1666
        %v2389 = vpop.f32.mrf.mxu0
        %v2390 = vadd.f32 0.0, %v2389
        %v2391 = vpop.f32.mrf.mxu0
        %2392 = vmatprep.mubr.f32.mxu0 0.0
        %2393 = vmatmul.mubr.f32.gmra.mxu0 %v1669
        %v2394 = vpop.f32.mrf.mxu0
        %v2395 = vadd.f32 0.0, %v2394
        %v2396 = vpop.f32.mrf.mxu0
        %2397 = vmatprep.mubr.f32.mxu0 0.0
        %2398 = vmatmul.mubr.f32.gmra.mxu0 %v1672
        %v2399 = vpop.f32.mrf.mxu0
        %v2400 = vadd.f32 0.0, %v2399
        %v2401 = vpop.f32.mrf.mxu0
        %2402 = vmatprep.mubr.f32.mxu0 0.0
        %2403 = vmatmul.mubr.f32.gmra.mxu0 %v1675
        %v2404 = vpop.f32.mrf.mxu0
        %v2405 = vadd.f32 0.0, %v2404
        %v2406 = vpop.f32.mrf.mxu0
        %2407 = vmatprep.mubr.f32.mxu0 0.0
        %2408 = vmatmul.mubr.f32.gmra.mxu0 %v1678
        %v2409 = vpop.f32.mrf.mxu0
        %v2410 = vadd.f32 0.0, %v2409
        %v2411 = vpop.f32.mrf.mxu0
        %2412 = vmatprep.mubr.f32.mxu0 0.0
        %2413 = vmatmul.mubr.f32.gmra.mxu0 %v1681
        %v2414 = vpop.f32.mrf.mxu0
        %v2415 = vadd.f32 0.0, %v2414
        %v2416 = vpop.f32.mrf.mxu0
        %2417 = vmatprep.mubr.f32.mxu0 0.0
        %2418 = vmatmul.mubr.f32.gmra.mxu0 %v1684
        %v2419 = vpop.f32.mrf.mxu0
        %v2420 = vadd.f32 0.0, %v2419
        %v2421 = vpop.f32.mrf.mxu0
        %2422 = vmatprep.mubr.f32.mxu0 0.0
        %2423 = vmatmul.mubr.f32.gmra.mxu0 %v1687
        %v2424 = vpop.f32.mrf.mxu0
        %v2425 = vadd.f32 0.0, %v2424
        %v2426 = vpop.f32.mrf.mxu0
        %2427 = vmatprep.mubr.f32.mxu0 0.0
        %2428 = vmatmul.mubr.f32.gmra.mxu0 %v1690
        %v2429 = vpop.f32.mrf.mxu0
        %v2430 = vadd.f32 0.0, %v2429
        %v2431 = vpop.f32.mrf.mxu0
        %2432 = vmatprep.mubr.f32.mxu0 0.0
        %2433 = vmatmul.mubr.f32.gmra.mxu0 %v1693
        %v2434 = vpop.f32.mrf.mxu0
        %v2435 = vadd.f32 0.0, %v2434
        %v2436 = vpop.f32.mrf.mxu0
        %2437 = vmatprep.mubr.f32.mxu0 0.0
        %2438 = vmatmul.mubr.f32.gmra.mxu0 %v1696
        %v2439 = vpop.f32.mrf.mxu0
        %v2440 = vadd.f32 0.0, %v2439
        %v2441 = vpop.f32.mrf.mxu0
        %2442 = vmatprep.mubr.f32.mxu0 0.0
        %2443 = vmatmul.mubr.f32.gmra.mxu0 %v1699
        %v2444 = vpop.f32.mrf.mxu0
        %v2445 = vadd.f32 0.0, %v2444
        %v2446 = vpop.f32.mrf.mxu0
        %2447 = vmatprep.mubr.f32.mxu0 0.0
        %2448 = vmatmul.mubr.f32.gmra.mxu0 %v1702
        %v2449 = vpop.f32.mrf.mxu0
        %v2450 = vadd.f32 0.0, %v2449
        %v2451 = vpop.f32.mrf.mxu0
        %2452 = vmatprep.mubr.f32.mxu0 0.0
        %2453 = vmatmul.mubr.f32.gmra.mxu0 %v1705
        %v2454 = vpop.f32.mrf.mxu0
        %v2455 = vadd.f32 0.0, %v2454
        %v2456 = vpop.f32.mrf.mxu0
        %2457 = vmatprep.mubr.f32.mxu0 0.0
        %2458 = vmatmul.mubr.f32.gmra.mxu0 %v1708
        %v2459 = vpop.f32.mrf.mxu0
        %v2460 = vadd.f32 0.0, %v2459
        %v2461 = vpop.f32.mrf.mxu0
        %2462 = vmatprep.mubr.f32.mxu0 0.0
        %2463 = vmatmul.mubr.f32.gmra.mxu0 %v1711
        %v2464 = vpop.f32.mrf.mxu0
        %v2465 = vadd.f32 0.0, %v2464
        %v2466 = vpop.f32.mrf.mxu0
        %2467 = vmatprep.mubr.f32.mxu0 0.0
        %2468 = vmatmul.mubr.f32.gmra.mxu0 %v1714
        %v2469 = vpop.f32.mrf.mxu0
        %v2470 = vadd.f32 0.0, %v2469
        %v2471 = vpop.f32.mrf.mxu0
        %2472 = vmatprep.mubr.f32.mxu0 0.0
        %2473 = vmatmul.mubr.f32.gmra.mxu0 %v1717
        %v2474 = vpop.f32.mrf.mxu0
        %v2475 = vadd.f32 0.0, %v2474
        %v2476 = vpop.f32.mrf.mxu0
        %2477 = vmatprep.mubr.f32.mxu0 0.0
        %2478 = vmatmul.mubr.f32.gmra.mxu0 %v1720
        %v2479 = vpop.f32.mrf.mxu0
        %v2480 = vadd.f32 0.0, %v2479
        %v2481 = vpop.f32.mrf.mxu0
        %2482 = vmatprep.mubr.f32.mxu0 0.0
        %2483 = vmatmul.mubr.f32.gmra.mxu0 %v1723
        %v2484 = vpop.f32.mrf.mxu0
        %v2485 = vadd.f32 0.0, %v2484
        %v2486 = vpop.f32.mrf.mxu0
        %2487 = vmatprep.mubr.f32.mxu0 0.0
        %2488 = vmatmul.mubr.f32.gmra.mxu0 %v1726
        %v2489 = vpop.f32.mrf.mxu0
        %v2490 = vadd.f32 0.0, %v2489
        %v2491 = vpop.f32.mrf.mxu0
        %2492 = vmatprep.mubr.f32.mxu0 0.0
        %2493 = vmatmul.mubr.f32.gmra.mxu0 %v1729
        %v2494 = vpop.f32.mrf.mxu0
        %v2495 = vadd.f32 0.0, %v2494
        %v2496 = vpop.f32.mrf.mxu0
        %2497 = vmatprep.mubr.f32.mxu0 0.0
        %2498 = vmatmul.mubr.f32.gmra.mxu0 %v1732
        %v2499 = vpop.f32.mrf.mxu0
        %v2500 = vadd.f32 0.0, %v2499
        %v2501 = vpop.f32.mrf.mxu0
        %2502 = vmatprep.mubr.f32.mxu0 0.0
        %2503 = vmatmul.mubr.f32.gmra.mxu0 %v1735
        %v2504 = vpop.f32.mrf.mxu0
        %v2505 = vadd.f32 0.0, %v2504
        %v2506 = vpop.f32.mrf.mxu0
        %2507 = vmatprep.mubr.f32.mxu0 0.0
        %2508 = vmatmul.mubr.f32.gmra.mxu0 %v1738
        %v2509 = vpop.f32.mrf.mxu0
        %v2510 = vadd.f32 0.0, %v2509
        %v2511 = vpop.f32.mrf.mxu0
        %2512 = vmatprep.mubr.f32.mxu0 0.0
        %2513 = vmatmul.mubr.f32.gmra.mxu0 %v1741
        %v2514 = vpop.f32.mrf.mxu0
        %v2515 = vadd.f32 0.0, %v2514
        %v2516 = vpop.f32.mrf.mxu0
        %2517 = vmatprep.mubr.f32.mxu0 0.0
        %2518 = vmatmul.mubr.f32.gmra.mxu0 %v1744
        %v2519 = vpop.f32.mrf.mxu0
        %v2520 = vadd.f32 0.0, %v2519
        %v2521 = vpop.f32.mrf.mxu0
        %2522 = vmatprep.mubr.f32.mxu0 0.0
        %2523 = vmatmul.mubr.f32.gmra.mxu0 %v1747
        %v2524 = vpop.f32.mrf.mxu0
        %v2525 = vadd.f32 0.0, %v2524
        %v2526 = vpop.f32.mrf.mxu0
        %2527 = vmatprep.mubr.f32.mxu0 0.0
        %2528 = vmatmul.mubr.f32.gmra.mxu0 %v1750
        %v2529 = vpop.f32.mrf.mxu0
        %v2530 = vadd.f32 0.0, %v2529
        %v2531 = vpop.f32.mrf.mxu0
        %2532 = vmatprep.mubr.f32.mxu0 0.0
        %2533 = vmatmul.mubr.f32.gmra.mxu0 %v1753
        %v2534 = vpop.f32.mrf.mxu0
        %v2535 = vadd.f32 0.0, %v2534
        %v2536 = vpop.f32.mrf.mxu0
        %2537 = vmatprep.mubr.f32.mxu0 0.0
        %2538 = vmatmul.mubr.f32.gmra.mxu0 %v1756
        %v2539 = vpop.f32.mrf.mxu0
        %v2540 = vadd.f32 0.0, %v2539
        %v2541 = vpop.f32.mrf.mxu0
        %2542 = vmatprep.mubr.f32.mxu0 0.0
        %2543 = vmatmul.mubr.f32.gmra.mxu0 %v1759
        %v2544 = vpop.f32.mrf.mxu0
        %v2545 = vadd.f32 0.0, %v2544
        %v2546 = vpop.f32.mrf.mxu0
        %2547 = vmatprep.mubr.f32.mxu0 0.0
        %2548 = vmatmul.mubr.f32.gmra.mxu0 %v1762
        %v2549 = vpop.f32.mrf.mxu0
        %v2550 = vadd.f32 0.0, %v2549
        %v2551 = vpop.f32.mrf.mxu0
        %2552 = vmatprep.mubr.f32.mxu0 0.0
        %2553 = vmatmul.mubr.f32.gmra.mxu0 %v1765
        %v2554 = vpop.f32.mrf.mxu0
        %v2555 = vadd.f32 0.0, %v2554
        %v2556 = vpop.f32.mrf.mxu0
        %2557 = vmatprep.mubr.f32.mxu0 0.0
        %2558 = vmatmul.mubr.f32.gmra.mxu0 %v1768
        %v2559 = vpop.f32.mrf.mxu0
        %v2560 = vadd.f32 0.0, %v2559
        %v2561 = vpop.f32.mrf.mxu0
        %2562 = vmatprep.mubr.f32.mxu0 0.0
        %2563 = vmatmul.mubr.f32.gmra.mxu0 %v1771
        %v2564 = vpop.f32.mrf.mxu0
        %v2565 = vadd.f32 0.0, %v2564
        %v2566 = vpop.f32.mrf.mxu0
        %2567 = vmatprep.mubr.f32.mxu0 0.0
        %2568 = vmatmul.mubr.f32.gmra.mxu0 %v1774
        %v2569 = vpop.f32.mrf.mxu0
        %v2570 = vadd.f32 0.0, %v2569
        %v2571 = vpop.f32.mrf.mxu0
        %2572 = vmatprep.mubr.f32.mxu0 0.0
        %2573 = vmatmul.mubr.f32.gmra.mxu0 %v1777
        %v2574 = vpop.f32.mrf.mxu0
        %v2575 = vadd.f32 0.0, %v2574
        %v2576 = vpop.f32.mrf.mxu0
        %2577 = vmatprep.mubr.f32.mxu0 0.0
        %2578 = vmatmul.mubr.f32.gmra.mxu0 %v1780
        %v2579 = vpop.f32.mrf.mxu0
        %v2580 = vadd.f32 0.0, %v2579
        %v2581 = vpop.f32.mrf.mxu0
        %2582 = vmatprep.mubr.f32.mxu0 0.0
        %2583 = vmatmul.mubr.f32.gmra.mxu0 %v1783
        %v2584 = vpop.f32.mrf.mxu0
        %v2585 = vadd.f32 0.0, %v2584
        %v2586 = vpop.f32.mrf.mxu0
        %2587 = vmatprep.mubr.f32.mxu0 0.0
        %2588 = vmatmul.mubr.f32.gmra.mxu0 %v1786
        %v2589 = vpop.f32.mrf.mxu0
        %v2590 = vadd.f32 0.0, %v2589
        %v2591 = vpop.f32.mrf.mxu0
        %2592 = vmatprep.mubr.f32.mxu0 0.0
        %2593 = vmatmul.mubr.f32.gmra.mxu0 %v1789
        %v2594 = vpop.f32.mrf.mxu0
        %v2595 = vadd.f32 0.0, %v2594
        %v2596 = vpop.f32.mrf.mxu0
        %2597 = vmatprep.mubr.f32.mxu0 0.0
        %2598 = vmatmul.mubr.f32.gmra.mxu0 %v1792
        %v2599 = vpop.f32.mrf.mxu0
        %v2600 = vadd.f32 0.0, %v2599
        %v2601 = vpop.f32.mrf.mxu0
        %2602 = vmatprep.mubr.f32.mxu0 0.0
        %2603 = vmatmul.mubr.f32.gmra.mxu0 %v1795
        %v2604 = vpop.f32.mrf.mxu0
        %v2605 = vadd.f32 0.0, %v2604
        %v2606 = vpop.f32.mrf.mxu0
        %2607 = vmatprep.mubr.f32.mxu0 0.0
        %2608 = vmatmul.mubr.f32.gmra.mxu0 %v1798
        %v2609 = vpop.f32.mrf.mxu0
        %v2610 = vadd.f32 0.0, %v2609
        %v2611 = vpop.f32.mrf.mxu0
        %2612 = vmatprep.mubr.f32.mxu0 0.0
        %2613 = vmatmul.mubr.f32.gmra.mxu0 %v1801
        %v2614 = vpop.f32.mrf.mxu0
        %v2615 = vadd.f32 0.0, %v2614
        %v2616 = vpop.f32.mrf.mxu0
        %2617 = vmatprep.mubr.f32.mxu0 0.0
        %2618 = vmatmul.mubr.f32.gmra.mxu0 %v1804
        %v2619 = vpop.f32.mrf.mxu0
        %v2620 = vadd.f32 0.0, %v2619
        %v2621 = vpop.f32.mrf.mxu0
        %2622 = vmatprep.mubr.f32.mxu0 0.0
        %2623 = vmatmul.mubr.f32.gmra.mxu0 %v1807
        %v2624 = vpop.f32.mrf.mxu0
        %v2625 = vadd.f32 0.0, %v2624
        %v2626 = vpop.f32.mrf.mxu0
        %2627 = vmatprep.mubr.f32.mxu0 0.0
        %2628 = vmatmul.mubr.f32.gmra.mxu0 %v1810
        %v2629 = vpop.f32.mrf.mxu0
        %v2630 = vadd.f32 0.0, %v2629
        %v2631 = vpop.f32.mrf.mxu0
        %2632 = vmatprep.mubr.f32.mxu0 0.0
        %2633 = vmatmul.mubr.f32.gmra.mxu0 %v1813
        %v2634 = vpop.f32.mrf.mxu0
        %v2635 = vadd.f32 0.0, %v2634
        %v2636 = vpop.f32.mrf.mxu0
        %2637 = vmatprep.mubr.f32.mxu0 0.0
        %2638 = vmatmul.mubr.f32.gmra.mxu0 %v1816
        %v2639 = vpop.f32.mrf.mxu0
        %v2640 = vadd.f32 0.0, %v2639
        %v2641 = vpop.f32.mrf.mxu0
        %2642 = vmatprep.mubr.f32.mxu0 0.0
        %2643 = vmatmul.mubr.f32.gmra.mxu0 %v1819
        %v2644 = vpop.f32.mrf.mxu0
        %v2645 = vadd.f32 0.0, %v2644
        %v2646 = vpop.f32.mrf.mxu0
        %2647 = vmatprep.mubr.f32.mxu0 0.0
        %2648 = vmatmul.mubr.f32.gmra.mxu0 %v1822
        %v2649 = vpop.f32.mrf.mxu0
        %v2650 = vadd.f32 0.0, %v2649
        %v2651 = vpop.f32.mrf.mxu0
        %2652 = vmatprep.mubr.f32.mxu0 0.0
        %2653 = vmatmul.mubr.f32.gmra.mxu0 %v1825
        %v2654 = vpop.f32.mrf.mxu0
        %v2655 = vadd.f32 0.0, %v2654
        %v2656 = vpop.f32.mrf.mxu0
        %2657 = vmatprep.mubr.f32.mxu0 0.0
        %2658 = vmatmul.mubr.f32.gmra.mxu0 %v1828
        %v2659 = vpop.f32.mrf.mxu0
        %v2660 = vadd.f32 0.0, %v2659
        %v2661 = vpop.f32.mrf.mxu0
        %2662 = vmatprep.mubr.f32.mxu0 0.0
        %2663 = vmatmul.mubr.f32.gmra.mxu0 %v1831
        %v2664 = vpop.f32.mrf.mxu0
        %v2665 = vadd.f32 0.0, %v2664
        %v2666 = vpop.f32.mrf.mxu0
        %2667 = vmatprep.mubr.f32.mxu0 0.0
        %2668 = vmatmul.mubr.f32.gmra.mxu0 %v1834
        %v2669 = vpop.f32.mrf.mxu0
        %v2670 = vadd.f32 0.0, %v2669
        %v2671 = vpop.f32.mrf.mxu0
        %2672 = vmatprep.mubr.f32.mxu0 0.0
        %2673 = vmatmul.mubr.f32.gmra.mxu0 %v1837
        %v2674 = vpop.f32.mrf.mxu0
        %v2675 = vadd.f32 0.0, %v2674
        %v2676 = vpop.f32.mrf.mxu0
        %2677 = vmatprep.mubr.f32.mxu0 0.0
        %2678 = vmatmul.mubr.f32.gmra.mxu0 %v1840
        %v2679 = vpop.f32.mrf.mxu0
        %v2680 = vadd.f32 0.0, %v2679
        %v2681 = vpop.f32.mrf.mxu0
        %2682 = vmatprep.mubr.f32.mxu0 0.0
        %2683 = vmatmul.mubr.f32.gmra.mxu0 %v1843
        %v2684 = vpop.f32.mrf.mxu0
        %v2685 = vadd.f32 0.0, %v2684
        %v2686 = vpop.f32.mrf.mxu0
        %2687 = vmatprep.mubr.f32.mxu0 0.0
        %2688 = vmatmul.mubr.f32.gmra.mxu0 %v1846
        %v2689 = vpop.f32.mrf.mxu0
        %v2690 = vadd.f32 0.0, %v2689
        %v2691 = vpop.f32.mrf.mxu0
        %2692 = vmatprep.mubr.f32.mxu0 0.0
        %2693 = vmatmul.mubr.f32.gmra.mxu0 %v1849
        %v2694 = vpop.f32.mrf.mxu0
        %v2695 = vadd.f32 0.0, %v2694
        %v2696 = vpop.f32.mrf.mxu0
        %2697 = vmatprep.mubr.f32.mxu0 0.0
        %2698 = vmatmul.mubr.f32.gmra.mxu0 %v1852
        %v2699 = vpop.f32.mrf.mxu0
        %v2700 = vadd.f32 0.0, %v2699
        %v2701 = vpop.f32.mrf.mxu0
        %2702 = vmatprep.mubr.f32.mxu0 0.0
        %2703 = vmatmul.mubr.f32.gmra.mxu0 %v1855
        %v2704 = vpop.f32.mrf.mxu0
        %v2705 = vadd.f32 0.0, %v2704
        %v2706 = vpop.f32.mrf.mxu0
        %2707 = vmatprep.mubr.f32.mxu0 0.0
        %2708 = vmatmul.mubr.f32.gmra.mxu0 %v1858
        %v2709 = vpop.f32.mrf.mxu0
        %v2710 = vadd.f32 0.0, %v2709
        %v2711 = vpop.f32.mrf.mxu0
        %2712 = vmatprep.mubr.f32.mxu0 0.0
        %2713 = vmatmul.mubr.f32.gmra.mxu0 %v1861
        %v2714 = vpop.f32.mrf.mxu0
        %v2715 = vadd.f32 0.0, %v2714
        %v2716 = vpop.f32.mrf.mxu0
        %2717 = vmatprep.mubr.f32.mxu0 0.0
        %2718 = vmatmul.mubr.f32.gmra.mxu0 %v1864
        %v2719 = vpop.f32.mrf.mxu0
        %v2720 = vadd.f32 0.0, %v2719
        %v2721 = vpop.f32.mrf.mxu0
        %2722 = vmatprep.mubr.f32.mxu0 0.0
        %2723 = vmatmul.mubr.f32.gmra.mxu0 %v1867
        %v2724 = vpop.f32.mrf.mxu0
        %v2725 = vadd.f32 0.0, %v2724
        %v2726 = vpop.f32.mrf.mxu0
        %2727 = vmatprep.mubr.f32.mxu0 0.0
        %2728 = vmatmul.mubr.f32.gmra.mxu0 %v1870
        %v2729 = vpop.f32.mrf.mxu0
        %v2730 = vadd.f32 0.0, %v2729
        %v2731 = vpop.f32.mrf.mxu0
        %2732 = vmatprep.mubr.f32.mxu0 0.0
        %2733 = vmatmul.mubr.f32.gmra.mxu0 %v1873
        %v2734 = vpop.f32.mrf.mxu0
        %v2735 = vadd.f32 0.0, %v2734
        %v2736 = vpop.f32.mrf.mxu0
        %2737 = vmatprep.mubr.f32.mxu0 0.0
        %2738 = vmatmul.mubr.f32.gmra.mxu0 %v1876
        %v2739 = vpop.f32.mrf.mxu0
        %v2740 = vadd.f32 0.0, %v2739
        %v2741 = vpop.f32.mrf.mxu0
        %2742 = vdwg.mxu0
        %v2747 = vcombine.high %v632, %v632
        %v2749 = vunpack.c.l.s4 1966171168
        %v2750 = vunpack.c.0.s8 %v2749
        %v2751 = vlaneseq
        %v2752 = vshrl.u32 %v2751, 7
        %v2753 = vsub.s32 %v2750, %v2752
        %v2754 = vrot.slane %v632, %v2753
        %v2756 = vunpack.c.l.s4 1966171168
        %v2757 = vunpack.c.0.s8 %v2756
        %v2758 = vlaneseq
        %v2759 = vshrl.u32 %v2758, 7
        %v2760 = vsub.s32 %v2757, %v2759
        %v2761 = vrot.slane %v2747, %v2760
        %v2762 = vcombine.high %v2754, %v2754
        %v2763 = vcombine.high %v2761, %v2761
        %v2765 = vunpack.c.l.s4 1966171168
        %v2766 = vunpack.c.0.s8 %v2765
        %v2767 = vlaneseq
        %v2768 = vshrl.u32 %v2767, 7
        %v2769 = vsub.s32 %v2766, %v2768
        %v2770 = vrot.slane %v2754, %v2769
        %v2772 = vunpack.c.l.s4 1966171168
        %v2773 = vunpack.c.0.s8 %v2772
        %v2774 = vlaneseq
        %v2775 = vshrl.u32 %v2774, 7
        %v2776 = vsub.s32 %v2773, %v2775
        %v2777 = vrot.slane %v2761, %v2776
        %v2779 = vunpack.c.l.s4 1966171168
        %v2780 = vunpack.c.0.s8 %v2779
        %v2781 = vlaneseq
        %v2782 = vshrl.u32 %v2781, 7
        %v2783 = vsub.s32 %v2780, %v2782
        %v2784 = vrot.slane %v2762, %v2783
        %v2786 = vunpack.c.l.s4 1966171168
        %v2787 = vunpack.c.0.s8 %v2786
        %v2788 = vlaneseq
        %v2789 = vshrl.u32 %v2788, 7
        %v2790 = vsub.s32 %v2787, %v2789
        %v2791 = vrot.slane %v2763, %v2790
        %v2792 = vcombine.high %v2770, %v2770
        %v2793 = vcombine.high %v2777, %v2777
        %v2794 = vcombine.high %v2784, %v2784
        %v2795 = vcombine.high %v2791, %v2791
        %v2796 = vcombine.high %v633, %v633
        %v2798 = vunpack.c.l.s4 1966171168
        %v2799 = vunpack.c.0.s8 %v2798
        %v2800 = vlaneseq
        %v2801 = vshrl.u32 %v2800, 7
        %v2802 = vsub.s32 %v2799, %v2801
        %v2803 = vrot.slane %v633, %v2802
        %v2805 = vunpack.c.l.s4 1966171168
        %v2806 = vunpack.c.0.s8 %v2805
        %v2807 = vlaneseq
        %v2808 = vshrl.u32 %v2807, 7
        %v2809 = vsub.s32 %v2806, %v2808
        %v2810 = vrot.slane %v2796, %v2809
        %v2811 = vcombine.high %v2803, %v2803
        %v2812 = vcombine.high %v2810, %v2810
        %v2814 = vunpack.c.l.s4 1966171168
        %v2815 = vunpack.c.0.s8 %v2814
        %v2816 = vlaneseq
        %v2817 = vshrl.u32 %v2816, 7
        %v2818 = vsub.s32 %v2815, %v2817
        %v2819 = vrot.slane %v2803, %v2818
        %v2821 = vunpack.c.l.s4 1966171168
        %v2822 = vunpack.c.0.s8 %v2821
        %v2823 = vlaneseq
        %v2824 = vshrl.u32 %v2823, 7
        %v2825 = vsub.s32 %v2822, %v2824
        %v2826 = vrot.slane %v2810, %v2825
        %v2828 = vunpack.c.l.s4 1966171168
        %v2829 = vunpack.c.0.s8 %v2828
        %v2830 = vlaneseq
        %v2831 = vshrl.u32 %v2830, 7
        %v2832 = vsub.s32 %v2829, %v2831
        %v2833 = vrot.slane %v2811, %v2832
        %v2835 = vunpack.c.l.s4 1966171168
        %v2836 = vunpack.c.0.s8 %v2835
        %v2837 = vlaneseq
        %v2838 = vshrl.u32 %v2837, 7
        %v2839 = vsub.s32 %v2836, %v2838
        %v2840 = vrot.slane %v2812, %v2839
        %v2841 = vcombine.high %v2819, %v2819
        %v2842 = vcombine.high %v2826, %v2826
        %v2843 = vcombine.high %v2833, %v2833
        %v2844 = vcombine.high %v2840, %v2840
        %v2845 = vcombine.high %v634, %v634
        %v2847 = vunpack.c.l.s4 1966171168
        %v2848 = vunpack.c.0.s8 %v2847
        %v2849 = vlaneseq
        %v2850 = vshrl.u32 %v2849, 7
        %v2851 = vsub.s32 %v2848, %v2850
        %v2852 = vrot.slane %v634, %v2851
        %v2854 = vunpack.c.l.s4 1966171168
        %v2855 = vunpack.c.0.s8 %v2854
        %v2856 = vlaneseq
        %v2857 = vshrl.u32 %v2856, 7
        %v2858 = vsub.s32 %v2855, %v2857
        %v2859 = vrot.slane %v2845, %v2858
        %v2860 = vcombine.high %v2852, %v2852
        %v2861 = vcombine.high %v2859, %v2859
        %v2863 = vunpack.c.l.s4 1966171168
        %v2864 = vunpack.c.0.s8 %v2863
        %v2865 = vlaneseq
        %v2866 = vshrl.u32 %v2865, 7
        %v2867 = vsub.s32 %v2864, %v2866
        %v2868 = vrot.slane %v2852, %v2867
        %v2870 = vunpack.c.l.s4 1966171168
        %v2871 = vunpack.c.0.s8 %v2870
        %v2872 = vlaneseq
        %v2873 = vshrl.u32 %v2872, 7
        %v2874 = vsub.s32 %v2871, %v2873
        %v2875 = vrot.slane %v2859, %v2874
        %v2877 = vunpack.c.l.s4 1966171168
        %v2878 = vunpack.c.0.s8 %v2877
        %v2879 = vlaneseq
        %v2880 = vshrl.u32 %v2879, 7
        %v2881 = vsub.s32 %v2878, %v2880
        %v2882 = vrot.slane %v2860, %v2881
        %v2884 = vunpack.c.l.s4 1966171168
        %v2885 = vunpack.c.0.s8 %v2884
        %v2886 = vlaneseq
        %v2887 = vshrl.u32 %v2886, 7
        %v2888 = vsub.s32 %v2885, %v2887
        %v2889 = vrot.slane %v2861, %v2888
        %v2890 = vcombine.high %v2868, %v2868
        %v2891 = vcombine.high %v2875, %v2875
        %v2892 = vcombine.high %v2882, %v2882
        %v2893 = vcombine.high %v2889, %v2889
        %v2894 = vcombine.high %v635, %v635
        %v2896 = vunpack.c.l.s4 1966171168
        %v2897 = vunpack.c.0.s8 %v2896
        %v2898 = vlaneseq
        %v2899 = vshrl.u32 %v2898, 7
        %v2900 = vsub.s32 %v2897, %v2899
        %v2901 = vrot.slane %v635, %v2900
        %v2903 = vunpack.c.l.s4 1966171168
        %v2904 = vunpack.c.0.s8 %v2903
        %v2905 = vlaneseq
        %v2906 = vshrl.u32 %v2905, 7
        %v2907 = vsub.s32 %v2904, %v2906
        %v2908 = vrot.slane %v2894, %v2907
        %v2909 = vcombine.high %v2901, %v2901
        %v2910 = vcombine.high %v2908, %v2908
        %v2912 = vunpack.c.l.s4 1966171168
        %v2913 = vunpack.c.0.s8 %v2912
        %v2914 = vlaneseq
        %v2915 = vshrl.u32 %v2914, 7
        %v2916 = vsub.s32 %v2913, %v2915
        %v2917 = vrot.slane %v2901, %v2916
        %v2919 = vunpack.c.l.s4 1966171168
        %v2920 = vunpack.c.0.s8 %v2919
        %v2921 = vlaneseq
        %v2922 = vshrl.u32 %v2921, 7
        %v2923 = vsub.s32 %v2920, %v2922
        %v2924 = vrot.slane %v2908, %v2923
        %v2926 = vunpack.c.l.s4 1966171168
        %v2927 = vunpack.c.0.s8 %v2926
        %v2928 = vlaneseq
        %v2929 = vshrl.u32 %v2928, 7
        %v2930 = vsub.s32 %v2927, %v2929
        %v2931 = vrot.slane %v2909, %v2930
        %v2933 = vunpack.c.l.s4 1966171168
        %v2934 = vunpack.c.0.s8 %v2933
        %v2935 = vlaneseq
        %v2936 = vshrl.u32 %v2935, 7
        %v2937 = vsub.s32 %v2934, %v2936
        %v2938 = vrot.slane %v2910, %v2937
        %v2939 = vcombine.high %v2917, %v2917
        %v2940 = vcombine.high %v2924, %v2924
        %v2941 = vcombine.high %v2931, %v2931
        %v2942 = vcombine.high %v2938, %v2938
        %v2943 = vlaneseq
        %v2944 = vshrl.u32 %v2943, 7
        %v2945 = vsub.s32 0, %v2944
        %v2946 = vrot.slane %v2770, %v2945
        %v2947 = vlaneseq
        %v2948 = vshrl.u32 %v2947, 7
        %v2949 = vsub.s32 0, %v2948
        %v2950 = vrot.slane %v2784, %v2949
        %v2951 = vlaneseq
        %v2952 = vshrl.u32 %v2951, 7
        %v2953 = vsub.s32 0, %v2952
        %v2954 = vrot.slane %v2792, %v2953
        %v2955 = vlaneseq
        %v2956 = vshrl.u32 %v2955, 7
        %v2957 = vsub.s32 0, %v2956
        %v2958 = vrot.slane %v2794, %v2957
        %v2959 = vlaneseq
        %v2960 = vshrl.u32 %v2959, 7
        %v2961 = vsub.s32 0, %v2960
        %v2962 = vrot.slane %v2777, %v2961
        %v2963 = vlaneseq
        %v2964 = vshrl.u32 %v2963, 7
        %v2965 = vsub.s32 0, %v2964
        %v2966 = vrot.slane %v2791, %v2965
        %v2967 = vlaneseq
        %v2968 = vshrl.u32 %v2967, 7
        %v2969 = vsub.s32 0, %v2968
        %v2970 = vrot.slane %v2793, %v2969
        %v2971 = vlaneseq
        %v2972 = vshrl.u32 %v2971, 7
        %v2973 = vsub.s32 0, %v2972
        %v2974 = vrot.slane %v2795, %v2973
        %v2975 = vlaneseq
        %v2976 = vshrl.u32 %v2975, 7
        %v2977 = vsub.s32 0, %v2976
        %v2978 = vrot.slane %v2819, %v2977
        %v2979 = vlaneseq
        %v2980 = vshrl.u32 %v2979, 7
        %v2981 = vsub.s32 0, %v2980
        %v2982 = vrot.slane %v2833, %v2981
        %v2983 = vlaneseq
        %v2984 = vshrl.u32 %v2983, 7
        %v2985 = vsub.s32 0, %v2984
        %v2986 = vrot.slane %v2841, %v2985
        %v2987 = vlaneseq
        %v2988 = vshrl.u32 %v2987, 7
        %v2989 = vsub.s32 0, %v2988
        %v2990 = vrot.slane %v2843, %v2989
        %v2991 = vlaneseq
        %v2992 = vshrl.u32 %v2991, 7
        %v2993 = vsub.s32 0, %v2992
        %v2994 = vrot.slane %v2826, %v2993
        %v2995 = vlaneseq
        %v2996 = vshrl.u32 %v2995, 7
        %v2997 = vsub.s32 0, %v2996
        %v2998 = vrot.slane %v2840, %v2997
        %v2999 = vlaneseq
        %v3000 = vshrl.u32 %v2999, 7
        %v3001 = vsub.s32 0, %v3000
        %v3002 = vrot.slane %v2842, %v3001
        %v3003 = vlaneseq
        %v3004 = vshrl.u32 %v3003, 7
        %v3005 = vsub.s32 0, %v3004
        %v3006 = vrot.slane %v2844, %v3005
        %v3007 = vlaneseq
        %v3008 = vshrl.u32 %v3007, 7
        %v3009 = vsub.s32 0, %v3008
        %v3010 = vrot.slane %v2868, %v3009
        %v3011 = vlaneseq
        %v3012 = vshrl.u32 %v3011, 7
        %v3013 = vsub.s32 0, %v3012
        %v3014 = vrot.slane %v2882, %v3013
        %v3015 = vlaneseq
        %v3016 = vshrl.u32 %v3015, 7
        %v3017 = vsub.s32 0, %v3016
        %v3018 = vrot.slane %v2890, %v3017
        %v3019 = vlaneseq
        %v3020 = vshrl.u32 %v3019, 7
        %v3021 = vsub.s32 0, %v3020
        %v3022 = vrot.slane %v2892, %v3021
        %v3023 = vlaneseq
        %v3024 = vshrl.u32 %v3023, 7
        %v3025 = vsub.s32 0, %v3024
        %v3026 = vrot.slane %v2875, %v3025
        %v3027 = vlaneseq
        %v3028 = vshrl.u32 %v3027, 7
        %v3029 = vsub.s32 0, %v3028
        %v3030 = vrot.slane %v2889, %v3029
        %v3031 = vlaneseq
        %v3032 = vshrl.u32 %v3031, 7
        %v3033 = vsub.s32 0, %v3032
        %v3034 = vrot.slane %v2891, %v3033
        %v3035 = vlaneseq
        %v3036 = vshrl.u32 %v3035, 7
        %v3037 = vsub.s32 0, %v3036
        %v3038 = vrot.slane %v2893, %v3037
        %v3039 = vlaneseq
        %v3040 = vshrl.u32 %v3039, 7
        %v3041 = vsub.s32 0, %v3040
        %v3042 = vrot.slane %v2917, %v3041
        %v3043 = vlaneseq
        %v3044 = vshrl.u32 %v3043, 7
        %v3045 = vsub.s32 0, %v3044
        %v3046 = vrot.slane %v2931, %v3045
        %v3047 = vlaneseq
        %v3048 = vshrl.u32 %v3047, 7
        %v3049 = vsub.s32 0, %v3048
        %v3050 = vrot.slane %v2939, %v3049
        %v3051 = vlaneseq
        %v3052 = vshrl.u32 %v3051, 7
        %v3053 = vsub.s32 0, %v3052
        %v3054 = vrot.slane %v2941, %v3053
        %v3055 = vlaneseq
        %v3056 = vshrl.u32 %v3055, 7
        %v3057 = vsub.s32 0, %v3056
        %v3058 = vrot.slane %v2924, %v3057
        %v3059 = vlaneseq
        %v3060 = vshrl.u32 %v3059, 7
        %v3061 = vsub.s32 0, %v3060
        %v3062 = vrot.slane %v2938, %v3061
        %v3063 = vlaneseq
        %v3064 = vshrl.u32 %v3063, 7
        %v3065 = vsub.s32 0, %v3064
        %v3066 = vrot.slane %v2940, %v3065
        %v3067 = vlaneseq
        %v3068 = vshrl.u32 %v3067, 7
        %v3069 = vsub.s32 0, %v3068
        %v3070 = vrot.slane %v2942, %v3069
        %v3103 = vmul.f32 %v1945, %v2946
        %v3104 = vmul.f32 %v1950, %v2946
        %v3105 = vmul.f32 %v1955, %v2946
        %v3106 = vmul.f32 %v1960, %v2946
        %v3107 = vmul.f32 %v1965, %v2946
        %v3108 = vmul.f32 %v1970, %v2950
        %v3109 = vmul.f32 %v1975, %v2950
        %v3110 = vmul.f32 %v1980, %v2950
        %v3111 = vmul.f32 %v1985, %v2950
        %v3112 = vmul.f32 %v1990, %v2950
        %v3113 = vmul.f32 %v1995, %v2954
        %v3114 = vmul.f32 %v2000, %v2954
        %v3115 = vmul.f32 %v2005, %v2954
        %v3116 = vmul.f32 %v2010, %v2954
        %v3117 = vmul.f32 %v2015, %v2954
        %v3118 = vmul.f32 %v2020, %v2958
        %v3119 = vmul.f32 %v2025, %v2958
        %v3120 = vmul.f32 %v2030, %v2958
        %v3121 = vmul.f32 %v2035, %v2958
        %v3122 = vmul.f32 %v2040, %v2958
        %v3123 = vmul.f32 %v2045, %v2962
        %v3124 = vmul.f32 %v2050, %v2962
        %v3125 = vmul.f32 %v2055, %v2962
        %v3126 = vmul.f32 %v2060, %v2962
        %v3127 = vmul.f32 %v2065, %v2962
        %v3128 = vmul.f32 %v2070, %v2966
        %v3129 = vmul.f32 %v2075, %v2966
        %v3130 = vmul.f32 %v2080, %v2966
        %v3131 = vmul.f32 %v2085, %v2966
        %v3132 = vmul.f32 %v2090, %v2966
        %v3133 = vmul.f32 %v2095, %v2970
        %v3134 = vmul.f32 %v2100, %v2970
        %v3135 = vmul.f32 %v2105, %v2970
        %v3136 = vmul.f32 %v2110, %v2970
        %v3137 = vmul.f32 %v2115, %v2970
        %v3138 = vmul.f32 %v2120, %v2974
        %v3139 = vmul.f32 %v2125, %v2974
        %v3140 = vmul.f32 %v2130, %v2974
        %v3141 = vmul.f32 %v2135, %v2974
        %v3142 = vmul.f32 %v2140, %v2974
        %v3143 = vmul.f32 %v2145, %v2978
        %v3144 = vmul.f32 %v2150, %v2978
        %v3145 = vmul.f32 %v2155, %v2978
        %v3146 = vmul.f32 %v2160, %v2978
        %v3147 = vmul.f32 %v2165, %v2978
        %v3148 = vmul.f32 %v2170, %v2982
        %v3149 = vmul.f32 %v2175, %v2982
        %v3150 = vmul.f32 %v2180, %v2982
        %v3151 = vmul.f32 %v2185, %v2982
        %v3152 = vmul.f32 %v2190, %v2982
        %v3153 = vmul.f32 %v2195, %v2986
        %v3154 = vmul.f32 %v2200, %v2986
        %v3155 = vmul.f32 %v2205, %v2986
        %v3156 = vmul.f32 %v2210, %v2986
        %v3157 = vmul.f32 %v2215, %v2986
        %v3158 = vmul.f32 %v2220, %v2990
        %v3159 = vmul.f32 %v2225, %v2990
        %v3160 = vmul.f32 %v2230, %v2990
        %v3161 = vmul.f32 %v2235, %v2990
        %v3162 = vmul.f32 %v2240, %v2990
        %v3163 = vmul.f32 %v2245, %v2994
        %v3164 = vmul.f32 %v2250, %v2994
        %v3165 = vmul.f32 %v2255, %v2994
        %v3166 = vmul.f32 %v2260, %v2994
        %v3167 = vmul.f32 %v2265, %v2994
        %v3168 = vmul.f32 %v2270, %v2998
        %v3169 = vmul.f32 %v2275, %v2998
        %v3170 = vmul.f32 %v2280, %v2998
        %v3171 = vmul.f32 %v2285, %v2998
        %v3172 = vmul.f32 %v2290, %v2998
        %v3173 = vmul.f32 %v2295, %v3002
        %v3174 = vmul.f32 %v2300, %v3002
        %v3175 = vmul.f32 %v2305, %v3002
        %v3176 = vmul.f32 %v2310, %v3002
        %v3177 = vmul.f32 %v2315, %v3002
        %v3178 = vmul.f32 %v2320, %v3006
        %v3179 = vmul.f32 %v2325, %v3006
        %v3180 = vmul.f32 %v2330, %v3006
        %v3181 = vmul.f32 %v2335, %v3006
        %v3182 = vmul.f32 %v2340, %v3006
        %v3183 = vmul.f32 %v2345, %v3010
        %v3184 = vmul.f32 %v2350, %v3010
        %v3185 = vmul.f32 %v2355, %v3010
        %v3186 = vmul.f32 %v2360, %v3010
        %v3187 = vmul.f32 %v2365, %v3010
        %v3188 = vmul.f32 %v2370, %v3014
        %v3189 = vmul.f32 %v2375, %v3014
        %v3190 = vmul.f32 %v2380, %v3014
        %v3191 = vmul.f32 %v2385, %v3014
        %v3192 = vmul.f32 %v2390, %v3014
        %v3193 = vmul.f32 %v2395, %v3018
        %v3194 = vmul.f32 %v2400, %v3018
        %v3195 = vmul.f32 %v2405, %v3018
        %v3196 = vmul.f32 %v2410, %v3018
        %v3197 = vmul.f32 %v2415, %v3018
        %v3198 = vmul.f32 %v2420, %v3022
        %v3199 = vmul.f32 %v2425, %v3022
        %v3200 = vmul.f32 %v2430, %v3022
        %v3201 = vmul.f32 %v2435, %v3022
        %v3202 = vmul.f32 %v2440, %v3022
        %v3203 = vmul.f32 %v2445, %v3026
        %v3204 = vmul.f32 %v2450, %v3026
        %v3205 = vmul.f32 %v2455, %v3026
        %v3206 = vmul.f32 %v2460, %v3026
        %v3207 = vmul.f32 %v2465, %v3026
        %v3208 = vmul.f32 %v2470, %v3030
        %v3209 = vmul.f32 %v2475, %v3030
        %v3210 = vmul.f32 %v2480, %v3030
        %v3211 = vmul.f32 %v2485, %v3030
        %v3212 = vmul.f32 %v2490, %v3030
        %v3213 = vmul.f32 %v2495, %v3034
        %v3214 = vmul.f32 %v2500, %v3034
        %v3215 = vmul.f32 %v2505, %v3034
        %v3216 = vmul.f32 %v2510, %v3034
        %v3217 = vmul.f32 %v2515, %v3034
        %v3218 = vmul.f32 %v2520, %v3038
        %v3219 = vmul.f32 %v2525, %v3038
        %v3220 = vmul.f32 %v2530, %v3038
        %v3221 = vmul.f32 %v2535, %v3038
        %v3222 = vmul.f32 %v2540, %v3038
        %v3223 = vmul.f32 %v2545, %v3042
        %v3224 = vmul.f32 %v2550, %v3042
        %v3225 = vmul.f32 %v2555, %v3042
        %v3226 = vmul.f32 %v2560, %v3042
        %v3227 = vmul.f32 %v2565, %v3042
        %v3228 = vmul.f32 %v2570, %v3046
        %v3229 = vmul.f32 %v2575, %v3046
        %v3230 = vmul.f32 %v2580, %v3046
        %v3231 = vmul.f32 %v2585, %v3046
        %v3232 = vmul.f32 %v2590, %v3046
        %v3233 = vmul.f32 %v2595, %v3050
        %v3234 = vmul.f32 %v2600, %v3050
        %v3235 = vmul.f32 %v2605, %v3050
        %v3236 = vmul.f32 %v2610, %v3050
        %v3237 = vmul.f32 %v2615, %v3050
        %v3238 = vmul.f32 %v2620, %v3054
        %v3239 = vmul.f32 %v2625, %v3054
        %v3240 = vmul.f32 %v2630, %v3054
        %v3241 = vmul.f32 %v2635, %v3054
        %v3242 = vmul.f32 %v2640, %v3054
        %v3243 = vmul.f32 %v2645, %v3058
        %v3244 = vmul.f32 %v2650, %v3058
        %v3245 = vmul.f32 %v2655, %v3058
        %v3246 = vmul.f32 %v2660, %v3058
        %v3247 = vmul.f32 %v2665, %v3058
        %v3248 = vmul.f32 %v2670, %v3062
        %v3249 = vmul.f32 %v2675, %v3062
        %v3250 = vmul.f32 %v2680, %v3062
        %v3251 = vmul.f32 %v2685, %v3062
        %v3252 = vmul.f32 %v2690, %v3062
        %v3253 = vmul.f32 %v2695, %v3066
        %v3254 = vmul.f32 %v2700, %v3066
        %v3255 = vmul.f32 %v2705, %v3066
        %v3256 = vmul.f32 %v2710, %v3066
        %v3257 = vmul.f32 %v2715, %v3066
        %v3258 = vmul.f32 %v2720, %v3070
        %v3259 = vmul.f32 %v2725, %v3070
        %v3260 = vmul.f32 %v2730, %v3070
        %v3261 = vmul.f32 %v2735, %v3070
        %v3262 = vmul.f32 %v2740, %v3070
        %v3264 = vsel %vm651, %v3103, 0
        %v3267 = vsel %vm651, %v3104, 0
        %v3270 = vsel %vm651, %v3105, 0
        %v3273 = vsel %vm651, %v3106, 0
        %v3276 = vsel %vm651, %v3107, 0
        %v3279 = vsel %vm651, %v3108, 0
        %v3282 = vsel %vm651, %v3109, 0
        %v3285 = vsel %vm651, %v3110, 0
        %v3288 = vsel %vm651, %v3111, 0
        %v3291 = vsel %vm651, %v3112, 0
        %v3294 = vsel %vm651, %v3113, 0
        %v3297 = vsel %vm651, %v3114, 0
        %v3300 = vsel %vm651, %v3115, 0
        %v3303 = vsel %vm651, %v3116, 0
        %v3306 = vsel %vm651, %v3117, 0
        %v3309 = vsel %vm651, %v3118, 0
        %v3312 = vsel %vm651, %v3119, 0
        %v3315 = vsel %vm651, %v3120, 0
        %v3318 = vsel %vm651, %v3121, 0
        %v3321 = vsel %vm651, %v3122, 0
        %v3324 = vsel %vm651, %v3123, 0
        %v3327 = vsel %vm651, %v3124, 0
        %v3330 = vsel %vm651, %v3125, 0
        %v3333 = vsel %vm651, %v3126, 0
        %v3336 = vsel %vm651, %v3127, 0
        %v3339 = vsel %vm651, %v3128, 0
        %v3342 = vsel %vm651, %v3129, 0
        %v3345 = vsel %vm651, %v3130, 0
        %v3348 = vsel %vm651, %v3131, 0
        %v3351 = vsel %vm651, %v3132, 0
        %v3354 = vsel %vm651, %v3133, 0
        %v3357 = vsel %vm651, %v3134, 0
        %v3360 = vsel %vm651, %v3135, 0
        %v3363 = vsel %vm651, %v3136, 0
        %v3366 = vsel %vm651, %v3137, 0
        %v3369 = vsel %vm651, %v3138, 0
        %v3372 = vsel %vm651, %v3139, 0
        %v3375 = vsel %vm651, %v3140, 0
        %v3378 = vsel %vm651, %v3141, 0
        %v3381 = vsel %vm651, %v3142, 0
        %v3384 = vsel %vm651, %v3143, 0
        %v3387 = vsel %vm651, %v3144, 0
        %v3390 = vsel %vm651, %v3145, 0
        %v3393 = vsel %vm651, %v3146, 0
        %v3396 = vsel %vm651, %v3147, 0
        %v3399 = vsel %vm651, %v3148, 0
        %v3402 = vsel %vm651, %v3149, 0
        %v3405 = vsel %vm651, %v3150, 0
        %v3408 = vsel %vm651, %v3151, 0
        %v3411 = vsel %vm651, %v3152, 0
        %v3414 = vsel %vm651, %v3153, 0
        %v3417 = vsel %vm651, %v3154, 0
        %v3420 = vsel %vm651, %v3155, 0
        %v3423 = vsel %vm651, %v3156, 0
        %v3426 = vsel %vm651, %v3157, 0
        %v3429 = vsel %vm651, %v3158, 0
        %v3432 = vsel %vm651, %v3159, 0
        %v3435 = vsel %vm651, %v3160, 0
        %v3438 = vsel %vm651, %v3161, 0
        %v3441 = vsel %vm651, %v3162, 0
        %v3444 = vsel %vm651, %v3163, 0
        %v3447 = vsel %vm651, %v3164, 0
        %v3450 = vsel %vm651, %v3165, 0
        %v3453 = vsel %vm651, %v3166, 0
        %v3456 = vsel %vm651, %v3167, 0
        %v3459 = vsel %vm651, %v3168, 0
        %v3462 = vsel %vm651, %v3169, 0
        %v3465 = vsel %vm651, %v3170, 0
        %v3468 = vsel %vm651, %v3171, 0
        %v3471 = vsel %vm651, %v3172, 0
        %v3474 = vsel %vm651, %v3173, 0
        %v3477 = vsel %vm651, %v3174, 0
        %v3480 = vsel %vm651, %v3175, 0
        %v3483 = vsel %vm651, %v3176, 0
        %v3486 = vsel %vm651, %v3177, 0
        %v3489 = vsel %vm651, %v3178, 0
        %v3492 = vsel %vm651, %v3179, 0
        %v3495 = vsel %vm651, %v3180, 0
        %v3498 = vsel %vm651, %v3181, 0
        %v3501 = vsel %vm651, %v3182, 0
        %v3504 = vsel %vm651, %v3183, 0
        %v3507 = vsel %vm651, %v3184, 0
        %v3510 = vsel %vm651, %v3185, 0
        %v3513 = vsel %vm651, %v3186, 0
        %v3516 = vsel %vm651, %v3187, 0
        %v3519 = vsel %vm651, %v3188, 0
        %v3522 = vsel %vm651, %v3189, 0
        %v3525 = vsel %vm651, %v3190, 0
        %v3528 = vsel %vm651, %v3191, 0
        %v3531 = vsel %vm651, %v3192, 0
        %v3534 = vsel %vm651, %v3193, 0
        %v3537 = vsel %vm651, %v3194, 0
        %v3540 = vsel %vm651, %v3195, 0
        %v3543 = vsel %vm651, %v3196, 0
        %v3546 = vsel %vm651, %v3197, 0
        %v3549 = vsel %vm651, %v3198, 0
        %v3552 = vsel %vm651, %v3199, 0
        %v3555 = vsel %vm651, %v3200, 0
        %v3558 = vsel %vm651, %v3201, 0
        %v3561 = vsel %vm651, %v3202, 0
        %v3564 = vsel %vm651, %v3203, 0
        %v3567 = vsel %vm651, %v3204, 0
        %v3570 = vsel %vm651, %v3205, 0
        %v3573 = vsel %vm651, %v3206, 0
        %v3576 = vsel %vm651, %v3207, 0
        %v3579 = vsel %vm651, %v3208, 0
        %v3582 = vsel %vm651, %v3209, 0
        %v3585 = vsel %vm651, %v3210, 0
        %v3588 = vsel %vm651, %v3211, 0
        %v3591 = vsel %vm651, %v3212, 0
        %v3594 = vsel %vm651, %v3213, 0
        %v3597 = vsel %vm651, %v3214, 0
        %v3600 = vsel %vm651, %v3215, 0
        %v3603 = vsel %vm651, %v3216, 0
        %v3606 = vsel %vm651, %v3217, 0
        %v3609 = vsel %vm651, %v3218, 0
        %v3612 = vsel %vm651, %v3219, 0
        %v3615 = vsel %vm651, %v3220, 0
        %v3618 = vsel %vm651, %v3221, 0
        %v3621 = vsel %vm651, %v3222, 0
        %v3624 = vsel %vm651, %v3223, 0
        %v3627 = vsel %vm651, %v3224, 0
        %v3630 = vsel %vm651, %v3225, 0
        %v3633 = vsel %vm651, %v3226, 0
        %v3636 = vsel %vm651, %v3227, 0
        %v3639 = vsel %vm651, %v3228, 0
        %v3642 = vsel %vm651, %v3229, 0
        %v3645 = vsel %vm651, %v3230, 0
        %v3648 = vsel %vm651, %v3231, 0
        %v3651 = vsel %vm651, %v3232, 0
        %v3654 = vsel %vm651, %v3233, 0
        %v3657 = vsel %vm651, %v3234, 0
        %v3660 = vsel %vm651, %v3235, 0
        %v3663 = vsel %vm651, %v3236, 0
        %v3666 = vsel %vm651, %v3237, 0
        %v3669 = vsel %vm651, %v3238, 0
        %v3672 = vsel %vm651, %v3239, 0
        %v3675 = vsel %vm651, %v3240, 0
        %v3678 = vsel %vm651, %v3241, 0
        %v3681 = vsel %vm651, %v3242, 0
        %v3684 = vsel %vm651, %v3243, 0
        %v3687 = vsel %vm651, %v3244, 0
        %v3690 = vsel %vm651, %v3245, 0
        %v3693 = vsel %vm651, %v3246, 0
        %v3696 = vsel %vm651, %v3247, 0
        %v3699 = vsel %vm651, %v3248, 0
        %v3702 = vsel %vm651, %v3249, 0
        %v3705 = vsel %vm651, %v3250, 0
        %v3708 = vsel %vm651, %v3251, 0
        %v3711 = vsel %vm651, %v3252, 0
        %v3714 = vsel %vm651, %v3253, 0
        %v3717 = vsel %vm651, %v3254, 0
        %v3720 = vsel %vm651, %v3255, 0
        %v3723 = vsel %vm651, %v3256, 0
        %v3726 = vsel %vm651, %v3257, 0
        %v3729 = vsel %vm651, %v3258, 0
        %v3732 = vsel %vm651, %v3259, 0
        %v3735 = vsel %vm651, %v3260, 0
        %v3738 = vsel %vm651, %v3261, 0
        %v3741 = vsel %vm651, %v3262, 0
        %3743 = vmatprep.subr.mxu0 0.0
        %3744 = vmatpush1.msra.mxu0 0.0
        %3745 = vmatprep.subr.mxu0 0.0
        %3746 = vmatpush1.msra.mxu0 0.0
        %3747 = vmatprep.subr.mxu0 0.0
        %3748 = vmatpush1.msra.mxu0 0.0
        %3749 = vmatprep.subr.mxu0 0.0
        %3750 = vmatpush1.msra.mxu0 0.0
        %3751 = vmatprep.subr.mxu0 0.0
        %3752 = vmatpush1.msra.mxu0 0.0
        %3753 = vmatprep.subr.mxu0 0.0
        %3754 = vmatpush1.msra.mxu0 0.0
        %3755 = vmatprep.subr.mxu0 0.0
        %3756 = vmatpush1.msra.mxu0 0.0
        %3757 = vmatprep.subr.mxu0 0.0
        %3758 = vmatpush1.msra.mxu0 0.0
        %3759 = vmatprep.subr.mxu0 0.0
        %3760 = vmatpush1.msra.mxu0 0.0
        %3761 = vmatprep.subr.mxu0 0.0
        %3762 = vmatpush1.msra.mxu0 0.0
        %3763 = vmatprep.subr.mxu0 0.0
        %3764 = vmatpush1.msra.mxu0 0.0
        %3765 = vmatprep.subr.mxu0 0.0
        %3766 = vmatpush1.msra.mxu0 0.0
        %3767 = vmatprep.subr.mxu0 0.0
        %3768 = vmatpush1.msra.mxu0 %v515
        %3769 = vmatprep.subr.mxu0 0.0
        %3770 = vmatpush1.msra.mxu0 %v514
        %3771 = vmatprep.subr.mxu0 0.0
        %3772 = vmatpush1.msra.mxu0 %v513
        %3773 = vmatprep.subr.mxu0 0.0
        %3774 = vmatpush1.msra.mxu0 %v512
        %3775 = vmatprep.subr.mxu0 0.0
        %3776 = vmatpush2.msra.mxu0 0.0
        %3777 = vmatprep.subr.mxu0 0.0
        %3778 = vmatpush2.msra.mxu0 0.0
        %3779 = vmatprep.subr.mxu0 0.0
        %3780 = vmatpush2.msra.mxu0 0.0
        %3781 = vmatprep.subr.mxu0 0.0
        %3782 = vmatpush2.msra.mxu0 0.0
        %3783 = vmatprep.subr.mxu0 0.0
        %3784 = vmatpush2.msra.mxu0 0.0
        %3785 = vmatprep.subr.mxu0 0.0
        %3786 = vmatpush2.msra.mxu0 0.0
        %3787 = vmatprep.subr.mxu0 0.0
        %3788 = vmatpush2.msra.mxu0 0.0
        %3789 = vmatprep.subr.mxu0 0.0
        %3790 = vmatpush2.msra.mxu0 0.0
        %3791 = vmatprep.subr.mxu0 0.0
        %3792 = vmatpush2.msra.mxu0 0.0
        %3793 = vmatprep.subr.mxu0 0.0
        %3794 = vmatpush2.msra.mxu0 0.0
        %3795 = vmatprep.subr.mxu0 0.0
        %3796 = vmatpush2.msra.mxu0 0.0
        %3797 = vmatprep.subr.mxu0 0.0
        %3798 = vmatpush2.msra.mxu0 0.0
        %3799 = vmatprep.subr.mxu0 0.0
        %3800 = vmatpush2.msra.mxu0 0.0
        %3801 = vmatprep.subr.mxu0 0.0
        %3802 = vmatpush2.msra.mxu0 0.0
        %3803 = vmatprep.subr.mxu0 0.0
        %3804 = vmatpush2.msra.mxu0 0.0
        %3805 = vmatprep.subr.mxu0 0.0
        %3806 = vmatpush2.msra.mxu0 0.0
        %3807 = vmatprep.mubr.f32.mxu0 0.0
        %3808 = vmatmul.mubr.f32.gmra.mxu0 %v3264
        %v3809 = vpop.f32.mrf.mxu0
        %v3810 = vadd.f32 0.0, %v3809
        %v3811 = vpop.f32.mrf.mxu0
        %3812 = vmatprep.mubr.f32.mxu0 0.0
        %3813 = vmatmul.mubr.f32.gmra.mxu0 %v3267
        %v3814 = vpop.f32.mrf.mxu0
        %v3815 = vadd.f32 0.0, %v3814
        %v3816 = vpop.f32.mrf.mxu0
        %3817 = vmatprep.mubr.f32.mxu0 0.0
        %3818 = vmatmul.mubr.f32.gmra.mxu0 %v3270
        %v3819 = vpop.f32.mrf.mxu0
        %v3820 = vadd.f32 0.0, %v3819
        %v3821 = vpop.f32.mrf.mxu0
        %3822 = vmatprep.mubr.f32.mxu0 0.0
        %3823 = vmatmul.mubr.f32.gmra.mxu0 %v3273
        %v3824 = vpop.f32.mrf.mxu0
        %v3825 = vadd.f32 0.0, %v3824
        %v3826 = vpop.f32.mrf.mxu0
        %3827 = vmatprep.mubr.f32.mxu0 0.0
        %3828 = vmatmul.mubr.f32.gmra.mxu0 %v3276
        %v3829 = vpop.f32.mrf.mxu0
        %v3830 = vadd.f32 0.0, %v3829
        %v3831 = vpop.f32.mrf.mxu0
        %3832 = vmatprep.mubr.f32.mxu0 0.0
        %3833 = vmatmul.mubr.f32.gmra.mxu0 %v3279
        %v3834 = vpop.f32.mrf.mxu0
        %v3835 = vadd.f32 0.0, %v3834
        %v3836 = vpop.f32.mrf.mxu0
        %3837 = vmatprep.mubr.f32.mxu0 0.0
        %3838 = vmatmul.mubr.f32.gmra.mxu0 %v3282
        %v3839 = vpop.f32.mrf.mxu0
        %v3840 = vadd.f32 0.0, %v3839
        %v3841 = vpop.f32.mrf.mxu0
        %3842 = vmatprep.mubr.f32.mxu0 0.0
        %3843 = vmatmul.mubr.f32.gmra.mxu0 %v3285
        %v3844 = vpop.f32.mrf.mxu0
        %v3845 = vadd.f32 0.0, %v3844
        %v3846 = vpop.f32.mrf.mxu0
        %3847 = vmatprep.mubr.f32.mxu0 0.0
        %3848 = vmatmul.mubr.f32.gmra.mxu0 %v3288
        %v3849 = vpop.f32.mrf.mxu0
        %v3850 = vadd.f32 0.0, %v3849
        %v3851 = vpop.f32.mrf.mxu0
        %3852 = vmatprep.mubr.f32.mxu0 0.0
        %3853 = vmatmul.mubr.f32.gmra.mxu0 %v3291
        %v3854 = vpop.f32.mrf.mxu0
        %v3855 = vadd.f32 0.0, %v3854
        %v3856 = vpop.f32.mrf.mxu0
        %3857 = vmatprep.mubr.f32.mxu0 0.0
        %3858 = vmatmul.mubr.f32.gmra.mxu0 %v3294
        %v3859 = vpop.f32.mrf.mxu0
        %v3860 = vadd.f32 0.0, %v3859
        %v3861 = vpop.f32.mrf.mxu0
        %3862 = vmatprep.mubr.f32.mxu0 0.0
        %3863 = vmatmul.mubr.f32.gmra.mxu0 %v3297
        %v3864 = vpop.f32.mrf.mxu0
        %v3865 = vadd.f32 0.0, %v3864
        %v3866 = vpop.f32.mrf.mxu0
        %3867 = vmatprep.mubr.f32.mxu0 0.0
        %3868 = vmatmul.mubr.f32.gmra.mxu0 %v3300
        %v3869 = vpop.f32.mrf.mxu0
        %v3870 = vadd.f32 0.0, %v3869
        %v3871 = vpop.f32.mrf.mxu0
        %3872 = vmatprep.mubr.f32.mxu0 0.0
        %3873 = vmatmul.mubr.f32.gmra.mxu0 %v3303
        %v3874 = vpop.f32.mrf.mxu0
        %v3875 = vadd.f32 0.0, %v3874
        %v3876 = vpop.f32.mrf.mxu0
        %3877 = vmatprep.mubr.f32.mxu0 0.0
        %3878 = vmatmul.mubr.f32.gmra.mxu0 %v3306
        %v3879 = vpop.f32.mrf.mxu0
        %v3880 = vadd.f32 0.0, %v3879
        %v3881 = vpop.f32.mrf.mxu0
        %3882 = vmatprep.mubr.f32.mxu0 0.0
        %3883 = vmatmul.mubr.f32.gmra.mxu0 %v3309
        %v3884 = vpop.f32.mrf.mxu0
        %v3885 = vadd.f32 0.0, %v3884
        %v3886 = vpop.f32.mrf.mxu0
        %3887 = vmatprep.mubr.f32.mxu0 0.0
        %3888 = vmatmul.mubr.f32.gmra.mxu0 %v3312
        %v3889 = vpop.f32.mrf.mxu0
        %v3890 = vadd.f32 0.0, %v3889
        %v3891 = vpop.f32.mrf.mxu0
        %3892 = vmatprep.mubr.f32.mxu0 0.0
        %3893 = vmatmul.mubr.f32.gmra.mxu0 %v3315
        %v3894 = vpop.f32.mrf.mxu0
        %v3895 = vadd.f32 0.0, %v3894
        %v3896 = vpop.f32.mrf.mxu0
        %3897 = vmatprep.mubr.f32.mxu0 0.0
        %3898 = vmatmul.mubr.f32.gmra.mxu0 %v3318
        %v3899 = vpop.f32.mrf.mxu0
        %v3900 = vadd.f32 0.0, %v3899
        %v3901 = vpop.f32.mrf.mxu0
        %3902 = vmatprep.mubr.f32.mxu0 0.0
        %3903 = vmatmul.mubr.f32.gmra.mxu0 %v3321
        %v3904 = vpop.f32.mrf.mxu0
        %v3905 = vadd.f32 0.0, %v3904
        %v3906 = vpop.f32.mrf.mxu0
        %3907 = vmatprep.mubr.f32.mxu0 0.0
        %3908 = vmatmul.mubr.f32.gmra.mxu0 %v3324
        %v3909 = vpop.f32.mrf.mxu0
        %v3910 = vadd.f32 0.0, %v3909
        %v3911 = vpop.f32.mrf.mxu0
        %3912 = vmatprep.mubr.f32.mxu0 0.0
        %3913 = vmatmul.mubr.f32.gmra.mxu0 %v3327
        %v3914 = vpop.f32.mrf.mxu0
        %v3915 = vadd.f32 0.0, %v3914
        %v3916 = vpop.f32.mrf.mxu0
        %3917 = vmatprep.mubr.f32.mxu0 0.0
        %3918 = vmatmul.mubr.f32.gmra.mxu0 %v3330
        %v3919 = vpop.f32.mrf.mxu0
        %v3920 = vadd.f32 0.0, %v3919
        %v3921 = vpop.f32.mrf.mxu0
        %3922 = vmatprep.mubr.f32.mxu0 0.0
        %3923 = vmatmul.mubr.f32.gmra.mxu0 %v3333
        %v3924 = vpop.f32.mrf.mxu0
        %v3925 = vadd.f32 0.0, %v3924
        %v3926 = vpop.f32.mrf.mxu0
        %3927 = vmatprep.mubr.f32.mxu0 0.0
        %3928 = vmatmul.mubr.f32.gmra.mxu0 %v3336
        %v3929 = vpop.f32.mrf.mxu0
        %v3930 = vadd.f32 0.0, %v3929
        %v3931 = vpop.f32.mrf.mxu0
        %3932 = vmatprep.mubr.f32.mxu0 0.0
        %3933 = vmatmul.mubr.f32.gmra.mxu0 %v3339
        %v3934 = vpop.f32.mrf.mxu0
        %v3935 = vadd.f32 0.0, %v3934
        %v3936 = vpop.f32.mrf.mxu0
        %3937 = vmatprep.mubr.f32.mxu0 0.0
        %3938 = vmatmul.mubr.f32.gmra.mxu0 %v3342
        %v3939 = vpop.f32.mrf.mxu0
        %v3940 = vadd.f32 0.0, %v3939
        %v3941 = vpop.f32.mrf.mxu0
        %3942 = vmatprep.mubr.f32.mxu0 0.0
        %3943 = vmatmul.mubr.f32.gmra.mxu0 %v3345
        %v3944 = vpop.f32.mrf.mxu0
        %v3945 = vadd.f32 0.0, %v3944
        %v3946 = vpop.f32.mrf.mxu0
        %3947 = vmatprep.mubr.f32.mxu0 0.0
        %3948 = vmatmul.mubr.f32.gmra.mxu0 %v3348
        %v3949 = vpop.f32.mrf.mxu0
        %v3950 = vadd.f32 0.0, %v3949
        %v3951 = vpop.f32.mrf.mxu0
        %3952 = vmatprep.mubr.f32.mxu0 0.0
        %3953 = vmatmul.mubr.f32.gmra.mxu0 %v3351
        %v3954 = vpop.f32.mrf.mxu0
        %v3955 = vadd.f32 0.0, %v3954
        %v3956 = vpop.f32.mrf.mxu0
        %3957 = vmatprep.mubr.f32.mxu0 0.0
        %3958 = vmatmul.mubr.f32.gmra.mxu0 %v3354
        %v3959 = vpop.f32.mrf.mxu0
        %v3960 = vadd.f32 0.0, %v3959
        %v3961 = vpop.f32.mrf.mxu0
        %3962 = vmatprep.mubr.f32.mxu0 0.0
        %3963 = vmatmul.mubr.f32.gmra.mxu0 %v3357
        %v3964 = vpop.f32.mrf.mxu0
        %v3965 = vadd.f32 0.0, %v3964
        %v3966 = vpop.f32.mrf.mxu0
        %3967 = vmatprep.mubr.f32.mxu0 0.0
        %3968 = vmatmul.mubr.f32.gmra.mxu0 %v3360
        %v3969 = vpop.f32.mrf.mxu0
        %v3970 = vadd.f32 0.0, %v3969
        %v3971 = vpop.f32.mrf.mxu0
        %3972 = vmatprep.mubr.f32.mxu0 0.0
        %3973 = vmatmul.mubr.f32.gmra.mxu0 %v3363
        %v3974 = vpop.f32.mrf.mxu0
        %v3975 = vadd.f32 0.0, %v3974
        %v3976 = vpop.f32.mrf.mxu0
        %3977 = vmatprep.mubr.f32.mxu0 0.0
        %3978 = vmatmul.mubr.f32.gmra.mxu0 %v3366
        %v3979 = vpop.f32.mrf.mxu0
        %v3980 = vadd.f32 0.0, %v3979
        %v3981 = vpop.f32.mrf.mxu0
        %3982 = vmatprep.mubr.f32.mxu0 0.0
        %3983 = vmatmul.mubr.f32.gmra.mxu0 %v3369
        %v3984 = vpop.f32.mrf.mxu0
        %v3985 = vadd.f32 0.0, %v3984
        %v3986 = vpop.f32.mrf.mxu0
        %3987 = vmatprep.mubr.f32.mxu0 0.0
        %3988 = vmatmul.mubr.f32.gmra.mxu0 %v3372
        %v3989 = vpop.f32.mrf.mxu0
        %v3990 = vadd.f32 0.0, %v3989
        %v3991 = vpop.f32.mrf.mxu0
        %3992 = vmatprep.mubr.f32.mxu0 0.0
        %3993 = vmatmul.mubr.f32.gmra.mxu0 %v3375
        %v3994 = vpop.f32.mrf.mxu0
        %v3995 = vadd.f32 0.0, %v3994
        %v3996 = vpop.f32.mrf.mxu0
        %3997 = vmatprep.mubr.f32.mxu0 0.0
        %3998 = vmatmul.mubr.f32.gmra.mxu0 %v3378
        %v3999 = vpop.f32.mrf.mxu0
        %v4000 = vadd.f32 0.0, %v3999
        %v4001 = vpop.f32.mrf.mxu0
        %4002 = vmatprep.mubr.f32.mxu0 0.0
        %4003 = vmatmul.mubr.f32.gmra.mxu0 %v3381
        %v4004 = vpop.f32.mrf.mxu0
        %v4005 = vadd.f32 0.0, %v4004
        %v4006 = vpop.f32.mrf.mxu0
        %4007 = vmatprep.mubr.f32.mxu0 0.0
        %4008 = vmatmul.mubr.f32.gmra.mxu0 %v3384
        %v4009 = vpop.f32.mrf.mxu0
        %v4010 = vadd.f32 0.0, %v4009
        %v4011 = vpop.f32.mrf.mxu0
        %4012 = vmatprep.mubr.f32.mxu0 0.0
        %4013 = vmatmul.mubr.f32.gmra.mxu0 %v3387
        %v4014 = vpop.f32.mrf.mxu0
        %v4015 = vadd.f32 0.0, %v4014
        %v4016 = vpop.f32.mrf.mxu0
        %4017 = vmatprep.mubr.f32.mxu0 0.0
        %4018 = vmatmul.mubr.f32.gmra.mxu0 %v3390
        %v4019 = vpop.f32.mrf.mxu0
        %v4020 = vadd.f32 0.0, %v4019
        %v4021 = vpop.f32.mrf.mxu0
        %4022 = vmatprep.mubr.f32.mxu0 0.0
        %4023 = vmatmul.mubr.f32.gmra.mxu0 %v3393
        %v4024 = vpop.f32.mrf.mxu0
        %v4025 = vadd.f32 0.0, %v4024
        %v4026 = vpop.f32.mrf.mxu0
        %4027 = vmatprep.mubr.f32.mxu0 0.0
        %4028 = vmatmul.mubr.f32.gmra.mxu0 %v3396
        %v4029 = vpop.f32.mrf.mxu0
        %v4030 = vadd.f32 0.0, %v4029
        %v4031 = vpop.f32.mrf.mxu0
        %4032 = vmatprep.mubr.f32.mxu0 0.0
        %4033 = vmatmul.mubr.f32.gmra.mxu0 %v3399
        %v4034 = vpop.f32.mrf.mxu0
        %v4035 = vadd.f32 0.0, %v4034
        %v4036 = vpop.f32.mrf.mxu0
        %4037 = vmatprep.mubr.f32.mxu0 0.0
        %4038 = vmatmul.mubr.f32.gmra.mxu0 %v3402
        %v4039 = vpop.f32.mrf.mxu0
        %v4040 = vadd.f32 0.0, %v4039
        %v4041 = vpop.f32.mrf.mxu0
        %4042 = vmatprep.mubr.f32.mxu0 0.0
        %4043 = vmatmul.mubr.f32.gmra.mxu0 %v3405
        %v4044 = vpop.f32.mrf.mxu0
        %v4045 = vadd.f32 0.0, %v4044
        %v4046 = vpop.f32.mrf.mxu0
        %4047 = vmatprep.mubr.f32.mxu0 0.0
        %4048 = vmatmul.mubr.f32.gmra.mxu0 %v3408
        %v4049 = vpop.f32.mrf.mxu0
        %v4050 = vadd.f32 0.0, %v4049
        %v4051 = vpop.f32.mrf.mxu0
        %4052 = vmatprep.mubr.f32.mxu0 0.0
        %4053 = vmatmul.mubr.f32.gmra.mxu0 %v3411
        %v4054 = vpop.f32.mrf.mxu0
        %v4055 = vadd.f32 0.0, %v4054
        %v4056 = vpop.f32.mrf.mxu0
        %4057 = vmatprep.mubr.f32.mxu0 0.0
        %4058 = vmatmul.mubr.f32.gmra.mxu0 %v3414
        %v4059 = vpop.f32.mrf.mxu0
        %v4060 = vadd.f32 0.0, %v4059
        %v4061 = vpop.f32.mrf.mxu0
        %4062 = vmatprep.mubr.f32.mxu0 0.0
        %4063 = vmatmul.mubr.f32.gmra.mxu0 %v3417
        %v4064 = vpop.f32.mrf.mxu0
        %v4065 = vadd.f32 0.0, %v4064
        %v4066 = vpop.f32.mrf.mxu0
        %4067 = vmatprep.mubr.f32.mxu0 0.0
        %4068 = vmatmul.mubr.f32.gmra.mxu0 %v3420
        %v4069 = vpop.f32.mrf.mxu0
        %v4070 = vadd.f32 0.0, %v4069
        %v4071 = vpop.f32.mrf.mxu0
        %4072 = vmatprep.mubr.f32.mxu0 0.0
        %4073 = vmatmul.mubr.f32.gmra.mxu0 %v3423
        %v4074 = vpop.f32.mrf.mxu0
        %v4075 = vadd.f32 0.0, %v4074
        %v4076 = vpop.f32.mrf.mxu0
        %4077 = vmatprep.mubr.f32.mxu0 0.0
        %4078 = vmatmul.mubr.f32.gmra.mxu0 %v3426
        %v4079 = vpop.f32.mrf.mxu0
        %v4080 = vadd.f32 0.0, %v4079
        %v4081 = vpop.f32.mrf.mxu0
        %4082 = vmatprep.mubr.f32.mxu0 0.0
        %4083 = vmatmul.mubr.f32.gmra.mxu0 %v3429
        %v4084 = vpop.f32.mrf.mxu0
        %v4085 = vadd.f32 0.0, %v4084
        %v4086 = vpop.f32.mrf.mxu0
        %4087 = vmatprep.mubr.f32.mxu0 0.0
        %4088 = vmatmul.mubr.f32.gmra.mxu0 %v3432
        %v4089 = vpop.f32.mrf.mxu0
        %v4090 = vadd.f32 0.0, %v4089
        %v4091 = vpop.f32.mrf.mxu0
        %4092 = vmatprep.mubr.f32.mxu0 0.0
        %4093 = vmatmul.mubr.f32.gmra.mxu0 %v3435
        %v4094 = vpop.f32.mrf.mxu0
        %v4095 = vadd.f32 0.0, %v4094
        %v4096 = vpop.f32.mrf.mxu0
        %4097 = vmatprep.mubr.f32.mxu0 0.0
        %4098 = vmatmul.mubr.f32.gmra.mxu0 %v3438
        %v4099 = vpop.f32.mrf.mxu0
        %v4100 = vadd.f32 0.0, %v4099
        %v4101 = vpop.f32.mrf.mxu0
        %4102 = vmatprep.mubr.f32.mxu0 0.0
        %4103 = vmatmul.mubr.f32.gmra.mxu0 %v3441
        %v4104 = vpop.f32.mrf.mxu0
        %v4105 = vadd.f32 0.0, %v4104
        %v4106 = vpop.f32.mrf.mxu0
        %4107 = vmatprep.mubr.f32.mxu0 0.0
        %4108 = vmatmul.mubr.f32.gmra.mxu0 %v3444
        %v4109 = vpop.f32.mrf.mxu0
        %v4110 = vadd.f32 0.0, %v4109
        %v4111 = vpop.f32.mrf.mxu0
        %4112 = vmatprep.mubr.f32.mxu0 0.0
        %4113 = vmatmul.mubr.f32.gmra.mxu0 %v3447
        %v4114 = vpop.f32.mrf.mxu0
        %v4115 = vadd.f32 0.0, %v4114
        %v4116 = vpop.f32.mrf.mxu0
        %4117 = vmatprep.mubr.f32.mxu0 0.0
        %4118 = vmatmul.mubr.f32.gmra.mxu0 %v3450
        %v4119 = vpop.f32.mrf.mxu0
        %v4120 = vadd.f32 0.0, %v4119
        %v4121 = vpop.f32.mrf.mxu0
        %4122 = vmatprep.mubr.f32.mxu0 0.0
        %4123 = vmatmul.mubr.f32.gmra.mxu0 %v3453
        %v4124 = vpop.f32.mrf.mxu0
        %v4125 = vadd.f32 0.0, %v4124
        %v4126 = vpop.f32.mrf.mxu0
        %4127 = vmatprep.mubr.f32.mxu0 0.0
        %4128 = vmatmul.mubr.f32.gmra.mxu0 %v3456
        %v4129 = vpop.f32.mrf.mxu0
        %v4130 = vadd.f32 0.0, %v4129
        %v4131 = vpop.f32.mrf.mxu0
        %4132 = vmatprep.mubr.f32.mxu0 0.0
        %4133 = vmatmul.mubr.f32.gmra.mxu0 %v3459
        %v4134 = vpop.f32.mrf.mxu0
        %v4135 = vadd.f32 0.0, %v4134
        %v4136 = vpop.f32.mrf.mxu0
        %4137 = vmatprep.mubr.f32.mxu0 0.0
        %4138 = vmatmul.mubr.f32.gmra.mxu0 %v3462
        %v4139 = vpop.f32.mrf.mxu0
        %v4140 = vadd.f32 0.0, %v4139
        %v4141 = vpop.f32.mrf.mxu0
        %4142 = vmatprep.mubr.f32.mxu0 0.0
        %4143 = vmatmul.mubr.f32.gmra.mxu0 %v3465
        %v4144 = vpop.f32.mrf.mxu0
        %v4145 = vadd.f32 0.0, %v4144
        %v4146 = vpop.f32.mrf.mxu0
        %4147 = vmatprep.mubr.f32.mxu0 0.0
        %4148 = vmatmul.mubr.f32.gmra.mxu0 %v3468
        %v4149 = vpop.f32.mrf.mxu0
        %v4150 = vadd.f32 0.0, %v4149
        %v4151 = vpop.f32.mrf.mxu0
        %4152 = vmatprep.mubr.f32.mxu0 0.0
        %4153 = vmatmul.mubr.f32.gmra.mxu0 %v3471
        %v4154 = vpop.f32.mrf.mxu0
        %v4155 = vadd.f32 0.0, %v4154
        %v4156 = vpop.f32.mrf.mxu0
        %4157 = vmatprep.mubr.f32.mxu0 0.0
        %4158 = vmatmul.mubr.f32.gmra.mxu0 %v3474
        %v4159 = vpop.f32.mrf.mxu0
        %v4160 = vadd.f32 0.0, %v4159
        %v4161 = vpop.f32.mrf.mxu0
        %4162 = vmatprep.mubr.f32.mxu0 0.0
        %4163 = vmatmul.mubr.f32.gmra.mxu0 %v3477
        %v4164 = vpop.f32.mrf.mxu0
        %v4165 = vadd.f32 0.0, %v4164
        %v4166 = vpop.f32.mrf.mxu0
        %4167 = vmatprep.mubr.f32.mxu0 0.0
        %4168 = vmatmul.mubr.f32.gmra.mxu0 %v3480
        %v4169 = vpop.f32.mrf.mxu0
        %v4170 = vadd.f32 0.0, %v4169
        %v4171 = vpop.f32.mrf.mxu0
        %4172 = vmatprep.mubr.f32.mxu0 0.0
        %4173 = vmatmul.mubr.f32.gmra.mxu0 %v3483
        %v4174 = vpop.f32.mrf.mxu0
        %v4175 = vadd.f32 0.0, %v4174
        %v4176 = vpop.f32.mrf.mxu0
        %4177 = vmatprep.mubr.f32.mxu0 0.0
        %4178 = vmatmul.mubr.f32.gmra.mxu0 %v3486
        %v4179 = vpop.f32.mrf.mxu0
        %v4180 = vadd.f32 0.0, %v4179
        %v4181 = vpop.f32.mrf.mxu0
        %4182 = vmatprep.mubr.f32.mxu0 0.0
        %4183 = vmatmul.mubr.f32.gmra.mxu0 %v3489
        %v4184 = vpop.f32.mrf.mxu0
        %v4185 = vadd.f32 0.0, %v4184
        %v4186 = vpop.f32.mrf.mxu0
        %4187 = vmatprep.mubr.f32.mxu0 0.0
        %4188 = vmatmul.mubr.f32.gmra.mxu0 %v3492
        %v4189 = vpop.f32.mrf.mxu0
        %v4190 = vadd.f32 0.0, %v4189
        %v4191 = vpop.f32.mrf.mxu0
        %4192 = vmatprep.mubr.f32.mxu0 0.0
        %4193 = vmatmul.mubr.f32.gmra.mxu0 %v3495
        %v4194 = vpop.f32.mrf.mxu0
        %v4195 = vadd.f32 0.0, %v4194
        %v4196 = vpop.f32.mrf.mxu0
        %4197 = vmatprep.mubr.f32.mxu0 0.0
        %4198 = vmatmul.mubr.f32.gmra.mxu0 %v3498
        %v4199 = vpop.f32.mrf.mxu0
        %v4200 = vadd.f32 0.0, %v4199
        %v4201 = vpop.f32.mrf.mxu0
        %4202 = vmatprep.mubr.f32.mxu0 0.0
        %4203 = vmatmul.mubr.f32.gmra.mxu0 %v3501
        %v4204 = vpop.f32.mrf.mxu0
        %v4205 = vadd.f32 0.0, %v4204
        %v4206 = vpop.f32.mrf.mxu0
        %4207 = vmatprep.mubr.f32.mxu0 0.0
        %4208 = vmatmul.mubr.f32.gmra.mxu0 %v3504
        %v4209 = vpop.f32.mrf.mxu0
        %v4210 = vadd.f32 0.0, %v4209
        %v4211 = vpop.f32.mrf.mxu0
        %4212 = vmatprep.mubr.f32.mxu0 0.0
        %4213 = vmatmul.mubr.f32.gmra.mxu0 %v3507
        %v4214 = vpop.f32.mrf.mxu0
        %v4215 = vadd.f32 0.0, %v4214
        %v4216 = vpop.f32.mrf.mxu0
        %4217 = vmatprep.mubr.f32.mxu0 0.0
        %4218 = vmatmul.mubr.f32.gmra.mxu0 %v3510
        %v4219 = vpop.f32.mrf.mxu0
        %v4220 = vadd.f32 0.0, %v4219
        %v4221 = vpop.f32.mrf.mxu0
        %4222 = vmatprep.mubr.f32.mxu0 0.0
        %4223 = vmatmul.mubr.f32.gmra.mxu0 %v3513
        %v4224 = vpop.f32.mrf.mxu0
        %v4225 = vadd.f32 0.0, %v4224
        %v4226 = vpop.f32.mrf.mxu0
        %4227 = vmatprep.mubr.f32.mxu0 0.0
        %4228 = vmatmul.mubr.f32.gmra.mxu0 %v3516
        %v4229 = vpop.f32.mrf.mxu0
        %v4230 = vadd.f32 0.0, %v4229
        %v4231 = vpop.f32.mrf.mxu0
        %4232 = vmatprep.mubr.f32.mxu0 0.0
        %4233 = vmatmul.mubr.f32.gmra.mxu0 %v3519
        %v4234 = vpop.f32.mrf.mxu0
        %v4235 = vadd.f32 0.0, %v4234
        %v4236 = vpop.f32.mrf.mxu0
        %4237 = vmatprep.mubr.f32.mxu0 0.0
        %4238 = vmatmul.mubr.f32.gmra.mxu0 %v3522
        %v4239 = vpop.f32.mrf.mxu0
        %v4240 = vadd.f32 0.0, %v4239
        %v4241 = vpop.f32.mrf.mxu0
        %4242 = vmatprep.mubr.f32.mxu0 0.0
        %4243 = vmatmul.mubr.f32.gmra.mxu0 %v3525
        %v4244 = vpop.f32.mrf.mxu0
        %v4245 = vadd.f32 0.0, %v4244
        %v4246 = vpop.f32.mrf.mxu0
        %4247 = vmatprep.mubr.f32.mxu0 0.0
        %4248 = vmatmul.mubr.f32.gmra.mxu0 %v3528
        %v4249 = vpop.f32.mrf.mxu0
        %v4250 = vadd.f32 0.0, %v4249
        %v4251 = vpop.f32.mrf.mxu0
        %4252 = vmatprep.mubr.f32.mxu0 0.0
        %4253 = vmatmul.mubr.f32.gmra.mxu0 %v3531
        %v4254 = vpop.f32.mrf.mxu0
        %v4255 = vadd.f32 0.0, %v4254
        %v4256 = vpop.f32.mrf.mxu0
        %4257 = vmatprep.mubr.f32.mxu0 0.0
        %4258 = vmatmul.mubr.f32.gmra.mxu0 %v3534
        %v4259 = vpop.f32.mrf.mxu0
        %v4260 = vadd.f32 0.0, %v4259
        %v4261 = vpop.f32.mrf.mxu0
        %4262 = vmatprep.mubr.f32.mxu0 0.0
        %4263 = vmatmul.mubr.f32.gmra.mxu0 %v3537
        %v4264 = vpop.f32.mrf.mxu0
        %v4265 = vadd.f32 0.0, %v4264
        %v4266 = vpop.f32.mrf.mxu0
        %4267 = vmatprep.mubr.f32.mxu0 0.0
        %4268 = vmatmul.mubr.f32.gmra.mxu0 %v3540
        %v4269 = vpop.f32.mrf.mxu0
        %v4270 = vadd.f32 0.0, %v4269
        %v4271 = vpop.f32.mrf.mxu0
        %4272 = vmatprep.mubr.f32.mxu0 0.0
        %4273 = vmatmul.mubr.f32.gmra.mxu0 %v3543
        %v4274 = vpop.f32.mrf.mxu0
        %v4275 = vadd.f32 0.0, %v4274
        %v4276 = vpop.f32.mrf.mxu0
        %4277 = vmatprep.mubr.f32.mxu0 0.0
        %4278 = vmatmul.mubr.f32.gmra.mxu0 %v3546
        %v4279 = vpop.f32.mrf.mxu0
        %v4280 = vadd.f32 0.0, %v4279
        %v4281 = vpop.f32.mrf.mxu0
        %4282 = vmatprep.mubr.f32.mxu0 0.0
        %4283 = vmatmul.mubr.f32.gmra.mxu0 %v3549
        %v4284 = vpop.f32.mrf.mxu0
        %v4285 = vadd.f32 0.0, %v4284
        %v4286 = vpop.f32.mrf.mxu0
        %4287 = vmatprep.mubr.f32.mxu0 0.0
        %4288 = vmatmul.mubr.f32.gmra.mxu0 %v3552
        %v4289 = vpop.f32.mrf.mxu0
        %v4290 = vadd.f32 0.0, %v4289
        %v4291 = vpop.f32.mrf.mxu0
        %4292 = vmatprep.mubr.f32.mxu0 0.0
        %4293 = vmatmul.mubr.f32.gmra.mxu0 %v3555
        %v4294 = vpop.f32.mrf.mxu0
        %v4295 = vadd.f32 0.0, %v4294
        %v4296 = vpop.f32.mrf.mxu0
        %4297 = vmatprep.mubr.f32.mxu0 0.0
        %4298 = vmatmul.mubr.f32.gmra.mxu0 %v3558
        %v4299 = vpop.f32.mrf.mxu0
        %v4300 = vadd.f32 0.0, %v4299
        %v4301 = vpop.f32.mrf.mxu0
        %4302 = vmatprep.mubr.f32.mxu0 0.0
        %4303 = vmatmul.mubr.f32.gmra.mxu0 %v3561
        %v4304 = vpop.f32.mrf.mxu0
        %v4305 = vadd.f32 0.0, %v4304
        %v4306 = vpop.f32.mrf.mxu0
        %4307 = vmatprep.mubr.f32.mxu0 0.0
        %4308 = vmatmul.mubr.f32.gmra.mxu0 %v3564
        %v4309 = vpop.f32.mrf.mxu0
        %v4310 = vadd.f32 0.0, %v4309
        %v4311 = vpop.f32.mrf.mxu0
        %4312 = vmatprep.mubr.f32.mxu0 0.0
        %4313 = vmatmul.mubr.f32.gmra.mxu0 %v3567
        %v4314 = vpop.f32.mrf.mxu0
        %v4315 = vadd.f32 0.0, %v4314
        %v4316 = vpop.f32.mrf.mxu0
        %4317 = vmatprep.mubr.f32.mxu0 0.0
        %4318 = vmatmul.mubr.f32.gmra.mxu0 %v3570
        %v4319 = vpop.f32.mrf.mxu0
        %v4320 = vadd.f32 0.0, %v4319
        %v4321 = vpop.f32.mrf.mxu0
        %4322 = vmatprep.mubr.f32.mxu0 0.0
        %4323 = vmatmul.mubr.f32.gmra.mxu0 %v3573
        %v4324 = vpop.f32.mrf.mxu0
        %v4325 = vadd.f32 0.0, %v4324
        %v4326 = vpop.f32.mrf.mxu0
        %4327 = vmatprep.mubr.f32.mxu0 0.0
        %4328 = vmatmul.mubr.f32.gmra.mxu0 %v3576
        %v4329 = vpop.f32.mrf.mxu0
        %v4330 = vadd.f32 0.0, %v4329
        %v4331 = vpop.f32.mrf.mxu0
        %4332 = vmatprep.mubr.f32.mxu0 0.0
        %4333 = vmatmul.mubr.f32.gmra.mxu0 %v3579
        %v4334 = vpop.f32.mrf.mxu0
        %v4335 = vadd.f32 0.0, %v4334
        %v4336 = vpop.f32.mrf.mxu0
        %4337 = vmatprep.mubr.f32.mxu0 0.0
        %4338 = vmatmul.mubr.f32.gmra.mxu0 %v3582
        %v4339 = vpop.f32.mrf.mxu0
        %v4340 = vadd.f32 0.0, %v4339
        %v4341 = vpop.f32.mrf.mxu0
        %4342 = vmatprep.mubr.f32.mxu0 0.0
        %4343 = vmatmul.mubr.f32.gmra.mxu0 %v3585
        %v4344 = vpop.f32.mrf.mxu0
        %v4345 = vadd.f32 0.0, %v4344
        %v4346 = vpop.f32.mrf.mxu0
        %4347 = vmatprep.mubr.f32.mxu0 0.0
        %4348 = vmatmul.mubr.f32.gmra.mxu0 %v3588
        %v4349 = vpop.f32.mrf.mxu0
        %v4350 = vadd.f32 0.0, %v4349
        %v4351 = vpop.f32.mrf.mxu0
        %4352 = vmatprep.mubr.f32.mxu0 0.0
        %4353 = vmatmul.mubr.f32.gmra.mxu0 %v3591
        %v4354 = vpop.f32.mrf.mxu0
        %v4355 = vadd.f32 0.0, %v4354
        %v4356 = vpop.f32.mrf.mxu0
        %4357 = vmatprep.mubr.f32.mxu0 0.0
        %4358 = vmatmul.mubr.f32.gmra.mxu0 %v3594
        %v4359 = vpop.f32.mrf.mxu0
        %v4360 = vadd.f32 0.0, %v4359
        %v4361 = vpop.f32.mrf.mxu0
        %4362 = vmatprep.mubr.f32.mxu0 0.0
        %4363 = vmatmul.mubr.f32.gmra.mxu0 %v3597
        %v4364 = vpop.f32.mrf.mxu0
        %v4365 = vadd.f32 0.0, %v4364
        %v4366 = vpop.f32.mrf.mxu0
        %4367 = vmatprep.mubr.f32.mxu0 0.0
        %4368 = vmatmul.mubr.f32.gmra.mxu0 %v3600
        %v4369 = vpop.f32.mrf.mxu0
        %v4370 = vadd.f32 0.0, %v4369
        %v4371 = vpop.f32.mrf.mxu0
        %4372 = vmatprep.mubr.f32.mxu0 0.0
        %4373 = vmatmul.mubr.f32.gmra.mxu0 %v3603
        %v4374 = vpop.f32.mrf.mxu0
        %v4375 = vadd.f32 0.0, %v4374
        %v4376 = vpop.f32.mrf.mxu0
        %4377 = vmatprep.mubr.f32.mxu0 0.0
        %4378 = vmatmul.mubr.f32.gmra.mxu0 %v3606
        %v4379 = vpop.f32.mrf.mxu0
        %v4380 = vadd.f32 0.0, %v4379
        %v4381 = vpop.f32.mrf.mxu0
        %4382 = vmatprep.mubr.f32.mxu0 0.0
        %4383 = vmatmul.mubr.f32.gmra.mxu0 %v3609
        %v4384 = vpop.f32.mrf.mxu0
        %v4385 = vadd.f32 0.0, %v4384
        %v4386 = vpop.f32.mrf.mxu0
        %4387 = vmatprep.mubr.f32.mxu0 0.0
        %4388 = vmatmul.mubr.f32.gmra.mxu0 %v3612
        %v4389 = vpop.f32.mrf.mxu0
        %v4390 = vadd.f32 0.0, %v4389
        %v4391 = vpop.f32.mrf.mxu0
        %4392 = vmatprep.mubr.f32.mxu0 0.0
        %4393 = vmatmul.mubr.f32.gmra.mxu0 %v3615
        %v4394 = vpop.f32.mrf.mxu0
        %v4395 = vadd.f32 0.0, %v4394
        %v4396 = vpop.f32.mrf.mxu0
        %4397 = vmatprep.mubr.f32.mxu0 0.0
        %4398 = vmatmul.mubr.f32.gmra.mxu0 %v3618
        %v4399 = vpop.f32.mrf.mxu0
        %v4400 = vadd.f32 0.0, %v4399
        %v4401 = vpop.f32.mrf.mxu0
        %4402 = vmatprep.mubr.f32.mxu0 0.0
        %4403 = vmatmul.mubr.f32.gmra.mxu0 %v3621
        %v4404 = vpop.f32.mrf.mxu0
        %v4405 = vadd.f32 0.0, %v4404
        %v4406 = vpop.f32.mrf.mxu0
        %4407 = vmatprep.mubr.f32.mxu0 0.0
        %4408 = vmatmul.mubr.f32.gmra.mxu0 %v3624
        %v4409 = vpop.f32.mrf.mxu0
        %v4410 = vadd.f32 0.0, %v4409
        %v4411 = vpop.f32.mrf.mxu0
        %4412 = vmatprep.mubr.f32.mxu0 0.0
        %4413 = vmatmul.mubr.f32.gmra.mxu0 %v3627
        %v4414 = vpop.f32.mrf.mxu0
        %v4415 = vadd.f32 0.0, %v4414
        %v4416 = vpop.f32.mrf.mxu0
        %4417 = vmatprep.mubr.f32.mxu0 0.0
        %4418 = vmatmul.mubr.f32.gmra.mxu0 %v3630
        %v4419 = vpop.f32.mrf.mxu0
        %v4420 = vadd.f32 0.0, %v4419
        %v4421 = vpop.f32.mrf.mxu0
        %4422 = vmatprep.mubr.f32.mxu0 0.0
        %4423 = vmatmul.mubr.f32.gmra.mxu0 %v3633
        %v4424 = vpop.f32.mrf.mxu0
        %v4425 = vadd.f32 0.0, %v4424
        %v4426 = vpop.f32.mrf.mxu0
        %4427 = vmatprep.mubr.f32.mxu0 0.0
        %4428 = vmatmul.mubr.f32.gmra.mxu0 %v3636
        %v4429 = vpop.f32.mrf.mxu0
        %v4430 = vadd.f32 0.0, %v4429
        %v4431 = vpop.f32.mrf.mxu0
        %4432 = vmatprep.mubr.f32.mxu0 0.0
        %4433 = vmatmul.mubr.f32.gmra.mxu0 %v3639
        %v4434 = vpop.f32.mrf.mxu0
        %v4435 = vadd.f32 0.0, %v4434
        %v4436 = vpop.f32.mrf.mxu0
        %4437 = vmatprep.mubr.f32.mxu0 0.0
        %4438 = vmatmul.mubr.f32.gmra.mxu0 %v3642
        %v4439 = vpop.f32.mrf.mxu0
        %v4440 = vadd.f32 0.0, %v4439
        %v4441 = vpop.f32.mrf.mxu0
        %4442 = vmatprep.mubr.f32.mxu0 0.0
        %4443 = vmatmul.mubr.f32.gmra.mxu0 %v3645
        %v4444 = vpop.f32.mrf.mxu0
        %v4445 = vadd.f32 0.0, %v4444
        %v4446 = vpop.f32.mrf.mxu0
        %4447 = vmatprep.mubr.f32.mxu0 0.0
        %4448 = vmatmul.mubr.f32.gmra.mxu0 %v3648
        %v4449 = vpop.f32.mrf.mxu0
        %v4450 = vadd.f32 0.0, %v4449
        %v4451 = vpop.f32.mrf.mxu0
        %4452 = vmatprep.mubr.f32.mxu0 0.0
        %4453 = vmatmul.mubr.f32.gmra.mxu0 %v3651
        %v4454 = vpop.f32.mrf.mxu0
        %v4455 = vadd.f32 0.0, %v4454
        %v4456 = vpop.f32.mrf.mxu0
        %4457 = vmatprep.mubr.f32.mxu0 0.0
        %4458 = vmatmul.mubr.f32.gmra.mxu0 %v3654
        %v4459 = vpop.f32.mrf.mxu0
        %v4460 = vadd.f32 0.0, %v4459
        %v4461 = vpop.f32.mrf.mxu0
        %4462 = vmatprep.mubr.f32.mxu0 0.0
        %4463 = vmatmul.mubr.f32.gmra.mxu0 %v3657
        %v4464 = vpop.f32.mrf.mxu0
        %v4465 = vadd.f32 0.0, %v4464
        %v4466 = vpop.f32.mrf.mxu0
        %4467 = vmatprep.mubr.f32.mxu0 0.0
        %4468 = vmatmul.mubr.f32.gmra.mxu0 %v3660
        %v4469 = vpop.f32.mrf.mxu0
        %v4470 = vadd.f32 0.0, %v4469
        %v4471 = vpop.f32.mrf.mxu0
        %4472 = vmatprep.mubr.f32.mxu0 0.0
        %4473 = vmatmul.mubr.f32.gmra.mxu0 %v3663
        %v4474 = vpop.f32.mrf.mxu0
        %v4475 = vadd.f32 0.0, %v4474
        %v4476 = vpop.f32.mrf.mxu0
        %4477 = vmatprep.mubr.f32.mxu0 0.0
        %4478 = vmatmul.mubr.f32.gmra.mxu0 %v3666
        %v4479 = vpop.f32.mrf.mxu0
        %v4480 = vadd.f32 0.0, %v4479
        %v4481 = vpop.f32.mrf.mxu0
        %4482 = vmatprep.mubr.f32.mxu0 0.0
        %4483 = vmatmul.mubr.f32.gmra.mxu0 %v3669
        %v4484 = vpop.f32.mrf.mxu0
        %v4485 = vadd.f32 0.0, %v4484
        %v4486 = vpop.f32.mrf.mxu0
        %4487 = vmatprep.mubr.f32.mxu0 0.0
        %4488 = vmatmul.mubr.f32.gmra.mxu0 %v3672
        %v4489 = vpop.f32.mrf.mxu0
        %v4490 = vadd.f32 0.0, %v4489
        %v4491 = vpop.f32.mrf.mxu0
        %4492 = vmatprep.mubr.f32.mxu0 0.0
        %4493 = vmatmul.mubr.f32.gmra.mxu0 %v3675
        %v4494 = vpop.f32.mrf.mxu0
        %v4495 = vadd.f32 0.0, %v4494
        %v4496 = vpop.f32.mrf.mxu0
        %4497 = vmatprep.mubr.f32.mxu0 0.0
        %4498 = vmatmul.mubr.f32.gmra.mxu0 %v3678
        %v4499 = vpop.f32.mrf.mxu0
        %v4500 = vadd.f32 0.0, %v4499
        %v4501 = vpop.f32.mrf.mxu0
        %4502 = vmatprep.mubr.f32.mxu0 0.0
        %4503 = vmatmul.mubr.f32.gmra.mxu0 %v3681
        %v4504 = vpop.f32.mrf.mxu0
        %v4505 = vadd.f32 0.0, %v4504
        %v4506 = vpop.f32.mrf.mxu0
        %4507 = vmatprep.mubr.f32.mxu0 0.0
        %4508 = vmatmul.mubr.f32.gmra.mxu0 %v3684
        %v4509 = vpop.f32.mrf.mxu0
        %v4510 = vadd.f32 0.0, %v4509
        %v4511 = vpop.f32.mrf.mxu0
        %4512 = vmatprep.mubr.f32.mxu0 0.0
        %4513 = vmatmul.mubr.f32.gmra.mxu0 %v3687
        %v4514 = vpop.f32.mrf.mxu0
        %v4515 = vadd.f32 0.0, %v4514
        %v4516 = vpop.f32.mrf.mxu0
        %4517 = vmatprep.mubr.f32.mxu0 0.0
        %4518 = vmatmul.mubr.f32.gmra.mxu0 %v3690
        %v4519 = vpop.f32.mrf.mxu0
        %v4520 = vadd.f32 0.0, %v4519
        %v4521 = vpop.f32.mrf.mxu0
        %4522 = vmatprep.mubr.f32.mxu0 0.0
        %4523 = vmatmul.mubr.f32.gmra.mxu0 %v3693
        %v4524 = vpop.f32.mrf.mxu0
        %v4525 = vadd.f32 0.0, %v4524
        %v4526 = vpop.f32.mrf.mxu0
        %4527 = vmatprep.mubr.f32.mxu0 0.0
        %4528 = vmatmul.mubr.f32.gmra.mxu0 %v3696
        %v4529 = vpop.f32.mrf.mxu0
        %v4530 = vadd.f32 0.0, %v4529
        %v4531 = vpop.f32.mrf.mxu0
        %4532 = vmatprep.mubr.f32.mxu0 0.0
        %4533 = vmatmul.mubr.f32.gmra.mxu0 %v3699
        %v4534 = vpop.f32.mrf.mxu0
        %v4535 = vadd.f32 0.0, %v4534
        %v4536 = vpop.f32.mrf.mxu0
        %4537 = vmatprep.mubr.f32.mxu0 0.0
        %4538 = vmatmul.mubr.f32.gmra.mxu0 %v3702
        %v4539 = vpop.f32.mrf.mxu0
        %v4540 = vadd.f32 0.0, %v4539
        %v4541 = vpop.f32.mrf.mxu0
        %4542 = vmatprep.mubr.f32.mxu0 0.0
        %4543 = vmatmul.mubr.f32.gmra.mxu0 %v3705
        %v4544 = vpop.f32.mrf.mxu0
        %v4545 = vadd.f32 0.0, %v4544
        %v4546 = vpop.f32.mrf.mxu0
        %4547 = vmatprep.mubr.f32.mxu0 0.0
        %4548 = vmatmul.mubr.f32.gmra.mxu0 %v3708
        %v4549 = vpop.f32.mrf.mxu0
        %v4550 = vadd.f32 0.0, %v4549
        %v4551 = vpop.f32.mrf.mxu0
        %4552 = vmatprep.mubr.f32.mxu0 0.0
        %4553 = vmatmul.mubr.f32.gmra.mxu0 %v3711
        %v4554 = vpop.f32.mrf.mxu0
        %v4555 = vadd.f32 0.0, %v4554
        %v4556 = vpop.f32.mrf.mxu0
        %4557 = vmatprep.mubr.f32.mxu0 0.0
        %4558 = vmatmul.mubr.f32.gmra.mxu0 %v3714
        %v4559 = vpop.f32.mrf.mxu0
        %v4560 = vadd.f32 0.0, %v4559
        %v4561 = vpop.f32.mrf.mxu0
        %4562 = vmatprep.mubr.f32.mxu0 0.0
        %4563 = vmatmul.mubr.f32.gmra.mxu0 %v3717
        %v4564 = vpop.f32.mrf.mxu0
        %v4565 = vadd.f32 0.0, %v4564
        %v4566 = vpop.f32.mrf.mxu0
        %4567 = vmatprep.mubr.f32.mxu0 0.0
        %4568 = vmatmul.mubr.f32.gmra.mxu0 %v3720
        %v4569 = vpop.f32.mrf.mxu0
        %v4570 = vadd.f32 0.0, %v4569
        %v4571 = vpop.f32.mrf.mxu0
        %4572 = vmatprep.mubr.f32.mxu0 0.0
        %4573 = vmatmul.mubr.f32.gmra.mxu0 %v3723
        %v4574 = vpop.f32.mrf.mxu0
        %v4575 = vadd.f32 0.0, %v4574
        %v4576 = vpop.f32.mrf.mxu0
        %4577 = vmatprep.mubr.f32.mxu0 0.0
        %4578 = vmatmul.mubr.f32.gmra.mxu0 %v3726
        %v4579 = vpop.f32.mrf.mxu0
        %v4580 = vadd.f32 0.0, %v4579
        %v4581 = vpop.f32.mrf.mxu0
        %4582 = vmatprep.mubr.f32.mxu0 0.0
        %4583 = vmatmul.mubr.f32.gmra.mxu0 %v3729
        %v4584 = vpop.f32.mrf.mxu0
        %v4585 = vadd.f32 0.0, %v4584
        %v4586 = vpop.f32.mrf.mxu0
        %4587 = vmatprep.mubr.f32.mxu0 0.0
        %4588 = vmatmul.mubr.f32.gmra.mxu0 %v3732
        %v4589 = vpop.f32.mrf.mxu0
        %v4590 = vadd.f32 0.0, %v4589
        %v4591 = vpop.f32.mrf.mxu0
        %4592 = vmatprep.mubr.f32.mxu0 0.0
        %4593 = vmatmul.mubr.f32.gmra.mxu0 %v3735
        %v4594 = vpop.f32.mrf.mxu0
        %v4595 = vadd.f32 0.0, %v4594
        %v4596 = vpop.f32.mrf.mxu0
        %4597 = vmatprep.mubr.f32.mxu0 0.0
        %4598 = vmatmul.mubr.f32.gmra.mxu0 %v3738
        %v4599 = vpop.f32.mrf.mxu0
        %v4600 = vadd.f32 0.0, %v4599
        %v4601 = vpop.f32.mrf.mxu0
        %4602 = vmatprep.mubr.f32.mxu0 0.0
        %4603 = vmatmul.mubr.f32.gmra.mxu0 %v3741
        %v4604 = vpop.f32.mrf.mxu0
        %v4605 = vadd.f32 0.0, %v4604
        %v4606 = vpop.f32.mrf.mxu0
        %4607 = vdwg.mxu0
        %4608 = vst.msk [vmem:[%s500] sm:$0xff] %vm522, %v3810
        %4609 = vst.msk [vmem:[%s500 + $0x8] sm:$0xff] %vm522, %v3815
        %4610 = vst.msk [vmem:[%s500 + $0x10] sm:$0xff] %vm522, %v3820
        %4611 = vst.msk [vmem:[%s500 + $0x18] sm:$0xff] %vm522, %v3825
        %vm4612 = vcmask 262144
        %4613 = vst.msk [vmem:[%s500 + $0x20] sm:$0x1] %vm4612, %v3830
        %4614 = vst.msk [vmem:[%s500 + $0x28] sm:$0xff] %vm522, %v3835
        %4615 = vst.msk [vmem:[%s500 + $0x30] sm:$0xff] %vm522, %v3840
        %4616 = vst.msk [vmem:[%s500 + $0x38] sm:$0xff] %vm522, %v3845
        %4617 = vst.msk [vmem:[%s500 + $0x40] sm:$0xff] %vm522, %v3850
        %4618 = vst.msk [vmem:[%s500 + $0x48] sm:$0x1] %vm4612, %v3855
        %4619 = vst.msk [vmem:[%s500 + $0x50] sm:$0xff] %vm522, %v3860
        %4620 = vst.msk [vmem:[%s500 + $0x58] sm:$0xff] %vm522, %v3865
        %4621 = vst.msk [vmem:[%s500 + $0x60] sm:$0xff] %vm522, %v3870
        %4622 = vst.msk [vmem:[%s500 + $0x68] sm:$0xff] %vm522, %v3875
        %4623 = vst.msk [vmem:[%s500 + $0x70] sm:$0x1] %vm4612, %v3880
        %4624 = vst.msk [vmem:[%s500 + $0x78] sm:$0xff] %vm522, %v3885
        %4625 = vst.msk [vmem:[%s500 + $0x80] sm:$0xff] %vm522, %v3890
        %4626 = vst.msk [vmem:[%s500 + $0x88] sm:$0xff] %vm522, %v3895
        %4627 = vst.msk [vmem:[%s500 + $0x90] sm:$0xff] %vm522, %v3900
        %4628 = vst.msk [vmem:[%s500 + $0x98] sm:$0x1] %vm4612, %v3905
        %4629 = vst.msk [vmem:[%s500 + $0xa0] sm:$0xff] %vm522, %v3910
        %4630 = vst.msk [vmem:[%s500 + $0xa8] sm:$0xff] %vm522, %v3915
        %4631 = vst.msk [vmem:[%s500 + $0xb0] sm:$0xff] %vm522, %v3920
        %4632 = vst.msk [vmem:[%s500 + $0xb8] sm:$0xff] %vm522, %v3925
        %4633 = vst.msk [vmem:[%s500 + $0xc0] sm:$0x1] %vm4612, %v3930
        %4634 = vst.msk [vmem:[%s500 + $0xc8] sm:$0xff] %vm522, %v3935
        %4635 = vst.msk [vmem:[%s500 + $0xd0] sm:$0xff] %vm522, %v3940
        %4636 = vst.msk [vmem:[%s500 + $0xd8] sm:$0xff] %vm522, %v3945
        %4637 = vst.msk [vmem:[%s500 + $0xe0] sm:$0xff] %vm522, %v3950
        %4638 = vst.msk [vmem:[%s500 + $0xe8] sm:$0x1] %vm4612, %v3955
        %4639 = vst.msk [vmem:[%s500 + $0xf0] sm:$0xff] %vm522, %v3960
        %4640 = vst.msk [vmem:[%s500 + $0xf8] sm:$0xff] %vm522, %v3965
        %4641 = vst.msk [vmem:[%s500 + $0x100] sm:$0xff] %vm522, %v3970
        %4642 = vst.msk [vmem:[%s500 + $0x108] sm:$0xff] %vm522, %v3975
        %4643 = vst.msk [vmem:[%s500 + $0x110] sm:$0x1] %vm4612, %v3980
        %4644 = vst.msk [vmem:[%s500 + $0x118] sm:$0xff] %vm522, %v3985
        %4645 = vst.msk [vmem:[%s500 + $0x120] sm:$0xff] %vm522, %v3990
        %4646 = vst.msk [vmem:[%s500 + $0x128] sm:$0xff] %vm522, %v3995
        %4647 = vst.msk [vmem:[%s500 + $0x130] sm:$0xff] %vm522, %v4000
        %4648 = vst.msk [vmem:[%s500 + $0x138] sm:$0x1] %vm4612, %v4005
        %4649 = vst.msk [vmem:[%s500 + $0x140] sm:$0xff] %vm522, %v4010
        %4650 = vst.msk [vmem:[%s500 + $0x148] sm:$0xff] %vm522, %v4015
        %4651 = vst.msk [vmem:[%s500 + $0x150] sm:$0xff] %vm522, %v4020
        %4652 = vst.msk [vmem:[%s500 + $0x158] sm:$0xff] %vm522, %v4025
        %4653 = vst.msk [vmem:[%s500 + $0x160] sm:$0x1] %vm4612, %v4030
        %4654 = vst.msk [vmem:[%s500 + $0x168] sm:$0xff] %vm522, %v4035
        %4655 = vst.msk [vmem:[%s500 + $0x170] sm:$0xff] %vm522, %v4040
        %4656 = vst.msk [vmem:[%s500 + $0x178] sm:$0xff] %vm522, %v4045
        %4657 = vst.msk [vmem:[%s500 + $0x180] sm:$0xff] %vm522, %v4050
        %4658 = vst.msk [vmem:[%s500 + $0x188] sm:$0x1] %vm4612, %v4055
        %4659 = vst.msk [vmem:[%s500 + $0x190] sm:$0xff] %vm522, %v4060
        %4660 = vst.msk [vmem:[%s500 + $0x198] sm:$0xff] %vm522, %v4065
        %4661 = vst.msk [vmem:[%s500 + $0x1a0] sm:$0xff] %vm522, %v4070
        %4662 = vst.msk [vmem:[%s500 + $0x1a8] sm:$0xff] %vm522, %v4075
        %4663 = vst.msk [vmem:[%s500 + $0x1b0] sm:$0x1] %vm4612, %v4080
        %4664 = vst.msk [vmem:[%s500 + $0x1b8] sm:$0xff] %vm522, %v4085
        %4665 = vst.msk [vmem:[%s500 + $0x1c0] sm:$0xff] %vm522, %v4090
        %4666 = vst.msk [vmem:[%s500 + $0x1c8] sm:$0xff] %vm522, %v4095
        %4667 = vst.msk [vmem:[%s500 + $0x1d0] sm:$0xff] %vm522, %v4100
        %4668 = vst.msk [vmem:[%s500 + $0x1d8] sm:$0x1] %vm4612, %v4105
        %4669 = vst.msk [vmem:[%s500 + $0x1e0] sm:$0xff] %vm522, %v4110
        %4670 = vst.msk [vmem:[%s500 + $0x1e8] sm:$0xff] %vm522, %v4115
        %4671 = vst.msk [vmem:[%s500 + $0x1f0] sm:$0xff] %vm522, %v4120
        %4672 = vst.msk [vmem:[%s500 + $0x1f8] sm:$0xff] %vm522, %v4125
        %4673 = vst.msk [vmem:[%s500 + $0x200] sm:$0x1] %vm4612, %v4130
        %4674 = vst.msk [vmem:[%s500 + $0x208] sm:$0xff] %vm522, %v4135
        %4675 = vst.msk [vmem:[%s500 + $0x210] sm:$0xff] %vm522, %v4140
        %4676 = vst.msk [vmem:[%s500 + $0x218] sm:$0xff] %vm522, %v4145
        %4677 = vst.msk [vmem:[%s500 + $0x220] sm:$0xff] %vm522, %v4150
        %4678 = vst.msk [vmem:[%s500 + $0x228] sm:$0x1] %vm4612, %v4155
        %4679 = vst.msk [vmem:[%s500 + $0x230] sm:$0xff] %vm522, %v4160
        %4680 = vst.msk [vmem:[%s500 + $0x238] sm:$0xff] %vm522, %v4165
        %4681 = vst.msk [vmem:[%s500 + $0x240] sm:$0xff] %vm522, %v4170
        %4682 = vst.msk [vmem:[%s500 + $0x248] sm:$0xff] %vm522, %v4175
        %4683 = vst.msk [vmem:[%s500 + $0x250] sm:$0x1] %vm4612, %v4180
        %4684 = vst.msk [vmem:[%s500 + $0x258] sm:$0xff] %vm522, %v4185
        %4685 = vst.msk [vmem:[%s500 + $0x260] sm:$0xff] %vm522, %v4190
        %4686 = vst.msk [vmem:[%s500 + $0x268] sm:$0xff] %vm522, %v4195
        %4687 = vst.msk [vmem:[%s500 + $0x270] sm:$0xff] %vm522, %v4200
        %4688 = vst.msk [vmem:[%s500 + $0x278] sm:$0x1] %vm4612, %v4205
        %4689 = vst.msk [vmem:[%s500 + $0x280] sm:$0xff] %vm522, %v4210
        %4690 = vst.msk [vmem:[%s500 + $0x288] sm:$0xff] %vm522, %v4215
        %4691 = vst.msk [vmem:[%s500 + $0x290] sm:$0xff] %vm522, %v4220
        %4692 = vst.msk [vmem:[%s500 + $0x298] sm:$0xff] %vm522, %v4225
        %4693 = vst.msk [vmem:[%s500 + $0x2a0] sm:$0x1] %vm4612, %v4230
        %4694 = vst.msk [vmem:[%s500 + $0x2a8] sm:$0xff] %vm522, %v4235
        %4695 = vst.msk [vmem:[%s500 + $0x2b0] sm:$0xff] %vm522, %v4240
        %4696 = vst.msk [vmem:[%s500 + $0x2b8] sm:$0xff] %vm522, %v4245
        %4697 = vst.msk [vmem:[%s500 + $0x2c0] sm:$0xff] %vm522, %v4250
        %4698 = vst.msk [vmem:[%s500 + $0x2c8] sm:$0x1] %vm4612, %v4255
        %4699 = vst.msk [vmem:[%s500 + $0x2d0] sm:$0xff] %vm522, %v4260
        %4700 = vst.msk [vmem:[%s500 + $0x2d8] sm:$0xff] %vm522, %v4265
        %4701 = vst.msk [vmem:[%s500 + $0x2e0] sm:$0xff] %vm522, %v4270
        %4702 = vst.msk [vmem:[%s500 + $0x2e8] sm:$0xff] %vm522, %v4275
        %4703 = vst.msk [vmem:[%s500 + $0x2f0] sm:$0x1] %vm4612, %v4280
        %4704 = vst.msk [vmem:[%s500 + $0x2f8] sm:$0xff] %vm522, %v4285
        %4705 = vst.msk [vmem:[%s500 + $0x300] sm:$0xff] %vm522, %v4290
        %4706 = vst.msk [vmem:[%s500 + $0x308] sm:$0xff] %vm522, %v4295
        %4707 = vst.msk [vmem:[%s500 + $0x310] sm:$0xff] %vm522, %v4300
        %4708 = vst.msk [vmem:[%s500 + $0x318] sm:$0x1] %vm4612, %v4305
        %4709 = vst.msk [vmem:[%s500 + $0x320] sm:$0xff] %vm522, %v4310
        %4710 = vst.msk [vmem:[%s500 + $0x328] sm:$0xff] %vm522, %v4315
        %4711 = vst.msk [vmem:[%s500 + $0x330] sm:$0xff] %vm522, %v4320
        %4712 = vst.msk [vmem:[%s500 + $0x338] sm:$0xff] %vm522, %v4325
        %4713 = vst.msk [vmem:[%s500 + $0x340] sm:$0x1] %vm4612, %v4330
        %4714 = vst.msk [vmem:[%s500 + $0x348] sm:$0xff] %vm522, %v4335
        %4715 = vst.msk [vmem:[%s500 + $0x350] sm:$0xff] %vm522, %v4340
        %4716 = vst.msk [vmem:[%s500 + $0x358] sm:$0xff] %vm522, %v4345
        %4717 = vst.msk [vmem:[%s500 + $0x360] sm:$0xff] %vm522, %v4350
        %4718 = vst.msk [vmem:[%s500 + $0x368] sm:$0x1] %vm4612, %v4355
        %4719 = vst.msk [vmem:[%s500 + $0x370] sm:$0xff] %vm522, %v4360
        %4720 = vst.msk [vmem:[%s500 + $0x378] sm:$0xff] %vm522, %v4365
        %4721 = vst.msk [vmem:[%s500 + $0x380] sm:$0xff] %vm522, %v4370
        %4722 = vst.msk [vmem:[%s500 + $0x388] sm:$0xff] %vm522, %v4375
        %4723 = vst.msk [vmem:[%s500 + $0x390] sm:$0x1] %vm4612, %v4380
        %4724 = vst.msk [vmem:[%s500 + $0x398] sm:$0xff] %vm522, %v4385
        %4725 = vst.msk [vmem:[%s500 + $0x3a0] sm:$0xff] %vm522, %v4390
        %4726 = vst.msk [vmem:[%s500 + $0x3a8] sm:$0xff] %vm522, %v4395
        %4727 = vst.msk [vmem:[%s500 + $0x3b0] sm:$0xff] %vm522, %v4400
        %4728 = vst.msk [vmem:[%s500 + $0x3b8] sm:$0x1] %vm4612, %v4405
        %4729 = vst.msk [vmem:[%s500 + $0x3c0] sm:$0xff] %vm522, %v4410
        %4730 = vst.msk [vmem:[%s500 + $0x3c8] sm:$0xff] %vm522, %v4415
        %4731 = vst.msk [vmem:[%s500 + $0x3d0] sm:$0xff] %vm522, %v4420
        %4732 = vst.msk [vmem:[%s500 + $0x3d8] sm:$0xff] %vm522, %v4425
        %4733 = vst.msk [vmem:[%s500 + $0x3e0] sm:$0x1] %vm4612, %v4430
        %4734 = vst.msk [vmem:[%s500 + $0x3e8] sm:$0xff] %vm522, %v4435
        %4735 = vst.msk [vmem:[%s500 + $0x3f0] sm:$0xff] %vm522, %v4440
        %4736 = vst.msk [vmem:[%s500 + $0x3f8] sm:$0xff] %vm522, %v4445
        %4737 = vst.msk [vmem:[%s500 + $0x400] sm:$0xff] %vm522, %v4450
        %4738 = vst.msk [vmem:[%s500 + $0x408] sm:$0x1] %vm4612, %v4455
        %4739 = vst.msk [vmem:[%s500 + $0x410] sm:$0xff] %vm522, %v4460
        %4740 = vst.msk [vmem:[%s500 + $0x418] sm:$0xff] %vm522, %v4465
        %4741 = vst.msk [vmem:[%s500 + $0x420] sm:$0xff] %vm522, %v4470
        %4742 = vst.msk [vmem:[%s500 + $0x428] sm:$0xff] %vm522, %v4475
        %4743 = vst.msk [vmem:[%s500 + $0x430] sm:$0x1] %vm4612, %v4480
        %4744 = vst.msk [vmem:[%s500 + $0x438] sm:$0xff] %vm522, %v4485
        %4745 = vst.msk [vmem:[%s500 + $0x440] sm:$0xff] %vm522, %v4490
        %4746 = vst.msk [vmem:[%s500 + $0x448] sm:$0xff] %vm522, %v4495
        %4747 = vst.msk [vmem:[%s500 + $0x450] sm:$0xff] %vm522, %v4500
        %4748 = vst.msk [vmem:[%s500 + $0x458] sm:$0x1] %vm4612, %v4505
        %4749 = vst.msk [vmem:[%s500 + $0x460] sm:$0xff] %vm522, %v4510
        %4750 = vst.msk [vmem:[%s500 + $0x468] sm:$0xff] %vm522, %v4515
        %4751 = vst.msk [vmem:[%s500 + $0x470] sm:$0xff] %vm522, %v4520
        %4752 = vst.msk [vmem:[%s500 + $0x478] sm:$0xff] %vm522, %v4525
        %4753 = vst.msk [vmem:[%s500 + $0x480] sm:$0x1] %vm4612, %v4530
        %4754 = vst.msk [vmem:[%s500 + $0x488] sm:$0xff] %vm522, %v4535
        %4755 = vst.msk [vmem:[%s500 + $0x490] sm:$0xff] %vm522, %v4540
        %4756 = vst.msk [vmem:[%s500 + $0x498] sm:$0xff] %vm522, %v4545
        %4757 = vst.msk [vmem:[%s500 + $0x4a0] sm:$0xff] %vm522, %v4550
        %4758 = vst.msk [vmem:[%s500 + $0x4a8] sm:$0x1] %vm4612, %v4555
        %4759 = vst.msk [vmem:[%s500 + $0x4b0] sm:$0xff] %vm522, %v4560
        %4760 = vst.msk [vmem:[%s500 + $0x4b8] sm:$0xff] %vm522, %v4565
        %4761 = vst.msk [vmem:[%s500 + $0x4c0] sm:$0xff] %vm522, %v4570
        %4762 = vst.msk [vmem:[%s500 + $0x4c8] sm:$0xff] %vm522, %v4575
        %4763 = vst.msk [vmem:[%s500 + $0x4d0] sm:$0x1] %vm4612, %v4580
        %4764 = vst.msk [vmem:[%s500 + $0x4d8] sm:$0xff] %vm522, %v4585
        %4765 = vst.msk [vmem:[%s500 + $0x4e0] sm:$0xff] %vm522, %v4590
        %4766 = vst.msk [vmem:[%s500 + $0x4e8] sm:$0xff] %vm522, %v4595
        %4767 = vst.msk [vmem:[%s500 + $0x4f0] sm:$0xff] %vm522, %v4600
        %4768 = vst.msk [vmem:[%s500 + $0x4f8] sm:$0x1] %vm4612, %v4605
        %s4769 = smul.u32 4, %s27
        %p4770 = scmp.lt.s32.totalorder %s4769, 7
        %s4771 = scalar_select %p4770, %s4769, 7
        %s4772 = smul.addr %s4771, 8
        %s4773 = scalar_lea.vmem %s10, %s4772
        %s4774 = smul.u32 32, %s27
        %p4775 = scmp.lt.s32.totalorder %s4774, 63
        %s4776 = scalar_select %p4775, %s4774, 63
        %s4777 = smul.addr %s4776, 5
        %s4778 = smul.addr %s4777, 8
        %s4779 = scalar_lea.vmem %s11, %s4778
        // Predicated region
        $region89: #{tpu_custom_call.1} parent=59 // pred_check
          %p4780 = pneg %p260
        $region90: #{tpu_custom_call.1} parent=59 // pred_check_branch
          %4782 = sbr.rel (%p4780) target = $region92
        $region91: #{tpu_custom_call.1} parent=59 // pred_region
          %s4783 = smul.u32 4, %s27
        $region92: #{tpu_custom_call.1} parent=59 // pred_fallthru
          _
        // Predicated region
        $region93: #{tpu_custom_call.1} parent=59 // pred_check
          %p4784 = pneg %p286
        $region94: #{tpu_custom_call.1} parent=59 // pred_check_branch
          %4786 = sbr.rel (%p4784) target = $region96
        $region95: #{tpu_custom_call.1} parent=59 // pred_region
          %s4787 = smul.u32 32, %s27
        $region96: #{tpu_custom_call.1} parent=59 // pred_fallthru
          _
      $region60: #{tpu_custom_call.1} parent=5 // pred_fallthru
        _
      %p4788 = scmp.le.s32.totalorder 2, %s22
      // Predicated region
      $region97: #{tpu_custom_call.1} parent=5 // pred_check
        %p4789 = pneg %p4788
      $region98: #{tpu_custom_call.1} parent=5 // pred_check_branch
        %4791 = sbr.rel (%p4789) target = $region100
      $region99: #{tpu_custom_call.1} parent=5 // pred_region
        %s4792 = ssub.s32 %s22, 2
        // Predicated region
        $region101: #{tpu_custom_call.1} parent=99 // pred_check
          %p4793 = pneg %p266
        $region102: #{tpu_custom_call.1} parent=99 // pred_check_branch
          %4795 = sbr.rel (%p4793) target = $region104
        $region103: #{tpu_custom_call.1} parent=99 // pred_region
          %s4796 = smul.u32 4, %s28
          %p4797 = scmp.lt.s32.totalorder %s4796, 7
          %s4798 = scalar_select %p4797, %s4796, 7
          %s4799 = smul.addr %s4798, 8
          %s4800 = scalar_lea.vmem %s10, %s4799
        $region104: #{tpu_custom_call.1} parent=99 // pred_fallthru
          _
        // Predicated region
        $region105: #{tpu_custom_call.1} parent=99 // pred_check
          %p4801 = pneg %p292
        $region106: #{tpu_custom_call.1} parent=99 // pred_check_branch
          %4803 = sbr.rel (%p4801) target = $region108
        $region107: #{tpu_custom_call.1} parent=99 // pred_region
          %s4804 = smul.u32 32, %s28
          %p4805 = scmp.lt.s32.totalorder %s4804, 63
          %s4806 = scalar_select %p4805, %s4804, 63
          %s4807 = smul.addr %s4806, 5
          %s4808 = smul.addr %s4807, 8
          %s4809 = scalar_lea.vmem %s11, %s4808
        $region108: #{tpu_custom_call.1} parent=99 // pred_fallthru
          _
      $region100: #{tpu_custom_call.1} parent=5 // pred_fallthru
        _
    $region6: #{tpu_custom_call.1} parent=1 // loop_footer
      %s26 = sadd.s32 1, %s22
    $region7: #{tpu_custom_call.1} parent=1 // loop_footer_branch
      %21 = sbr.rel target = $region3
    $region8: #{tpu_custom_call.1} parent=1 // loop_exit
      _
    %4810 = vsyncpa [#allocation3], 1
    %s4811 = scalar_lea.sflag [#allocation3], 1
    %4812 = vsyncpa %s4811, 1
    %4813 = vsyncpa [#allocation5], 1
    %4814 = vsyncpa [#allocation8], 1
    %4815 = vsyncpa [#allocation11], 1

</llo_original>
